<compile_context>
chip_gen: v5e
topology: v5e:2x2
jax: 0.10.0
libtpu: 0.0.40
codegen_flags: <defaults>
</compile_context>

<pallas_src>
import jax
import jax.numpy as jnp
import numpy as np
from jax.experimental import pallas as pl
from jax.experimental.pallas import tpu as pltpu

# problem sizes consistent with the module's __init__
N_NODES = 16          # nodes per graph
HIDDEN = 32           # graph_encoder_params['hidden_dim']
NUM_ATOM_TYPE = 8     # graph_encoder_params['num_atom_type']
N_LAYER = 2           # graph_encoder_params['n_layer']

BT = 8                # graphs per 128-row block-diagonal group
M_BLK = BT * N_NODES  # 128
BC = 4                # block-diagonal groups per grid step (32 graphs/step)

# ---- packed-parameter slab layout (rows x HIDDEN lanes), 8-row aligned ----
EMB_OFF = 0                          # (NUM_ATOM_TYPE, HIDDEN) embedding table
GW_OFF = EMB_OFF + NUM_ATOM_TYPE     # 8   : N_LAYER * HIDDEN rows of GraphConv W
GB_OFF = GW_OFF + N_LAYER * HIDDEN   # 72  : one row per layer of GraphConv bias
W1_OFF = GB_OFF + 8                  # 80  : (HIDDEN, HIDDEN), cols >= HIDDEN/2 zero
B1_OFF = W1_OFF + HIDDEN             # 112
W2_OFF = B1_OFF + 8                  # 120 : real block (16, 8)
B2_OFF = W2_OFF + HIDDEN             # 152
W3_OFF = B2_OFF + 8                  # 160 : real block (8, 1)
B3_OFF = W3_OFF + HIDDEN             # 192
P_ROWS = B3_OFF + 8                  # 200

# ---- packed resident constants slab (rows x 128 lanes) ----
POOL_OFF = 0                         # (BT, 128) per-graph mean-pool matrix
REP_OFF = POOL_OFF + BT              # 8  : (N, 128) lane-replication matrix
MASK_OFF = REP_OFF + N_NODES         # 24 : (128, 128) same-graph mask
C_ROWS = MASK_OFF + M_BLK            # 152


def gnn_kernel(adj_ref, oneh_ref, p_ref, c_ref, out_ref):
    # adj_ref : (BC, 128, 16) int8 compact adjacency, BC block groups
    # oneh_ref: (BC, 128, 8)  int8 one-hot atom types
    # p_ref   : (P_ROWS, 32)  f32 packed parameters (resident)
    # c_ref   : (C_ROWS, 128) f32 packed constants  (resident)
    # out_ref : (BC*BT, 128)  lane-dense output slab (col 0 = prediction)
    D = HIDDEN
    pool = c_ref[POOL_OFF:POOL_OFF + BT, :]            # (8, 128)
    rep = c_ref[REP_OFF:REP_OFF + N_NODES, :]          # (16, 128)
    mask = c_ref[MASK_OFF:MASK_OFF + M_BLK, :]         # (128, 128)
    emb = p_ref[EMB_OFF:EMB_OFF + NUM_ATOM_TYPE, :]    # (8, 32)
    w1 = p_ref[W1_OFF:W1_OFF + D, :]
    b1 = p_ref[B1_OFF:B1_OFF + 1, :]
    w2 = p_ref[W2_OFF:W2_OFF + D, :]
    b2 = p_ref[B2_OFF:B2_OFF + 1, :]
    w3 = p_ref[W3_OFF:W3_OFF + D, :]
    b3 = p_ref[B3_OFF:B3_OFF + 1, :]

    # statically unrolled loop over the BC block-diagonal groups of this step
    for c in range(BC):
        # ---- expand compact int8 adjacency to a 128x128 block-diagonal ----
        a_c = adj_ref[c].astype(jnp.float32)                          # (128, 16)
        a_bd = jnp.dot(a_c, rep,
                       preferred_element_type=jnp.float32) * mask     # (128, 128)

        # 'both' normalization, degree clamped >= 1 (matches reference).
        # Factored into operands; a_hat is never materialized.
        deg_r = jnp.sum(a_c, axis=1, keepdims=True)                   # (128, 1)
        deg_c = jnp.sum(a_bd, axis=0, keepdims=True)                  # (1, 128)
        norm_r = jax.lax.rsqrt(jnp.maximum(deg_r, 1.0))
        norm_c = jax.lax.rsqrt(jnp.maximum(deg_c, 1.0))
        a_norm = a_bd * norm_c                                        # column-scaled

        # ---- fused embedding lookup: one-hot @ table (single MXU push) ----
        h = jnp.dot(oneh_ref[c].astype(jnp.float32), emb,
                    preferred_element_type=jnp.float32)               # (128, 32)

        # ---- GraphConv layers: aggregate-then-transform ----
        for l in range(N_LAYER):
            w = p_ref[GW_OFF + l * D:GW_OFF + (l + 1) * D, :]         # (32, 32)
            b = p_ref[GB_OFF + l:GB_OFF + l + 1, :]                   # (1, 32)
            h = norm_r * jnp.dot(a_norm, h, preferred_element_type=jnp.float32)
            h = jnp.dot(h, w, preferred_element_type=jnp.float32) + b

        # ---- AvgPooling as (8,128)@(128,32), pool matrix is resident ----
        g = jnp.dot(pool, h, preferred_element_type=jnp.float32)      # (8, 32)

        # ---- MLPReadout (weights zero-padded to 32 lanes; padding stays 0
        #      through the ReLUs so only column 0 of y carries signal) ----
        g = jnp.maximum(jnp.dot(g, w1, preferred_element_type=jnp.float32) + b1, 0.0)
        g = jnp.maximum(jnp.dot(g, w2, preferred_element_type=jnp.float32) + b2, 0.0)
        y = jnp.dot(g, w3, preferred_element_type=jnp.float32) + b3   # (8, 32)

        # lane-dense store; wrapper slices column 0.
        out_ref[c * BT:(c + 1) * BT, :] = jnp.broadcast_to(y[:, :1], (BT, 128))


def pack_params(params):
    """Pack embedding + all weights/biases into one (P_ROWS, HIDDEN) f32 slab."""
    d, d2, d4 = HIDDEN, HIDDEN // 2, HIDDEN // 4
    slab = jnp.zeros((P_ROWS, d), jnp.float32)
    slab = slab.at[EMB_OFF:EMB_OFF + NUM_ATOM_TYPE, :].set(params["emb"])
    for l in range(N_LAYER):
        slab = slab.at[GW_OFF + l * d:GW_OFF + (l + 1) * d, :].set(params["gw"][l])
        slab = slab.at[GB_OFF + l, :].set(params["gb"][l, 0])
    slab = slab.at[W1_OFF:W1_OFF + d, :d2].set(params["w1"])
    slab = slab.at[B1_OFF, :d2].set(params["b1"][0])
    slab = slab.at[W2_OFF:W2_OFF + d2, :d4].set(params["w2"])
    slab = slab.at[B2_OFF, :d4].set(params["b2"][0])
    slab = slab.at[W3_OFF:W3_OFF + d4, :1].set(params["w3"])
    slab = slab.at[B3_OFF, :1].set(params["b3"][0])
    return slab


def make_consts():
    """Resident (C_ROWS, 128) f32 slab: pool matrix, replication matrix, mask."""
    consts = np.zeros((C_ROWS, 128), np.float32)
    node = np.arange(M_BLK)
    # mean-pool: pool[b, j] = 1/N if j // N == b
    consts[POOL_OFF:POOL_OFF + BT, :] = (
        (node[None, :] // N_NODES) == np.arange(BT)[:, None]) / N_NODES
    # lane replication: rep[k, j] = 1 if j % N == k   (a_c @ rep tiles columns)
    consts[REP_OFF:REP_OFF + N_NODES, :] = (
        (node[None, :] % N_NODES) == np.arange(N_NODES)[:, None])
    # same-graph mask: mask[i, j] = 1 if i // N == j // N
    consts[MASK_OFF:MASK_OFF + M_BLK, :] = (
        (node[:, None] // N_NODES) == (node[None, :] // N_NODES))
    return jnp.asarray(consts)


def gnn_forward(adj, atom_types, params):
    # adj: (B, N, N) f32 0/1, atom_types: (B, N) int32  ->  (B, 1) f32
    B, N, _ = adj.shape
    assert N == N_NODES and B % (BT * BC) == 0
    G = B // BT                 # 128-row block-diagonal groups
    nsteps = G // BC            # grid steps (even -> both v7x TCs used)

    # wrapper-side layout plumbing only (no expanded HBM intermediates):
    adj_c = adj.astype(jnp.int8).reshape(G, M_BLK, N_NODES)            # (G,128,16)
    onehot = (atom_types[..., None] == jnp.arange(NUM_ATOM_TYPE)
              ).astype(jnp.int8).reshape(G, M_BLK, NUM_ATOM_TYPE)      # (G,128,8)
    slab = pack_params(params)                                         # (P_ROWS,32)
    consts = make_consts()                                             # (C_ROWS,128)

    out = pl.pallas_call(
        gnn_kernel,
        out_shape=jax.ShapeDtypeStruct((B, 128), jnp.float32),
        grid_spec=pltpu.PrefetchScalarGridSpec(
            num_scalar_prefetch=0,
            grid=(nsteps,),
            in_specs=[
                pl.BlockSpec((BC, M_BLK, N_NODES), lambda s: (s, 0, 0)),
                pl.BlockSpec((BC, M_BLK, NUM_ATOM_TYPE), lambda s: (s, 0, 0)),
                pl.BlockSpec((P_ROWS, HIDDEN), lambda s: (0, 0)),   # resident
                pl.BlockSpec((C_ROWS, 128), lambda s: (0, 0)),      # resident
            ],
            out_specs=pl.BlockSpec((BC * BT, 128), lambda s: (s, 0)),
        ),
        compiler_params=pltpu.CompilerParams(
            dimension_semantics=("parallel",)),
    )(adj_c, onehot, slab, consts)
    return out[:, :1]                                                  # (B, 1)


def gnn_reference(adj, atom_types, params):
    # pure-JAX reference with identical semantics
    def single(a, t):
        deg_r = jnp.sum(a, axis=1, keepdims=True)
        deg_c = jnp.sum(a, axis=0, keepdims=True)
        norm_r = jax.lax.rsqrt(jnp.maximum(deg_r, 1.0))
        norm_c = jax.lax.rsqrt(jnp.maximum(deg_c, 1.0))
        a_hat = norm_r * a * norm_c
        h = params["emb"][t]
        for l in range(N_LAYER):
            h = a_hat @ h
            h = h @ params["gw"][l] + params["gb"][l]
        g = jnp.mean(h, axis=0, keepdims=True)
        g = jax.nn.relu(g @ params["w1"] + params["b1"])
        g = jax.nn.relu(g @ params["w2"] + params["b2"])
        return (g @ params["w3"] + params["b3"])[0]                    # (1,)
    return jax.vmap(single)(adj, atom_types)                           # (B, 1)


def init_params(key):
    ks = jax.random.split(key, 12)
    d, d2, d4 = HIDDEN, HIDDEN // 2, HIDDEN // 4
    scale = lambda fan_in: 1.0 / np.sqrt(fan_in)
    return {
        # nn.Embedding(num_atom_type, hidden_dim)
        "emb": jax.random.normal(ks[0], (NUM_ATOM_TYPE, d), jnp.float32),
        # GraphConv weights/biases, stacked over layers
        "gw": jax.random.uniform(ks[1], (N_LAYER, d, d), jnp.float32,
                                 -scale(d), scale(d)),
        "gb": jax.random.uniform(ks[2], (N_LAYER, 1, d), jnp.float32,
                                 -scale(d), scale(d)),
        # MLPReadout linears
        "w1": jax.random.uniform(ks[3], (d, d2), jnp.float32, -scale(d), scale(d)),
        "b1": jax.random.uniform(ks[4], (1, d2), jnp.float32, -scale(d), scale(d)),
        "w2": jax.random.uniform(ks[5], (d2, d4), jnp.float32, -scale(d2), scale(d2)),
        "b2": jax.random.uniform(ks[6], (1, d4), jnp.float32, -scale(d2), scale(d2)),
        "w3": jax.random.uniform(ks[7], (d4, 1), jnp.float32, -scale(d4), scale(d4)),
        "b3": jax.random.uniform(ks[8], (1, 1), jnp.float32, -scale(d4), scale(d4)),
    }


if __name__ == "__main__":
    key = jax.random.PRNGKey(0)
    k_adj, k_types, k_params = jax.random.split(key, 3)

    B = 64  # batch of graphs -> grid = B // (BT*BC) = 2 "parallel" steps

    # deterministic synthetic graphs: symmetric 0/1 adjacency, no self-loops
    upper = (jax.random.uniform(k_adj, (B, N_NODES, N_NODES)) < 0.3).astype(jnp.float32)
    upper = jnp.triu(upper, k=1)
    adj = upper + jnp.swapaxes(upper, -1, -2)                          # (B, N, N)

    # node atom-type indices (graph.ndata['f'])
    atom_types = jax.random.randint(k_types, (B, N_NODES), 0, NUM_ATOM_TYPE)

    params = init_params(k_params)

    out = gnn_forward(adj, atom_types, params)
    out = jax.block_until_ready(out)

    ref = gnn_reference(adj, atom_types, params)
    assert out.shape == (B, 1)
    assert jnp.allclose(out, ref, atol=1e-4, rtol=1e-4), (out, ref)
    print("KERNEL_OK")
</pallas_src>

<mosaic_0001>
module attributes {stable_mosaic.version = 11 : i64} {
  func.func @gnn_kernel(%arg0: i32, %arg1: memref<4x128x16xi8, #tpu.memory_space<vmem>>, %arg2: memref<4x128x8xi8, #tpu.memory_space<vmem>>, %arg3: memref<200x32xf32, #tpu.memory_space<vmem>>, %arg4: memref<152x128xf32, #tpu.memory_space<vmem>>, %arg5: memref<32x128xf32, #tpu.memory_space<vmem>>) attributes {dimension_semantics = [#tpu.dimension_semantics<parallel>], iteration_bounds = array<i64: 2>, scalar_prefetch = 0 : i64, scratch_operands = 0 : i64, tpu.core_type = #tpu.core_type<tc>, window_params = [{transform_indices = @transform_0, window_bounds = array<i64: 4, 128, 16>}, {transform_indices = @transform_1, window_bounds = array<i64: 4, 128, 8>}, {pipeline_mode = #tpu.pipeline_mode<synchronous>, transform_indices = @transform_2, window_bounds = array<i64: 200, 32>}, {pipeline_mode = #tpu.pipeline_mode<synchronous>, transform_indices = @transform_3, window_bounds = array<i64: 152, 128>}, {transform_indices = @transform_4, window_bounds = array<i64: 32, 128>}]} {
    %c0 = arith.constant 0 : index
    %c0_0 = arith.constant 0 : index
    %0 = vector.load %arg4[%c0, %c0_0] : memref<152x128xf32, #tpu.memory_space<vmem>>, vector<8x128xf32>
    %c8 = arith.constant 8 : index
    %c0_1 = arith.constant 0 : index
    %1 = vector.load %arg4[%c8, %c0_1] : memref<152x128xf32, #tpu.memory_space<vmem>>, vector<16x128xf32>
    %c24 = arith.constant 24 : index
    %c0_2 = arith.constant 0 : index
    %2 = vector.load %arg4[%c24, %c0_2] : memref<152x128xf32, #tpu.memory_space<vmem>>, vector<128x128xf32>
    %c0_3 = arith.constant 0 : index
    %c0_4 = arith.constant 0 : index
    %3 = vector.load %arg3[%c0_3, %c0_4] : memref<200x32xf32, #tpu.memory_space<vmem>>, vector<8x32xf32>
    %c80 = arith.constant 80 : index
    %c0_5 = arith.constant 0 : index
    %4 = vector.load %arg3[%c80, %c0_5] : memref<200x32xf32, #tpu.memory_space<vmem>>, vector<32x32xf32>
    %c112 = arith.constant 112 : index
    %c0_6 = arith.constant 0 : index
    %5 = vector.load %arg3[%c112, %c0_6] : memref<200x32xf32, #tpu.memory_space<vmem>>, vector<1x32xf32>
    %c120 = arith.constant 120 : index
    %c0_7 = arith.constant 0 : index
    %6 = vector.load %arg3[%c120, %c0_7] : memref<200x32xf32, #tpu.memory_space<vmem>>, vector<32x32xf32>
    %c152 = arith.constant 152 : index
    %c0_8 = arith.constant 0 : index
    %7 = vector.load %arg3[%c152, %c0_8] : memref<200x32xf32, #tpu.memory_space<vmem>>, vector<1x32xf32>
    %c160 = arith.constant 160 : index
    %c0_9 = arith.constant 0 : index
    %8 = vector.load %arg3[%c160, %c0_9] : memref<200x32xf32, #tpu.memory_space<vmem>>, vector<32x32xf32>
    %c192 = arith.constant 192 : index
    %c0_10 = arith.constant 0 : index
    %9 = vector.load %arg3[%c192, %c0_10] : memref<200x32xf32, #tpu.memory_space<vmem>>, vector<1x32xf32>
    %c0_11 = arith.constant 0 : index
    %c0_12 = arith.constant 0 : index
    %c0_13 = arith.constant 0 : index
    %10 = vector.load %arg1[%c0_11, %c0_12, %c0_13] : memref<4x128x16xi8, #tpu.memory_space<vmem>>, vector<1x128x16xi8>
    %11 = vector.shape_cast %10 : vector<1x128x16xi8> to vector<128x16xi8>
    %12 = arith.sitofp %11 : vector<128x16xi8> to vector<128x16xf32>
    %cst = arith.constant dense<0.000000e+00> : vector<128x128xf32>
    %13 = tpu.matmul %12, %1, %cst {dimension_numbers = #tpu.dot_dimension_numbers<[1], [0], [0], [1], [0, 0, 1, 1], [], []>} : vector<128x16xf32>, vector<16x128xf32>, vector<128x128xf32> -> vector<128x128xf32>
    %14 = arith.mulf %13, %2 : vector<128x128xf32>
    %cst_14 = arith.constant dense<0.000000e+00> : vector<128xf32>
    %15 = vector.multi_reduction <add>, %12, %cst_14 [1] : vector<128x16xf32> to vector<128xf32>
    %16 = vector.shape_cast %15 : vector<128xf32> to vector<128x1xf32>
    %cst_15 = arith.constant dense<0.000000e+00> : vector<128xf32>
    %17 = vector.multi_reduction <add>, %14, %cst_15 [0] : vector<128x128xf32> to vector<128xf32>
    %18 = vector.shape_cast %17 : vector<128xf32> to vector<1x128xf32>
    %cst_16 = arith.constant 1.000000e+00 : f32
    %19 = vector.broadcast %cst_16 : f32 to vector<128x1xf32>
    %20 = arith.maximumf %16, %19 : vector<128x1xf32>
    %21 = math.rsqrt %20 : vector<128x1xf32>
    %cst_17 = arith.constant 1.000000e+00 : f32
    %22 = vector.broadcast %cst_17 : f32 to vector<1x128xf32>
    %23 = arith.maximumf %18, %22 : vector<1x128xf32>
    %24 = math.rsqrt %23 : vector<1x128xf32>
    %25 = vector.broadcast %24 : vector<1x128xf32> to vector<128x128xf32>
    %26 = arith.mulf %14, %25 : vector<128x128xf32>
    %c0_18 = arith.constant 0 : index
    %c0_19 = arith.constant 0 : index
    %c0_20 = arith.constant 0 : index
    %27 = vector.load %arg2[%c0_18, %c0_19, %c0_20] : memref<4x128x8xi8, #tpu.memory_space<vmem>>, vector<1x128x8xi8>
    %28 = vector.shape_cast %27 : vector<1x128x8xi8> to vector<128x8xi8>
    %29 = arith.sitofp %28 : vector<128x8xi8> to vector<128x8xf32>
    %cst_21 = arith.constant dense<0.000000e+00> : vector<128x32xf32>
    %30 = tpu.matmul %29, %3, %cst_21 {dimension_numbers = #tpu.dot_dimension_numbers<[1], [0], [0], [1], [0, 0, 1, 1], [], []>} : vector<128x8xf32>, vector<8x32xf32>, vector<128x32xf32> -> vector<128x32xf32>
    %c8_22 = arith.constant 8 : index
    %c0_23 = arith.constant 0 : index
    %31 = vector.load %arg3[%c8_22, %c0_23] : memref<200x32xf32, #tpu.memory_space<vmem>>, vector<32x32xf32>
    %c72 = arith.constant 72 : index
    %c0_24 = arith.constant 0 : index
    %32 = vector.load %arg3[%c72, %c0_24] : memref<200x32xf32, #tpu.memory_space<vmem>>, vector<1x32xf32>
    %cst_25 = arith.constant dense<0.000000e+00> : vector<128x32xf32>
    %33 = tpu.matmul %26, %30, %cst_25 {dimension_numbers = #tpu.dot_dimension_numbers<[1], [0], [0], [1], [0, 0, 1, 1], [], []>} : vector<128x128xf32>, vector<128x32xf32>, vector<128x32xf32> -> vector<128x32xf32>
    %34 = vector.broadcast %21 : vector<128x1xf32> to vector<128x32xf32>
    %35 = arith.mulf %34, %33 : vector<128x32xf32>
    %cst_26 = arith.constant dense<0.000000e+00> : vector<128x32xf32>
    %36 = tpu.matmul %35, %31, %cst_26 {dimension_numbers = #tpu.dot_dimension_numbers<[1], [0], [0], [1], [0, 0, 1, 1], [], []>} : vector<128x32xf32>, vector<32x32xf32>, vector<128x32xf32> -> vector<128x32xf32>
    %37 = vector.broadcast %32 : vector<1x32xf32> to vector<128x32xf32>
    %38 = arith.addf %36, %37 : vector<128x32xf32>
    %c40 = arith.constant 40 : index
    %c0_27 = arith.constant 0 : index
    %39 = vector.load %arg3[%c40, %c0_27] : memref<200x32xf32, #tpu.memory_space<vmem>>, vector<32x32xf32>
    %c73 = arith.constant 73 : index
    %c0_28 = arith.constant 0 : index
    %40 = vector.load %arg3[%c73, %c0_28] : memref<200x32xf32, #tpu.memory_space<vmem>>, vector<1x32xf32>
    %cst_29 = arith.constant dense<0.000000e+00> : vector<128x32xf32>
    %41 = tpu.matmul %26, %38, %cst_29 {dimension_numbers = #tpu.dot_dimension_numbers<[1], [0], [0], [1], [0, 0, 1, 1], [], []>} : vector<128x128xf32>, vector<128x32xf32>, vector<128x32xf32> -> vector<128x32xf32>
    %42 = vector.broadcast %21 : vector<128x1xf32> to vector<128x32xf32>
    %43 = arith.mulf %42, %41 : vector<128x32xf32>
    %cst_30 = arith.constant dense<0.000000e+00> : vector<128x32xf32>
    %44 = tpu.matmul %43, %39, %cst_30 {dimension_numbers = #tpu.dot_dimension_numbers<[1], [0], [0], [1], [0, 0, 1, 1], [], []>} : vector<128x32xf32>, vector<32x32xf32>, vector<128x32xf32> -> vector<128x32xf32>
    %45 = vector.broadcast %40 : vector<1x32xf32> to vector<128x32xf32>
    %46 = arith.addf %44, %45 : vector<128x32xf32>
    %cst_31 = arith.constant dense<0.000000e+00> : vector<8x32xf32>
    %47 = tpu.matmul %0, %46, %cst_31 {dimension_numbers = #tpu.dot_dimension_numbers<[1], [0], [0], [1], [0, 0, 1, 1], [], []>} : vector<8x128xf32>, vector<128x32xf32>, vector<8x32xf32> -> vector<8x32xf32>
    %cst_32 = arith.constant dense<0.000000e+00> : vector<8x32xf32>
    %48 = tpu.matmul %47, %4, %cst_32 {dimension_numbers = #tpu.dot_dimension_numbers<[1], [0], [0], [1], [0, 0, 1, 1], [], []>} : vector<8x32xf32>, vector<32x32xf32>, vector<8x32xf32> -> vector<8x32xf32>
    %49 = vector.broadcast %5 : vector<1x32xf32> to vector<8x32xf32>
    %50 = arith.addf %48, %49 : vector<8x32xf32>
    %cst_33 = arith.constant 0.000000e+00 : f32
    %51 = vector.broadcast %cst_33 : f32 to vector<8x32xf32>
    %52 = arith.maximumf %50, %51 : vector<8x32xf32>
    %cst_34 = arith.constant dense<0.000000e+00> : vector<8x32xf32>
    %53 = tpu.matmul %52, %6, %cst_34 {dimension_numbers = #tpu.dot_dimension_numbers<[1], [0], [0], [1], [0, 0, 1, 1], [], []>} : vector<8x32xf32>, vector<32x32xf32>, vector<8x32xf32> -> vector<8x32xf32>
    %54 = vector.broadcast %7 : vector<1x32xf32> to vector<8x32xf32>
    %55 = arith.addf %53, %54 : vector<8x32xf32>
    %cst_35 = arith.constant 0.000000e+00 : f32
    %56 = vector.broadcast %cst_35 : f32 to vector<8x32xf32>
    %57 = arith.maximumf %55, %56 : vector<8x32xf32>
    %cst_36 = arith.constant dense<0.000000e+00> : vector<8x32xf32>
    %58 = tpu.matmul %57, %8, %cst_36 {dimension_numbers = #tpu.dot_dimension_numbers<[1], [0], [0], [1], [0, 0, 1, 1], [], []>} : vector<8x32xf32>, vector<32x32xf32>, vector<8x32xf32> -> vector<8x32xf32>
    %59 = vector.broadcast %9 : vector<1x32xf32> to vector<8x32xf32>
    %60 = arith.addf %58, %59 : vector<8x32xf32>
    %61 = vector.extract_strided_slice %60 {offsets = [0, 0], sizes = [8, 1], strides = [1, 1]} : vector<8x32xf32> to vector<8x1xf32>
    %62 = vector.shape_cast %61 : vector<8x1xf32> to vector<8x1xf32>
    %63 = vector.broadcast %62 : vector<8x1xf32> to vector<8x128xf32>
    %c0_37 = arith.constant 0 : index
    %c0_38 = arith.constant 0 : index
    %64 = vector.load %arg5[%c0_37, %c0_38] : memref<32x128xf32, #tpu.memory_space<vmem>>, vector<8x128xf32>
    tpu.vector_store %arg5[%c0_37, %c0_38], %63 {strides = array<i32>} : memref<32x128xf32, #tpu.memory_space<vmem>>, vector<8x128xf32>,
    %c1 = arith.constant 1 : index
    %c0_39 = arith.constant 0 : index
    %c0_40 = arith.constant 0 : index
    %65 = vector.load %arg1[%c1, %c0_39, %c0_40] : memref<4x128x16xi8, #tpu.memory_space<vmem>>, vector<1x128x16xi8>
    %66 = vector.shape_cast %65 : vector<1x128x16xi8> to vector<128x16xi8>
    %67 = arith.sitofp %66 : vector<128x16xi8> to vector<128x16xf32>
    %cst_41 = arith.constant dense<0.000000e+00> : vector<128x128xf32>
    %68 = tpu.matmul %67, %1, %cst_41 {dimension_numbers = #tpu.dot_dimension_numbers<[1], [0], [0], [1], [0, 0, 1, 1], [], []>} : vector<128x16xf32>, vector<16x128xf32>, vector<128x128xf32> -> vector<128x128xf32>
    %69 = arith.mulf %68, %2 : vector<128x128xf32>
    %cst_42 = arith.constant dense<0.000000e+00> : vector<128xf32>
    %70 = vector.multi_reduction <add>, %67, %cst_42 [1] : vector<128x16xf32> to vector<128xf32>
    %71 = vector.shape_cast %70 : vector<128xf32> to vector<128x1xf32>
    %cst_43 = arith.constant dense<0.000000e+00> : vector<128xf32>
    %72 = vector.multi_reduction <add>, %69, %cst_43 [0] : vector<128x128xf32> to vector<128xf32>
    %73 = vector.shape_cast %72 : vector<128xf32> to vector<1x128xf32>
    %cst_44 = arith.constant 1.000000e+00 : f32
    %74 = vector.broadcast %cst_44 : f32 to vector<128x1xf32>
    %75 = arith.maximumf %71, %74 : vector<128x1xf32>
    %76 = math.rsqrt %75 : vector<128x1xf32>
    %cst_45 = arith.constant 1.000000e+00 : f32
    %77 = vector.broadcast %cst_45 : f32 to vector<1x128xf32>
    %78 = arith.maximumf %73, %77 : vector<1x128xf32>
    %79 = math.rsqrt %78 : vector<1x128xf32>
    %80 = vector.broadcast %79 : vector<1x128xf32> to vector<128x128xf32>
    %81 = arith.mulf %69, %80 : vector<128x128xf32>
    %c1_46 = arith.constant 1 : index
    %c0_47 = arith.constant 0 : index
    %c0_48 = arith.constant 0 : index
    %82 = vector.load %arg2[%c1_46, %c0_47, %c0_48] : memref<4x128x8xi8, #tpu.memory_space<vmem>>, vector<1x128x8xi8>
    %83 = vector.shape_cast %82 : vector<1x128x8xi8> to vector<128x8xi8>
    %84 = arith.sitofp %83 : vector<128x8xi8> to vector<128x8xf32>
    %cst_49 = arith.constant dense<0.000000e+00> : vector<128x32xf32>
    %85 = tpu.matmul %84, %3, %cst_49 {dimension_numbers = #tpu.dot_dimension_numbers<[1], [0], [0], [1], [0, 0, 1, 1], [], []>} : vector<128x8xf32>, vector<8x32xf32>, vector<128x32xf32> -> vector<128x32xf32>
    %c8_50 = arith.constant 8 : index
    %c0_51 = arith.constant 0 : index
    %86 = vector.load %arg3[%c8_50, %c0_51] : memref<200x32xf32, #tpu.memory_space<vmem>>, vector<32x32xf32>
    %c72_52 = arith.constant 72 : index
    %c0_53 = arith.constant 0 : index
    %87 = vector.load %arg3[%c72_52, %c0_53] : memref<200x32xf32, #tpu.memory_space<vmem>>, vector<1x32xf32>
    %cst_54 = arith.constant dense<0.000000e+00> : vector<128x32xf32>
    %88 = tpu.matmul %81, %85, %cst_54 {dimension_numbers = #tpu.dot_dimension_numbers<[1], [0], [0], [1], [0, 0, 1, 1], [], []>} : vector<128x128xf32>, vector<128x32xf32>, vector<128x32xf32> -> vector<128x32xf32>
    %89 = vector.broadcast %76 : vector<128x1xf32> to vector<128x32xf32>
    %90 = arith.mulf %89, %88 : vector<128x32xf32>
    %cst_55 = arith.constant dense<0.000000e+00> : vector<128x32xf32>
    %91 = tpu.matmul %90, %86, %cst_55 {dimension_numbers = #tpu.dot_dimension_numbers<[1], [0], [0], [1], [0, 0, 1, 1], [], []>} : vector<128x32xf32>, vector<32x32xf32>, vector<128x32xf32> -> vector<128x32xf32>
    %92 = vector.broadcast %87 : vector<1x32xf32> to vector<128x32xf32>
    %93 = arith.addf %91, %92 : vector<128x32xf32>
    %c40_56 = arith.constant 40 : index
    %c0_57 = arith.constant 0 : index
    %94 = vector.load %arg3[%c40_56, %c0_57] : memref<200x32xf32, #tpu.memory_space<vmem>>, vector<32x32xf32>
    %c73_58 = arith.constant 73 : index
    %c0_59 = arith.constant 0 : index
    %95 = vector.load %arg3[%c73_58, %c0_59] : memref<200x32xf32, #tpu.memory_space<vmem>>, vector<1x32xf32>
    %cst_60 = arith.constant dense<0.000000e+00> : vector<128x32xf32>
    %96 = tpu.matmul %81, %93, %cst_60 {dimension_numbers = #tpu.dot_dimension_numbers<[1], [0], [0], [1], [0, 0, 1, 1], [], []>} : vector<128x128xf32>, vector<128x32xf32>, vector<128x32xf32> -> vector<128x32xf32>
    %97 = vector.broadcast %76 : vector<128x1xf32> to vector<128x32xf32>
    %98 = arith.mulf %97, %96 : vector<128x32xf32>
    %cst_61 = arith.constant dense<0.000000e+00> : vector<128x32xf32>
    %99 = tpu.matmul %98, %94, %cst_61 {dimension_numbers = #tpu.dot_dimension_numbers<[1], [0], [0], [1], [0, 0, 1, 1], [], []>} : vector<128x32xf32>, vector<32x32xf32>, vector<128x32xf32> -> vector<128x32xf32>
    %100 = vector.broadcast %95 : vector<1x32xf32> to vector<128x32xf32>
    %101 = arith.addf %99, %100 : vector<128x32xf32>
    %cst_62 = arith.constant dense<0.000000e+00> : vector<8x32xf32>
    %102 = tpu.matmul %0, %101, %cst_62 {dimension_numbers = #tpu.dot_dimension_numbers<[1], [0], [0], [1], [0, 0, 1, 1], [], []>} : vector<8x128xf32>, vector<128x32xf32>, vector<8x32xf32> -> vector<8x32xf32>
    %cst_63 = arith.constant dense<0.000000e+00> : vector<8x32xf32>
    %103 = tpu.matmul %102, %4, %cst_63 {dimension_numbers = #tpu.dot_dimension_numbers<[1], [0], [0], [1], [0, 0, 1, 1], [], []>} : vector<8x32xf32>, vector<32x32xf32>, vector<8x32xf32> -> vector<8x32xf32>
    %104 = vector.broadcast %5 : vector<1x32xf32> to vector<8x32xf32>
    %105 = arith.addf %103, %104 : vector<8x32xf32>
    %cst_64 = arith.constant 0.000000e+00 : f32
    %106 = vector.broadcast %cst_64 : f32 to vector<8x32xf32>
    %107 = arith.maximumf %105, %106 : vector<8x32xf32>
    %cst_65 = arith.constant dense<0.000000e+00> : vector<8x32xf32>
    %108 = tpu.matmul %107, %6, %cst_65 {dimension_numbers = #tpu.dot_dimension_numbers<[1], [0], [0], [1], [0, 0, 1, 1], [], []>} : vector<8x32xf32>, vector<32x32xf32>, vector<8x32xf32> -> vector<8x32xf32>
    %109 = vector.broadcast %7 : vector<1x32xf32> to vector<8x32xf32>
    %110 = arith.addf %108, %109 : vector<8x32xf32>
    %cst_66 = arith.constant 0.000000e+00 : f32
    %111 = vector.broadcast %cst_66 : f32 to vector<8x32xf32>
    %112 = arith.maximumf %110, %111 : vector<8x32xf32>
    %cst_67 = arith.constant dense<0.000000e+00> : vector<8x32xf32>
    %113 = tpu.matmul %112, %8, %cst_67 {dimension_numbers = #tpu.dot_dimension_numbers<[1], [0], [0], [1], [0, 0, 1, 1], [], []>} : vector<8x32xf32>, vector<32x32xf32>, vector<8x32xf32> -> vector<8x32xf32>
    %114 = vector.broadcast %9 : vector<1x32xf32> to vector<8x32xf32>
    %115 = arith.addf %113, %114 : vector<8x32xf32>
    %116 = vector.extract_strided_slice %115 {offsets = [0, 0], sizes = [8, 1], strides = [1, 1]} : vector<8x32xf32> to vector<8x1xf32>
    %117 = vector.shape_cast %116 : vector<8x1xf32> to vector<8x1xf32>
    %118 = vector.broadcast %117 : vector<8x1xf32> to vector<8x128xf32>
    %c8_68 = arith.constant 8 : index
    %c0_69 = arith.constant 0 : index
    %119 = vector.load %arg5[%c8_68, %c0_69] : memref<32x128xf32, #tpu.memory_space<vmem>>, vector<8x128xf32>
    tpu.vector_store %arg5[%c8_68, %c0_69], %118 {strides = array<i32>} : memref<32x128xf32, #tpu.memory_space<vmem>>, vector<8x128xf32>,
    %c2 = arith.constant 2 : index
    %c0_70 = arith.constant 0 : index
    %c0_71 = arith.constant 0 : index
    %120 = vector.load %arg1[%c2, %c0_70, %c0_71] : memref<4x128x16xi8, #tpu.memory_space<vmem>>, vector<1x128x16xi8>
    %121 = vector.shape_cast %120 : vector<1x128x16xi8> to vector<128x16xi8>
    %122 = arith.sitofp %121 : vector<128x16xi8> to vector<128x16xf32>
    %cst_72 = arith.constant dense<0.000000e+00> : vector<128x128xf32>
    %123 = tpu.matmul %122, %1, %cst_72 {dimension_numbers = #tpu.dot_dimension_numbers<[1], [0], [0], [1], [0, 0, 1, 1], [], []>} : vector<128x16xf32>, vector<16x128xf32>, vector<128x128xf32> -> vector<128x128xf32>
    %124 = arith.mulf %123, %2 : vector<128x128xf32>
    %cst_73 = arith.constant dense<0.000000e+00> : vector<128xf32>
    %125 = vector.multi_reduction <add>, %122, %cst_73 [1] : vector<128x16xf32> to vector<128xf32>
    %126 = vector.shape_cast %125 : vector<128xf32> to vector<128x1xf32>
    %cst_74 = arith.constant dense<0.000000e+00> : vector<128xf32>
    %127 = vector.multi_reduction <add>, %124, %cst_74 [0] : vector<128x128xf32> to vector<128xf32>
    %128 = vector.shape_cast %127 : vector<128xf32> to vector<1x128xf32>
    %cst_75 = arith.constant 1.000000e+00 : f32
    %129 = vector.broadcast %cst_75 : f32 to vector<128x1xf32>
    %130 = arith.maximumf %126, %129 : vector<128x1xf32>
    %131 = math.rsqrt %130 : vector<128x1xf32>
    %cst_76 = arith.constant 1.000000e+00 : f32
    %132 = vector.broadcast %cst_76 : f32 to vector<1x128xf32>
    %133 = arith.maximumf %128, %132 : vector<1x128xf32>
    %134 = math.rsqrt %133 : vector<1x128xf32>
    %135 = vector.broadcast %134 : vector<1x128xf32> to vector<128x128xf32>
    %136 = arith.mulf %124, %135 : vector<128x128xf32>
    %c2_77 = arith.constant 2 : index
    %c0_78 = arith.constant 0 : index
    %c0_79 = arith.constant 0 : index
    %137 = vector.load %arg2[%c2_77, %c0_78, %c0_79] : memref<4x128x8xi8, #tpu.memory_space<vmem>>, vector<1x128x8xi8>
    %138 = vector.shape_cast %137 : vector<1x128x8xi8> to vector<128x8xi8>
    %139 = arith.sitofp %138 : vector<128x8xi8> to vector<128x8xf32>
    %cst_80 = arith.constant dense<0.000000e+00> : vector<128x32xf32>
    %140 = tpu.matmul %139, %3, %cst_80 {dimension_numbers = #tpu.dot_dimension_numbers<[1], [0], [0], [1], [0, 0, 1, 1], [], []>} : vector<128x8xf32>, vector<8x32xf32>, vector<128x32xf32> -> vector<128x32xf32>
    %c8_81 = arith.constant 8 : index
    %c0_82 = arith.constant 0 : index
    %141 = vector.load %arg3[%c8_81, %c0_82] : memref<200x32xf32, #tpu.memory_space<vmem>>, vector<32x32xf32>
    %c72_83 = arith.constant 72 : index
    %c0_84 = arith.constant 0 : index
    %142 = vector.load %arg3[%c72_83, %c0_84] : memref<200x32xf32, #tpu.memory_space<vmem>>, vector<1x32xf32>
    %cst_85 = arith.constant dense<0.000000e+00> : vector<128x32xf32>
    %143 = tpu.matmul %136, %140, %cst_85 {dimension_numbers = #tpu.dot_dimension_numbers<[1], [0], [0], [1], [0, 0, 1, 1], [], []>} : vector<128x128xf32>, vector<128x32xf32>, vector<128x32xf32> -> vector<128x32xf32>
    %144 = vector.broadcast %131 : vector<128x1xf32> to vector<128x32xf32>
    %145 = arith.mulf %144, %143 : vector<128x32xf32>
    %cst_86 = arith.constant dense<0.000000e+00> : vector<128x32xf32>
    %146 = tpu.matmul %145, %141, %cst_86 {dimension_numbers = #tpu.dot_dimension_numbers<[1], [0], [0], [1], [0, 0, 1, 1], [], []>} : vector<128x32xf32>, vector<32x32xf32>, vector<128x32xf32> -> vector<128x32xf32>
    %147 = vector.broadcast %142 : vector<1x32xf32> to vector<128x32xf32>
    %148 = arith.addf %146, %147 : vector<128x32xf32>
    %c40_87 = arith.constant 40 : index
    %c0_88 = arith.constant 0 : index
    %149 = vector.load %arg3[%c40_87, %c0_88] : memref<200x32xf32, #tpu.memory_space<vmem>>, vector<32x32xf32>
    %c73_89 = arith.constant 73 : index
    %c0_90 = arith.constant 0 : index
    %150 = vector.load %arg3[%c73_89, %c0_90] : memref<200x32xf32, #tpu.memory_space<vmem>>, vector<1x32xf32>
    %cst_91 = arith.constant dense<0.000000e+00> : vector<128x32xf32>
    %151 = tpu.matmul %136, %148, %cst_91 {dimension_numbers = #tpu.dot_dimension_numbers<[1], [0], [0], [1], [0, 0, 1, 1], [], []>} : vector<128x128xf32>, vector<128x32xf32>, vector<128x32xf32> -> vector<128x32xf32>
    %152 = vector.broadcast %131 : vector<128x1xf32> to vector<128x32xf32>
    %153 = arith.mulf %152, %151 : vector<128x32xf32>
    %cst_92 = arith.constant dense<0.000000e+00> : vector<128x32xf32>
    %154 = tpu.matmul %153, %149, %cst_92 {dimension_numbers = #tpu.dot_dimension_numbers<[1], [0], [0], [1], [0, 0, 1, 1], [], []>} : vector<128x32xf32>, vector<32x32xf32>, vector<128x32xf32> -> vector<128x32xf32>
    %155 = vector.broadcast %150 : vector<1x32xf32> to vector<128x32xf32>
    %156 = arith.addf %154, %155 : vector<128x32xf32>
    %cst_93 = arith.constant dense<0.000000e+00> : vector<8x32xf32>
    %157 = tpu.matmul %0, %156, %cst_93 {dimension_numbers = #tpu.dot_dimension_numbers<[1], [0], [0], [1], [0, 0, 1, 1], [], []>} : vector<8x128xf32>, vector<128x32xf32>, vector<8x32xf32> -> vector<8x32xf32>
    %cst_94 = arith.constant dense<0.000000e+00> : vector<8x32xf32>
    %158 = tpu.matmul %157, %4, %cst_94 {dimension_numbers = #tpu.dot_dimension_numbers<[1], [0], [0], [1], [0, 0, 1, 1], [], []>} : vector<8x32xf32>, vector<32x32xf32>, vector<8x32xf32> -> vector<8x32xf32>
    %159 = vector.broadcast %5 : vector<1x32xf32> to vector<8x32xf32>
    %160 = arith.addf %158, %159 : vector<8x32xf32>
    %cst_95 = arith.constant 0.000000e+00 : f32
    %161 = vector.broadcast %cst_95 : f32 to vector<8x32xf32>
    %162 = arith.maximumf %160, %161 : vector<8x32xf32>
    %cst_96 = arith.constant dense<0.000000e+00> : vector<8x32xf32>
    %163 = tpu.matmul %162, %6, %cst_96 {dimension_numbers = #tpu.dot_dimension_numbers<[1], [0], [0], [1], [0, 0, 1, 1], [], []>} : vector<8x32xf32>, vector<32x32xf32>, vector<8x32xf32> -> vector<8x32xf32>
    %164 = vector.broadcast %7 : vector<1x32xf32> to vector<8x32xf32>
    %165 = arith.addf %163, %164 : vector<8x32xf32>
    %cst_97 = arith.constant 0.000000e+00 : f32
    %166 = vector.broadcast %cst_97 : f32 to vector<8x32xf32>
    %167 = arith.maximumf %165, %166 : vector<8x32xf32>
    %cst_98 = arith.constant dense<0.000000e+00> : vector<8x32xf32>
    %168 = tpu.matmul %167, %8, %cst_98 {dimension_numbers = #tpu.dot_dimension_numbers<[1], [0], [0], [1], [0, 0, 1, 1], [], []>} : vector<8x32xf32>, vector<32x32xf32>, vector<8x32xf32> -> vector<8x32xf32>
    %169 = vector.broadcast %9 : vector<1x32xf32> to vector<8x32xf32>
    %170 = arith.addf %168, %169 : vector<8x32xf32>
    %171 = vector.extract_strided_slice %170 {offsets = [0, 0], sizes = [8, 1], strides = [1, 1]} : vector<8x32xf32> to vector<8x1xf32>
    %172 = vector.shape_cast %171 : vector<8x1xf32> to vector<8x1xf32>
    %173 = vector.broadcast %172 : vector<8x1xf32> to vector<8x128xf32>
    %c16 = arith.constant 16 : index
    %c0_99 = arith.constant 0 : index
    %174 = vector.load %arg5[%c16, %c0_99] : memref<32x128xf32, #tpu.memory_space<vmem>>, vector<8x128xf32>
    tpu.vector_store %arg5[%c16, %c0_99], %173 {strides = array<i32>} : memref<32x128xf32, #tpu.memory_space<vmem>>, vector<8x128xf32>,
    %c3 = arith.constant 3 : index
    %c0_100 = arith.constant 0 : index
    %c0_101 = arith.constant 0 : index
    %175 = vector.load %arg1[%c3, %c0_100, %c0_101] : memref<4x128x16xi8, #tpu.memory_space<vmem>>, vector<1x128x16xi8>
    %176 = vector.shape_cast %175 : vector<1x128x16xi8> to vector<128x16xi8>
    %177 = arith.sitofp %176 : vector<128x16xi8> to vector<128x16xf32>
    %cst_102 = arith.constant dense<0.000000e+00> : vector<128x128xf32>
    %178 = tpu.matmul %177, %1, %cst_102 {dimension_numbers = #tpu.dot_dimension_numbers<[1], [0], [0], [1], [0, 0, 1, 1], [], []>} : vector<128x16xf32>, vector<16x128xf32>, vector<128x128xf32> -> vector<128x128xf32>
    %179 = arith.mulf %178, %2 : vector<128x128xf32>
    %cst_103 = arith.constant dense<0.000000e+00> : vector<128xf32>
    %180 = vector.multi_reduction <add>, %177, %cst_103 [1] : vector<128x16xf32> to vector<128xf32>
    %181 = vector.shape_cast %180 : vector<128xf32> to vector<128x1xf32>
    %cst_104 = arith.constant dense<0.000000e+00> : vector<128xf32>
    %182 = vector.multi_reduction <add>, %179, %cst_104 [0] : vector<128x128xf32> to vector<128xf32>
    %183 = vector.shape_cast %182 : vector<128xf32> to vector<1x128xf32>
    %cst_105 = arith.constant 1.000000e+00 : f32
    %184 = vector.broadcast %cst_105 : f32 to vector<128x1xf32>
    %185 = arith.maximumf %181, %184 : vector<128x1xf32>
    %186 = math.rsqrt %185 : vector<128x1xf32>
    %cst_106 = arith.constant 1.000000e+00 : f32
    %187 = vector.broadcast %cst_106 : f32 to vector<1x128xf32>
    %188 = arith.maximumf %183, %187 : vector<1x128xf32>
    %189 = math.rsqrt %188 : vector<1x128xf32>
    %190 = vector.broadcast %189 : vector<1x128xf32> to vector<128x128xf32>
    %191 = arith.mulf %179, %190 : vector<128x128xf32>
    %c3_107 = arith.constant 3 : index
    %c0_108 = arith.constant 0 : index
    %c0_109 = arith.constant 0 : index
    %192 = vector.load %arg2[%c3_107, %c0_108, %c0_109] : memref<4x128x8xi8, #tpu.memory_space<vmem>>, vector<1x128x8xi8>
    %193 = vector.shape_cast %192 : vector<1x128x8xi8> to vector<128x8xi8>
    %194 = arith.sitofp %193 : vector<128x8xi8> to vector<128x8xf32>
    %cst_110 = arith.constant dense<0.000000e+00> : vector<128x32xf32>
    %195 = tpu.matmul %194, %3, %cst_110 {dimension_numbers = #tpu.dot_dimension_numbers<[1], [0], [0], [1], [0, 0, 1, 1], [], []>} : vector<128x8xf32>, vector<8x32xf32>, vector<128x32xf32> -> vector<128x32xf32>
    %c8_111 = arith.constant 8 : index
    %c0_112 = arith.constant 0 : index
    %196 = vector.load %arg3[%c8_111, %c0_112] : memref<200x32xf32, #tpu.memory_space<vmem>>, vector<32x32xf32>
    %c72_113 = arith.constant 72 : index
    %c0_114 = arith.constant 0 : index
    %197 = vector.load %arg3[%c72_113, %c0_114] : memref<200x32xf32, #tpu.memory_space<vmem>>, vector<1x32xf32>
    %cst_115 = arith.constant dense<0.000000e+00> : vector<128x32xf32>
    %198 = tpu.matmul %191, %195, %cst_115 {dimension_numbers = #tpu.dot_dimension_numbers<[1], [0], [0], [1], [0, 0, 1, 1], [], []>} : vector<128x128xf32>, vector<128x32xf32>, vector<128x32xf32> -> vector<128x32xf32>
    %199 = vector.broadcast %186 : vector<128x1xf32> to vector<128x32xf32>
    %200 = arith.mulf %199, %198 : vector<128x32xf32>
    %cst_116 = arith.constant dense<0.000000e+00> : vector<128x32xf32>
    %201 = tpu.matmul %200, %196, %cst_116 {dimension_numbers = #tpu.dot_dimension_numbers<[1], [0], [0], [1], [0, 0, 1, 1], [], []>} : vector<128x32xf32>, vector<32x32xf32>, vector<128x32xf32> -> vector<128x32xf32>
    %202 = vector.broadcast %197 : vector<1x32xf32> to vector<128x32xf32>
    %203 = arith.addf %201, %202 : vector<128x32xf32>
    %c40_117 = arith.constant 40 : index
    %c0_118 = arith.constant 0 : index
    %204 = vector.load %arg3[%c40_117, %c0_118] : memref<200x32xf32, #tpu.memory_space<vmem>>, vector<32x32xf32>
    %c73_119 = arith.constant 73 : index
    %c0_120 = arith.constant 0 : index
    %205 = vector.load %arg3[%c73_119, %c0_120] : memref<200x32xf32, #tpu.memory_space<vmem>>, vector<1x32xf32>
    %cst_121 = arith.constant dense<0.000000e+00> : vector<128x32xf32>
    %206 = tpu.matmul %191, %203, %cst_121 {dimension_numbers = #tpu.dot_dimension_numbers<[1], [0], [0], [1], [0, 0, 1, 1], [], []>} : vector<128x128xf32>, vector<128x32xf32>, vector<128x32xf32> -> vector<128x32xf32>
    %207 = vector.broadcast %186 : vector<128x1xf32> to vector<128x32xf32>
    %208 = arith.mulf %207, %206 : vector<128x32xf32>
    %cst_122 = arith.constant dense<0.000000e+00> : vector<128x32xf32>
    %209 = tpu.matmul %208, %204, %cst_122 {dimension_numbers = #tpu.dot_dimension_numbers<[1], [0], [0], [1], [0, 0, 1, 1], [], []>} : vector<128x32xf32>, vector<32x32xf32>, vector<128x32xf32> -> vector<128x32xf32>
    %210 = vector.broadcast %205 : vector<1x32xf32> to vector<128x32xf32>
    %211 = arith.addf %209, %210 : vector<128x32xf32>
    %cst_123 = arith.constant dense<0.000000e+00> : vector<8x32xf32>
    %212 = tpu.matmul %0, %211, %cst_123 {dimension_numbers = #tpu.dot_dimension_numbers<[1], [0], [0], [1], [0, 0, 1, 1], [], []>} : vector<8x128xf32>, vector<128x32xf32>, vector<8x32xf32> -> vector<8x32xf32>
    %cst_124 = arith.constant dense<0.000000e+00> : vector<8x32xf32>
    %213 = tpu.matmul %212, %4, %cst_124 {dimension_numbers = #tpu.dot_dimension_numbers<[1], [0], [0], [1], [0, 0, 1, 1], [], []>} : vector<8x32xf32>, vector<32x32xf32>, vector<8x32xf32> -> vector<8x32xf32>
    %214 = vector.broadcast %5 : vector<1x32xf32> to vector<8x32xf32>
    %215 = arith.addf %213, %214 : vector<8x32xf32>
    %cst_125 = arith.constant 0.000000e+00 : f32
    %216 = vector.broadcast %cst_125 : f32 to vector<8x32xf32>
    %217 = arith.maximumf %215, %216 : vector<8x32xf32>
    %cst_126 = arith.constant dense<0.000000e+00> : vector<8x32xf32>
    %218 = tpu.matmul %217, %6, %cst_126 {dimension_numbers = #tpu.dot_dimension_numbers<[1], [0], [0], [1], [0, 0, 1, 1], [], []>} : vector<8x32xf32>, vector<32x32xf32>, vector<8x32xf32> -> vector<8x32xf32>
    %219 = vector.broadcast %7 : vector<1x32xf32> to vector<8x32xf32>
    %220 = arith.addf %218, %219 : vector<8x32xf32>
    %cst_127 = arith.constant 0.000000e+00 : f32
    %221 = vector.broadcast %cst_127 : f32 to vector<8x32xf32>
    %222 = arith.maximumf %220, %221 : vector<8x32xf32>
    %cst_128 = arith.constant dense<0.000000e+00> : vector<8x32xf32>
    %223 = tpu.matmul %222, %8, %cst_128 {dimension_numbers = #tpu.dot_dimension_numbers<[1], [0], [0], [1], [0, 0, 1, 1], [], []>} : vector<8x32xf32>, vector<32x32xf32>, vector<8x32xf32> -> vector<8x32xf32>
    %224 = vector.broadcast %9 : vector<1x32xf32> to vector<8x32xf32>
    %225 = arith.addf %223, %224 : vector<8x32xf32>
    %226 = vector.extract_strided_slice %225 {offsets = [0, 0], sizes = [8, 1], strides = [1, 1]} : vector<8x32xf32> to vector<8x1xf32>
    %227 = vector.shape_cast %226 : vector<8x1xf32> to vector<8x1xf32>
    %228 = vector.broadcast %227 : vector<8x1xf32> to vector<8x128xf32>
    %c24_129 = arith.constant 24 : index
    %c0_130 = arith.constant 0 : index
    %229 = vector.load %arg5[%c24_129, %c0_130] : memref<32x128xf32, #tpu.memory_space<vmem>>, vector<8x128xf32>
    tpu.vector_store %arg5[%c24_129, %c0_130], %228 {strides = array<i32>} : memref<32x128xf32, #tpu.memory_space<vmem>>, vector<8x128xf32>,
    return
  }
  func.func @transform_0(%arg0: i32) -> (i32, i32, i32) {
    %c0_i32 = arith.constant 0 : i32
    %c0_i32_0 = arith.constant 0 : i32
    %c0_i32_1 = arith.constant 0 : i32
    return %arg0, %c0_i32, %c0_i32_0 : i32, i32, i32
  }
  func.func @transform_1(%arg0: i32) -> (i32, i32, i32) {
    %c0_i32 = arith.constant 0 : i32
    %c0_i32_0 = arith.constant 0 : i32
    %c0_i32_1 = arith.constant 0 : i32
    return %arg0, %c0_i32, %c0_i32_0 : i32, i32, i32
  }
  func.func @transform_2(%arg0: i32) -> (i32, i32) {
    %c0_i32 = arith.constant 0 : i32
    %c0_i32_0 = arith.constant 0 : i32
    %c0_i32_1 = arith.constant 0 : i32
    return %c0_i32, %c0_i32_0 : i32, i32
  }
  func.func @transform_3(%arg0: i32) -> (i32, i32) {
    %c0_i32 = arith.constant 0 : i32
    %c0_i32_0 = arith.constant 0 : i32
    %c0_i32_1 = arith.constant 0 : i32
    return %c0_i32, %c0_i32_0 : i32, i32
  }
  func.func @transform_4(%arg0: i32) -> (i32, i32) {
    %c0_i32 = arith.constant 0 : i32
    %c0_i32_0 = arith.constant 0 : i32
    return %arg0, %c0_i32 : i32, i32
  }
}

</mosaic_0001>

<llo_original>
// kernel: tpu_custom_call.1
$region0: #{tpu_custom_call.1}
  #allocation0 [shape = 'u32[]', space=smem, size = 0x4, offset = 0x4, fixed_abs, tag = 'smem constant byte address 0x4 - core index']
  #allocation1 [shape = 'u32[72,128]{1,0:T(1,128)}', space=vmem, size = 0x9000, scoped, tag = 'internal scratch']
  %s0 = inlined_call_operand.vmem [shape: s8[8,128,16], index: 0, kind: input, shape index: {}]
  %s1 = inlined_call_operand.vmem [shape: s8[8,128,8], index: 1, kind: input, shape index: {}]
  %s2 = inlined_call_operand.vmem [shape: f32[200,32], index: 2, kind: input, shape index: {}]
  %s3 = inlined_call_operand.vmem [shape: f32[152,128], index: 3, kind: input, shape index: {}]
  %s4 = inlined_call_operand.hbm [shape: f32[64,128], index: 4, kind: output, shape index: {}]
  %s5 = sld [smem:[#allocation0]]
  $region49: #{tpu_custom_call.1} parent=0
    _
  %s7 = ssub.s32 1, %s5
  %s8 = scalar_select 0, %s7, %s5
  $region1: #{tpu_custom_call.1} parent=0
    #allocation2 [shape = 'u8[32768]{0}', space=vmem, size = 0x8000, scoped, tag = 'output window, operand 0']
    #allocation3 [shape = 's32[2]{0}', space=sflag, size = 0x8, scoped, tag = 'scoped memory for tpu_custom_call.1']
    %9 = vsyncpa [#allocation3], 0
    %s10 = scalar_lea.sflag [#allocation3], 1
    %11 = vsyncpa %s10, 0
    loop: start=0, step=1, limit=4
    $region2: #{tpu_custom_call.1} parent=1 // loop_pre_header
      _
    $region3: #{tpu_custom_call.1} parent=1 // loop_header
      %s13 = sphi 0, %s17
      %p14 = scmp.ge.s32.totalorder %s13, 4
      %s23 = sphi 0, %s25
      %s26 = sphi 0, %s23
      %s27 = sphi 0, %s26
      %s43 = sphi 0, %s27
      %s49 = sphi 0, %s51
      %s52 = sphi 0, %s49
      %s53 = sphi 0, %s52
      %s69 = sphi 0, %s53
      %s73 = sphi 0, %s73
      %s75 = sphi 0, %s73
      %s76 = sphi 0, %s75
      %s90 = sphi 0, %s76
      %s94 = sphi 0, %s94
      %s96 = sphi 0, %s94
      %s97 = sphi 0, %s96
      %s111 = sphi 0, %s97
      %s117 = sphi 0, %s119
      %s120 = sphi 0, %s117
      %s121 = sphi 0, %s120
      %s137 = sphi 0, %s121
    $region4: #{tpu_custom_call.1} parent=1 // loop_header_branch
      %16 = sbr.rel (%p14) target = $region8
    $region5: #{tpu_custom_call.1} parent=1 // loop_body
      %s18 = ssub.s32 %s13, 1
      %s19 = ssub.s32 %s13, 2
      %s20 = sadd.s32 %s13, 1
      %s21 = ssub.s32 %s13, %s20
      %p22 = scmp.eq.s32.totalorder %s21, 0
      %s24 = sadd.s32 %s23, 1
      %s25 = scalar_select %p22, %s23, %s24
      %p28 = pneg %p22
      %p29 = scmp.eq.s32.totalorder %s13, 1
      %p30 = por %p28, %p29
      %p31 = scmp.ne.s32.totalorder %s23, %s26
      %p32 = scmp.eq.s32.totalorder %s13, 0
      %p33 = por %p31, %p32
      %p34 = scmp.ne.s32.totalorder %s23, %s26
      %p35 = scmp.eq.s32.totalorder %s18, 1
      %p36 = por %p34, %p35
      %p37 = scmp.ne.s32.totalorder %s26, %s27
      %p38 = scmp.eq.s32.totalorder %s18, 0
      %p39 = por %p37, %p38
      %p40 = scmp.ne.s32.totalorder %s26, %s27
      %p41 = scmp.eq.s32.totalorder %s19, 1
      %p42 = por %p40, %p41
      %p44 = scmp.ne.s32.totalorder %s27, %s43
      %p45 = scmp.eq.s32.totalorder %s19, 0
      %p46 = por %p44, %p45
      %s47 = ssub.s32 %s13, %s20
      %p48 = scmp.eq.s32.totalorder %s47, 0
      %s50 = sadd.s32 %s49, 1
      %s51 = scalar_select %p48, %s49, %s50
      %p54 = pneg %p48
      %p55 = scmp.eq.s32.totalorder %s13, 1
      %p56 = por %p54, %p55
      %p57 = scmp.ne.s32.totalorder %s49, %s52
      %p58 = scmp.eq.s32.totalorder %s13, 0
      %p59 = por %p57, %p58
      %p60 = scmp.ne.s32.totalorder %s49, %s52
      %p61 = scmp.eq.s32.totalorder %s18, 1
      %p62 = por %p60, %p61
      %p63 = scmp.ne.s32.totalorder %s52, %s53
      %p64 = scmp.eq.s32.totalorder %s18, 0
      %p65 = por %p63, %p64
      %p66 = scmp.ne.s32.totalorder %s52, %s53
      %p67 = scmp.eq.s32.totalorder %s19, 1
      %p68 = por %p66, %p67
      %p70 = scmp.ne.s32.totalorder %s53, %s69
      %p71 = scmp.eq.s32.totalorder %s19, 0
      %p72 = por %p70, %p71
      %s74 = sadd.s32 %s73, 1
      %p77 = scmp.eq.s32.totalorder %s13, 1
      %p78 = scmp.ne.s32.totalorder %s73, %s75
      %p79 = scmp.eq.s32.totalorder %s13, 0
      %p80 = por %p78, %p79
      %p81 = scmp.ne.s32.totalorder %s73, %s75
      %p82 = scmp.eq.s32.totalorder %s18, 1
      %p83 = por %p81, %p82
      %p84 = scmp.ne.s32.totalorder %s75, %s76
      %p85 = scmp.eq.s32.totalorder %s18, 0
      %p86 = por %p84, %p85
      %p87 = scmp.ne.s32.totalorder %s75, %s76
      %p88 = scmp.eq.s32.totalorder %s19, 1
      %p89 = por %p87, %p88
      %p91 = scmp.ne.s32.totalorder %s76, %s90
      %p92 = scmp.eq.s32.totalorder %s19, 0
      %p93 = por %p91, %p92
      %s95 = sadd.s32 %s94, 1
      %p98 = scmp.eq.s32.totalorder %s13, 1
      %p99 = scmp.ne.s32.totalorder %s94, %s96
      %p100 = scmp.eq.s32.totalorder %s13, 0
      %p101 = por %p99, %p100
      %p102 = scmp.ne.s32.totalorder %s94, %s96
      %p103 = scmp.eq.s32.totalorder %s18, 1
      %p104 = por %p102, %p103
      %p105 = scmp.ne.s32.totalorder %s96, %s97
      %p106 = scmp.eq.s32.totalorder %s18, 0
      %p107 = por %p105, %p106
      %p108 = scmp.ne.s32.totalorder %s96, %s97
      %p109 = scmp.eq.s32.totalorder %s19, 1
      %p110 = por %p108, %p109
      %p112 = scmp.ne.s32.totalorder %s97, %s111
      %p113 = scmp.eq.s32.totalorder %s19, 0
      %p114 = por %p112, %p113
      %s115 = ssub.s32 %s13, %s20
      %p116 = scmp.eq.s32.totalorder %s115, 0
      %s118 = sadd.s32 %s117, 1
      %s119 = scalar_select %p116, %s117, %s118
      %p122 = pneg %p116
      %p123 = scmp.eq.s32.totalorder %s13, 1
      %p124 = por %p122, %p123
      %p125 = scmp.ne.s32.totalorder %s117, %s120
      %p126 = scmp.eq.s32.totalorder %s13, 0
      %p127 = por %p125, %p126
      %p128 = scmp.ne.s32.totalorder %s117, %s120
      %p129 = scmp.eq.s32.totalorder %s18, 1
      %p130 = por %p128, %p129
      %p131 = scmp.ne.s32.totalorder %s120, %s121
      %p132 = scmp.eq.s32.totalorder %s18, 0
      %p133 = por %p131, %p132
      %p134 = scmp.ne.s32.totalorder %s120, %s121
      %p135 = scmp.eq.s32.totalorder %s19, 1
      %p136 = por %p134, %p135
      %p138 = scmp.ne.s32.totalorder %s121, %s137
      %p139 = scmp.eq.s32.totalorder %s19, 0
      %p140 = por %p138, %p139
      %p141 = scmp.le.s32.totalorder 1, %s13
      %p142 = scmp.lt.s32.totalorder %s13, 3
      %p143 = pnand %p141, %p142
      %p144 = pneg %p143
      // Predicated region
      $region9: #{tpu_custom_call.1} parent=5 // pred_check
        _
      $region10: #{tpu_custom_call.1} parent=5 // pred_check_branch
        %146 = sbr.rel (%p143) target = $region12
      $region11: #{tpu_custom_call.1} parent=5 // pred_region
        %s147 = ssub.s32 %s13, 1
        // Predicated region
        $region13: #{tpu_custom_call.1} parent=11 // pred_check
          %p148 = pneg %p86
        $region14: #{tpu_custom_call.1} parent=11 // pred_check_branch
          %150 = sbr.rel (%p148) target = $region16
        $region15: #{tpu_custom_call.1} parent=11 // pred_region
          _
        $region16: #{tpu_custom_call.1} parent=11 // pred_fallthru
          _
        // Predicated region
        $region17: #{tpu_custom_call.1} parent=11 // pred_check
          %p151 = pneg %p107
        $region18: #{tpu_custom_call.1} parent=11 // pred_check_branch
          %153 = sbr.rel (%p151) target = $region20
        $region19: #{tpu_custom_call.1} parent=11 // pred_region
          _
        $region20: #{tpu_custom_call.1} parent=11 // pred_fallthru
          _
      $region12: #{tpu_custom_call.1} parent=5 // pred_fallthru
        _
      %p154 = scmp.lt.s32.totalorder %s13, 2
      // Predicated region
      $region21: #{tpu_custom_call.1} parent=5 // pred_check
        %p155 = pneg %p154
      $region22: #{tpu_custom_call.1} parent=5 // pred_check_branch
        %157 = sbr.rel (%p155) target = $region24
      $region23: #{tpu_custom_call.1} parent=5 // pred_region
        // Predicated region
        $region25: #{tpu_custom_call.1} parent=23 // pred_check
          %p158 = pneg %p33
        $region26: #{tpu_custom_call.1} parent=23 // pred_check_branch
          %160 = sbr.rel (%p158) target = $region28
        $region27: #{tpu_custom_call.1} parent=23 // pred_region
          %s161 = smul.u32 4, %s13
          %p162 = scmp.lt.s32.totalorder %s161, 7
          %s163 = scalar_select %p162, %s161, 7
          %s164 = smul.addr %s163, 4
          %s165 = smul.addr %s164, 8
          %s166 = scalar_lea.vmem %s0, %s165
          %s167 = smul.u32 4, %s13
        $region28: #{tpu_custom_call.1} parent=23 // pred_fallthru
          _
        // Predicated region
        $region29: #{tpu_custom_call.1} parent=23 // pred_check
          %p168 = pneg %p59
        $region30: #{tpu_custom_call.1} parent=23 // pred_check_branch
          %170 = sbr.rel (%p168) target = $region32
        $region31: #{tpu_custom_call.1} parent=23 // pred_region
          %s171 = smul.u32 4, %s13
          %p172 = scmp.lt.s32.totalorder %s171, 7
          %s173 = scalar_select %p172, %s171, 7
          %s174 = smul.addr %s173, 16
          %s175 = smul.addr %s174, 2
          %s176 = scalar_lea.vmem %s1, %s175
          %s177 = smul.u32 4, %s13
        $region32: #{tpu_custom_call.1} parent=23 // pred_fallthru
          _
      $region24: #{tpu_custom_call.1} parent=5 // pred_fallthru
        _
      %p178 = scmp.le.s32.totalorder 1, %s13
      %p179 = scmp.lt.s32.totalorder %s13, 3
      %p180 = pnand %p178, %p179
      %p181 = pneg %p180
      // Predicated region
      $region33: #{tpu_custom_call.1} parent=5 // pred_check
        _
      $region34: #{tpu_custom_call.1} parent=5 // pred_check_branch
        %183 = sbr.rel (%p180) target = $region36
      $region35: #{tpu_custom_call.1} parent=5 // pred_region
        %s184 = ssub.s32 %s13, 1
        %s185 = smul.u32 4, %s18
        %p186 = scmp.lt.s32.totalorder %s185, 7
        %s187 = scalar_select %p186, %s185, 7
        %s188 = smul.addr %s187, 4
        %s189 = smul.addr %s188, 8
        %s190 = scalar_lea.vmem %s0, %s189
        %p191 = pneg %p39
        %p192 = pneg %p36
        %s193 = smul.u32 4, %s18
        %p194 = scmp.lt.s32.totalorder %s193, 7
        %s195 = scalar_select %p194, %s193, 7
        %s196 = smul.addr %s195, 16
        %s197 = smul.addr %s196, 2
        %s198 = scalar_lea.vmem %s1, %s197
        %p199 = pneg %p65
        %p200 = pneg %p62
        %p201 = pneg %p86
        %p202 = pneg %p83
        %p203 = pneg %p107
        %p204 = pneg %p104
        %p205 = pneg %p133
        %p206 = pneg %p130
        %s207 = sand.u32 %s120, 1
        %s208 = scalar_lea.sflag [#allocation3], %s207
        %s209 = sand.u32 %s120, 1
        %s210 = smul.addr %s209, 32
        %s211 = scalar_lea.vmem [#allocation2], %s210
        %s212 = smul.u32 4, %s18
        %p213 = scmp.lt.s32.totalorder %s212, 7
        %s214 = scalar_select %p213, %s212, 7
        %s215 = smul.addr %s214, 4
        %s216 = smul.addr %s215, 8
        %s217 = scalar_lea.vmem %s0, %s216
        %s218 = smul.u32 4, %s18
        %s219 = smul.u32 4, %s18
        %p220 = scmp.lt.s32.totalorder %s219, 7
        %s221 = scalar_select %p220, %s219, 7
        %s222 = smul.addr %s221, 16
        %s223 = smul.addr %s222, 2
        %s224 = scalar_lea.vmem %s1, %s223
        %s225 = smul.u32 4, %s18
        %s226 = smul.u32 4, %s18
        %v227 = vld [vmem:[%s3] sm:$0xff]
        %v228 = vld [vmem:[%s3 + $0x8] sm:$0xff]
        %v229 = vld [vmem:[%s3 + $0x10] sm:$0xff]
        %v230 = vld [vmem:[%s3 + $0x18] sm:$0xff]
        %v231 = vld [vmem:[%s3 + $0x20] sm:$0xff]
        %v232 = vld [vmem:[%s3 + $0x28] sm:$0xff]
        %v233 = vld [vmem:[%s3 + $0x30] sm:$0xff]
        %v234 = vld [vmem:[%s3 + $0x38] sm:$0xff]
        %v235 = vld [vmem:[%s3 + $0x40] sm:$0xff]
        %v236 = vld [vmem:[%s3 + $0x48] sm:$0xff]
        %v237 = vld [vmem:[%s3 + $0x50] sm:$0xff]
        %v238 = vld [vmem:[%s3 + $0x58] sm:$0xff]
        %v239 = vld [vmem:[%s3 + $0x60] sm:$0xff]
        %v240 = vld [vmem:[%s3 + $0x68] sm:$0xff]
        %v241 = vld [vmem:[%s3 + $0x70] sm:$0xff]
        %v242 = vld [vmem:[%s3 + $0x78] sm:$0xff]
        %v243 = vld [vmem:[%s3 + $0x80] sm:$0xff]
        %v244 = vld [vmem:[%s3 + $0x88] sm:$0xff]
        %v245 = vld [vmem:[%s3 + $0x90] sm:$0xff]
        %v246 = vld [vmem:[%s2] sm:$0xff]
        %v247 = vld [vmem:[%s2 + $0x50] sm:$0xff]
        %v248 = vld [vmem:[%s2 + $0x58] sm:$0xff]
        %v249 = vld [vmem:[%s2 + $0x60] sm:$0xff]
        %v250 = vld [vmem:[%s2 + $0x68] sm:$0xff]
        %v251 = vld [vmem:[%s2 + $0x70] sm:$0x1]
        %v252 = vld [vmem:[%s2 + $0x78] sm:$0xff]
        %v253 = vld [vmem:[%s2 + $0x80] sm:$0xff]
        %v254 = vld [vmem:[%s2 + $0x88] sm:$0xff]
        %v255 = vld [vmem:[%s2 + $0x90] sm:$0xff]
        %v256 = vld [vmem:[%s2 + $0x98] sm:$0x1]
        %v257 = vld [vmem:[%s2 + $0xa0] sm:$0xff]
        %v258 = vld [vmem:[%s2 + $0xa8] sm:$0xff]
        %v259 = vld [vmem:[%s2 + $0xb0] sm:$0xff]
        %v260 = vld [vmem:[%s2 + $0xb8] sm:$0xff]
        %v261 = vld [vmem:[%s2 + $0xc0] sm:$0x1]
        %v262 = vld [vmem:[%s217] sm:$0xff]
        %v263 = vld [vmem:[%s217 + $0x8] sm:$0xff]
        %v264 = vld [vmem:[%s217 + $0x10] sm:$0xff]
        %v265 = vld [vmem:[%s217 + $0x18] sm:$0xff]
        %v266 = vunpack.c.0.s8 %v262
        %v267 = vunpack.c.1.s8 %v262
        %v268 = vunpack.c.2.s8 %v262
        %v269 = vunpack.c.3.s8 %v262
        %v270 = vunpack.c.0.s8 %v263
        %v271 = vunpack.c.1.s8 %v263
        %v272 = vunpack.c.2.s8 %v263
        %v273 = vunpack.c.3.s8 %v263
        %v274 = vunpack.c.0.s8 %v264
        %v275 = vunpack.c.1.s8 %v264
        %v276 = vunpack.c.2.s8 %v264
        %v277 = vunpack.c.3.s8 %v264
        %v278 = vunpack.c.0.s8 %v265
        %v279 = vunpack.c.1.s8 %v265
        %v280 = vunpack.c.2.s8 %v265
        %v281 = vunpack.c.3.s8 %v265
        %v282 = vcvt.s32.f32 %v266
        %v283 = vcvt.s32.f32 %v267
        %v284 = vcvt.s32.f32 %v268
        %v285 = vcvt.s32.f32 %v269
        %v286 = vcvt.s32.f32 %v270
        %v287 = vcvt.s32.f32 %v271
        %v288 = vcvt.s32.f32 %v272
        %v289 = vcvt.s32.f32 %v273
        %v290 = vcvt.s32.f32 %v274
        %v291 = vcvt.s32.f32 %v275
        %v292 = vcvt.s32.f32 %v276
        %v293 = vcvt.s32.f32 %v277
        %v294 = vcvt.s32.f32 %v278
        %v295 = vcvt.s32.f32 %v279
        %v296 = vcvt.s32.f32 %v280
        %v297 = vcvt.s32.f32 %v281
        %vm298 = vcmask 130048
        %v300 = vsel %vm298, %v282, 0
        %v303 = vsel %vm298, %v283, 0
        %v306 = vsel %vm298, %v284, 0
        %v309 = vsel %vm298, %v285, 0
        %v312 = vsel %vm298, %v286, 0
        %v315 = vsel %vm298, %v287, 0
        %v318 = vsel %vm298, %v288, 0
        %v321 = vsel %vm298, %v289, 0
        %v324 = vsel %vm298, %v290, 0
        %v327 = vsel %vm298, %v291, 0
        %v330 = vsel %vm298, %v292, 0
        %v333 = vsel %vm298, %v293, 0
        %v336 = vsel %vm298, %v294, 0
        %v339 = vsel %vm298, %v295, 0
        %v342 = vsel %vm298, %v296, 0
        %v345 = vsel %vm298, %v297, 0
        %347 = vmatpush.msra.mxu0 0.0
        %348 = vmatpush.msra.mxu0 0.0
        %349 = vmatpush.msra.mxu0 0.0
        %350 = vmatpush.msra.mxu0 0.0
        %351 = vmatpush.msra.mxu0 0.0
        %352 = vmatpush.msra.mxu0 0.0
        %353 = vmatpush.msra.mxu0 0.0
        %354 = vmatpush.msra.mxu0 0.0
        %355 = vmatpush.msra.mxu0 0.0
        %356 = vmatpush.msra.mxu0 0.0
        %357 = vmatpush.msra.mxu0 0.0
        %358 = vmatpush.msra.mxu0 0.0
        %359 = vmatpush.msra.mxu0 0.0
        %360 = vmatpush.msra.mxu0 0.0
        %361 = vmatpush.msra.mxu0 %v229
        %362 = vmatpush.msra.mxu0 %v228
        %363 = vmatmul.f32.gmra.mxu0 %v300
        %v364 = vpop.f32.mrf.mxu0
        %v365 = vadd.f32 0.0, %v364
        %366 = vmatmul.f32.gmra.mxu0 %v303
        %v367 = vpop.f32.mrf.mxu0
        %v368 = vadd.f32 0.0, %v367
        %369 = vmatmul.f32.gmra.mxu0 %v306
        %v370 = vpop.f32.mrf.mxu0
        %v371 = vadd.f32 0.0, %v370
        %372 = vmatmul.f32.gmra.mxu0 %v309
        %v373 = vpop.f32.mrf.mxu0
        %v374 = vadd.f32 0.0, %v373
        %375 = vmatmul.f32.gmra.mxu0 %v312
        %v376 = vpop.f32.mrf.mxu0
        %v377 = vadd.f32 0.0, %v376
        %378 = vmatmul.f32.gmra.mxu0 %v315
        %v379 = vpop.f32.mrf.mxu0
        %v380 = vadd.f32 0.0, %v379
        %381 = vmatmul.f32.gmra.mxu0 %v318
        %v382 = vpop.f32.mrf.mxu0
        %v383 = vadd.f32 0.0, %v382
        %384 = vmatmul.f32.gmra.mxu0 %v321
        %v385 = vpop.f32.mrf.mxu0
        %v386 = vadd.f32 0.0, %v385
        %387 = vmatmul.f32.gmra.mxu0 %v324
        %v388 = vpop.f32.mrf.mxu0
        %v389 = vadd.f32 0.0, %v388
        %390 = vmatmul.f32.gmra.mxu0 %v327
        %v391 = vpop.f32.mrf.mxu0
        %v392 = vadd.f32 0.0, %v391
        %393 = vmatmul.f32.gmra.mxu0 %v330
        %v394 = vpop.f32.mrf.mxu0
        %v395 = vadd.f32 0.0, %v394
        %396 = vmatmul.f32.gmra.mxu0 %v333
        %v397 = vpop.f32.mrf.mxu0
        %v398 = vadd.f32 0.0, %v397
        %399 = vmatmul.f32.gmra.mxu0 %v336
        %v400 = vpop.f32.mrf.mxu0
        %v401 = vadd.f32 0.0, %v400
        %402 = vmatmul.f32.gmra.mxu0 %v339
        %v403 = vpop.f32.mrf.mxu0
        %v404 = vadd.f32 0.0, %v403
        %405 = vmatmul.f32.gmra.mxu0 %v342
        %v406 = vpop.f32.mrf.mxu0
        %v407 = vadd.f32 0.0, %v406
        %408 = vmatmul.f32.gmra.mxu0 %v345
        %v409 = vpop.f32.mrf.mxu0
        %v410 = vadd.f32 0.0, %v409
        %411 = vdwg.mxu0
        %v412 = vmul.f32 %v365, %v230
        %v413 = vmul.f32 %v368, %v231
        %v414 = vmul.f32 %v371, %v232
        %v415 = vmul.f32 %v374, %v233
        %v416 = vmul.f32 %v377, %v234
        %v417 = vmul.f32 %v380, %v235
        %v418 = vmul.f32 %v383, %v236
        %v419 = vmul.f32 %v386, %v237
        %v420 = vmul.f32 %v389, %v238
        %v421 = vmul.f32 %v392, %v239
        %v422 = vmul.f32 %v395, %v240
        %v423 = vmul.f32 %v398, %v241
        %v424 = vmul.f32 %v401, %v242
        %v425 = vmul.f32 %v404, %v243
        %v426 = vmul.f32 %v407, %v244
        %v427 = vmul.f32 %v410, %v245
        %v428 = vsel %vm298, %v282, 0.0
        %429 = vadd.xlane.f32.xlu0 %v428
        %v430 = vpop.xlane.xlu0 %429
        %v431 = vsel %vm298, %v283, 0.0
        %432 = vadd.xlane.f32.xlu0 %v431
        %v433 = vpop.xlane.xlu0 %432
        %v434 = vsel %vm298, %v284, 0.0
        %435 = vadd.xlane.f32.xlu0 %v434
        %v436 = vpop.xlane.xlu0 %435
        %v437 = vsel %vm298, %v285, 0.0
        %438 = vadd.xlane.f32.xlu0 %v437
        %v439 = vpop.xlane.xlu0 %438
        %v440 = vsel %vm298, %v286, 0.0
        %441 = vadd.xlane.f32.xlu0 %v440
        %v442 = vpop.xlane.xlu0 %441
        %v443 = vsel %vm298, %v287, 0.0
        %444 = vadd.xlane.f32.xlu0 %v443
        %v445 = vpop.xlane.xlu0 %444
        %v446 = vsel %vm298, %v288, 0.0
        %447 = vadd.xlane.f32.xlu0 %v446
        %v448 = vpop.xlane.xlu0 %447
        %v449 = vsel %vm298, %v289, 0.0
        %450 = vadd.xlane.f32.xlu0 %v449
        %v451 = vpop.xlane.xlu0 %450
        %v452 = vsel %vm298, %v290, 0.0
        %453 = vadd.xlane.f32.xlu0 %v452
        %v454 = vpop.xlane.xlu0 %453
        %v455 = vsel %vm298, %v291, 0.0
        %456 = vadd.xlane.f32.xlu0 %v455
        %v457 = vpop.xlane.xlu0 %456
        %v458 = vsel %vm298, %v292, 0.0
        %459 = vadd.xlane.f32.xlu0 %v458
        %v460 = vpop.xlane.xlu0 %459
        %v461 = vsel %vm298, %v293, 0.0
        %462 = vadd.xlane.f32.xlu0 %v461
        %v463 = vpop.xlane.xlu0 %462
        %v464 = vsel %vm298, %v294, 0.0
        %465 = vadd.xlane.f32.xlu0 %v464
        %v466 = vpop.xlane.xlu0 %465
        %v467 = vsel %vm298, %v295, 0.0
        %468 = vadd.xlane.f32.xlu0 %v467
        %v469 = vpop.xlane.xlu0 %468
        %v470 = vsel %vm298, %v296, 0.0
        %471 = vadd.xlane.f32.xlu0 %v470
        %v472 = vpop.xlane.xlu0 %471
        %v473 = vsel %vm298, %v297, 0.0
        %474 = vadd.xlane.f32.xlu0 %v473
        %v475 = vpop.xlane.xlu0 %474
        %v476 = vadd.f32 %v412, %v413
        %v477 = vadd.f32 %v476, %v414
        %v478 = vadd.f32 %v477, %v415
        %v479 = vadd.f32 %v478, %v416
        %v480 = vadd.f32 %v479, %v417
        %v481 = vadd.f32 %v480, %v418
        %v482 = vadd.f32 %v481, %v419
        %v483 = vadd.f32 %v482, %v420
        %v484 = vadd.f32 %v483, %v421
        %v485 = vadd.f32 %v484, %v422
        %v486 = vadd.f32 %v485, %v423
        %v487 = vadd.f32 %v486, %v424
        %v488 = vadd.f32 %v487, %v425
        %v489 = vadd.f32 %v488, %v426
        %v490 = vadd.f32 %v489, %v427
        %v491 = vrot.slane %v490, 4
        %v492 = vadd.f32 %v490, %v491
        %v493 = vrot.slane %v492, 2
        %v494 = vadd.f32 %v492, %v493
        %v495 = vrot.slane %v494, 1
        %v496 = vadd.f32 %v494, %v495
        %v497 = vmax.f32 %v430, 1.0
        %v498 = vmax.f32 %v433, 1.0
        %v499 = vmax.f32 %v436, 1.0
        %v500 = vmax.f32 %v439, 1.0
        %v501 = vmax.f32 %v442, 1.0
        %v502 = vmax.f32 %v445, 1.0
        %v503 = vmax.f32 %v448, 1.0
        %v504 = vmax.f32 %v451, 1.0
        %v505 = vmax.f32 %v454, 1.0
        %v506 = vmax.f32 %v457, 1.0
        %v507 = vmax.f32 %v460, 1.0
        %v508 = vmax.f32 %v463, 1.0
        %v509 = vmax.f32 %v466, 1.0
        %v510 = vmax.f32 %v469, 1.0
        %v511 = vmax.f32 %v472, 1.0
        %v512 = vmax.f32 %v475, 1.0
        %v513 = vrsqrt.pop %v497
        %v514 = vmul.f32 %v513, %v497
        %v515 = vmul.f32 %v514, %v513
        %v516 = vmul.f32 0.5, %v515
        %v517 = vsub.f32 1.5, %v516
        %v518 = vmul.f32 %v513, %v517
        %vm519 = vweird.f32 %v497
        %vm520 = vweird.f32 %v513
        %vm521 = vmor %vm519, %vm520
        %v522 = vsel %vm521, %v513, %v518
        %v523 = vrsqrt.pop %v498
        %v524 = vmul.f32 %v523, %v498
        %v525 = vmul.f32 %v524, %v523
        %v526 = vmul.f32 0.5, %v525
        %v527 = vsub.f32 1.5, %v526
        %v528 = vmul.f32 %v523, %v527
        %vm529 = vweird.f32 %v498
        %vm530 = vweird.f32 %v523
        %vm531 = vmor %vm529, %vm530
        %v532 = vsel %vm531, %v523, %v528
        %v533 = vrsqrt.pop %v499
        %v534 = vmul.f32 %v533, %v499
        %v535 = vmul.f32 %v534, %v533
        %v536 = vmul.f32 0.5, %v535
        %v537 = vsub.f32 1.5, %v536
        %v538 = vmul.f32 %v533, %v537
        %vm539 = vweird.f32 %v499
        %vm540 = vweird.f32 %v533
        %vm541 = vmor %vm539, %vm540
        %v542 = vsel %vm541, %v533, %v538
        %v543 = vrsqrt.pop %v500
        %v544 = vmul.f32 %v543, %v500
        %v545 = vmul.f32 %v544, %v543
        %v546 = vmul.f32 0.5, %v545
        %v547 = vsub.f32 1.5, %v546
        %v548 = vmul.f32 %v543, %v547
        %vm549 = vweird.f32 %v500
        %vm550 = vweird.f32 %v543
        %vm551 = vmor %vm549, %vm550
        %v552 = vsel %vm551, %v543, %v548
        %v553 = vrsqrt.pop %v501
        %v554 = vmul.f32 %v553, %v501
        %v555 = vmul.f32 %v554, %v553
        %v556 = vmul.f32 0.5, %v555
        %v557 = vsub.f32 1.5, %v556
        %v558 = vmul.f32 %v553, %v557
        %vm559 = vweird.f32 %v501
        %vm560 = vweird.f32 %v553
        %vm561 = vmor %vm559, %vm560
        %v562 = vsel %vm561, %v553, %v558
        %v563 = vrsqrt.pop %v502
        %v564 = vmul.f32 %v563, %v502
        %v565 = vmul.f32 %v564, %v563
        %v566 = vmul.f32 0.5, %v565
        %v567 = vsub.f32 1.5, %v566
        %v568 = vmul.f32 %v563, %v567
        %vm569 = vweird.f32 %v502
        %vm570 = vweird.f32 %v563
        %vm571 = vmor %vm569, %vm570
        %v572 = vsel %vm571, %v563, %v568
        %v573 = vrsqrt.pop %v503
        %v574 = vmul.f32 %v573, %v503
        %v575 = vmul.f32 %v574, %v573
        %v576 = vmul.f32 0.5, %v575
        %v577 = vsub.f32 1.5, %v576
        %v578 = vmul.f32 %v573, %v577
        %vm579 = vweird.f32 %v503
        %vm580 = vweird.f32 %v573
        %vm581 = vmor %vm579, %vm580
        %v582 = vsel %vm581, %v573, %v578
        %v583 = vrsqrt.pop %v504
        %v584 = vmul.f32 %v583, %v504
        %v585 = vmul.f32 %v584, %v583
        %v586 = vmul.f32 0.5, %v585
        %v587 = vsub.f32 1.5, %v586
        %v588 = vmul.f32 %v583, %v587
        %vm589 = vweird.f32 %v504
        %vm590 = vweird.f32 %v583
        %vm591 = vmor %vm589, %vm590
        %v592 = vsel %vm591, %v583, %v588
        %v593 = vrsqrt.pop %v505
        %v594 = vmul.f32 %v593, %v505
        %v595 = vmul.f32 %v594, %v593
        %v596 = vmul.f32 0.5, %v595
        %v597 = vsub.f32 1.5, %v596
        %v598 = vmul.f32 %v593, %v597
        %vm599 = vweird.f32 %v505
        %vm600 = vweird.f32 %v593
        %vm601 = vmor %vm599, %vm600
        %v602 = vsel %vm601, %v593, %v598
        %v603 = vrsqrt.pop %v506
        %v604 = vmul.f32 %v603, %v506
        %v605 = vmul.f32 %v604, %v603
        %v606 = vmul.f32 0.5, %v605
        %v607 = vsub.f32 1.5, %v606
        %v608 = vmul.f32 %v603, %v607
        %vm609 = vweird.f32 %v506
        %vm610 = vweird.f32 %v603
        %vm611 = vmor %vm609, %vm610
        %v612 = vsel %vm611, %v603, %v608
        %v613 = vrsqrt.pop %v507
        %v614 = vmul.f32 %v613, %v507
        %v615 = vmul.f32 %v614, %v613
        %v616 = vmul.f32 0.5, %v615
        %v617 = vsub.f32 1.5, %v616
        %v618 = vmul.f32 %v613, %v617
        %vm619 = vweird.f32 %v507
        %vm620 = vweird.f32 %v613
        %vm621 = vmor %vm619, %vm620
        %v622 = vsel %vm621, %v613, %v618
        %v623 = vrsqrt.pop %v508
        %v624 = vmul.f32 %v623, %v508
        %v625 = vmul.f32 %v624, %v623
        %v626 = vmul.f32 0.5, %v625
        %v627 = vsub.f32 1.5, %v626
        %v628 = vmul.f32 %v623, %v627
        %vm629 = vweird.f32 %v508
        %vm630 = vweird.f32 %v623
        %vm631 = vmor %vm629, %vm630
        %v632 = vsel %vm631, %v623, %v628
        %v633 = vrsqrt.pop %v509
        %v634 = vmul.f32 %v633, %v509
        %v635 = vmul.f32 %v634, %v633
        %v636 = vmul.f32 0.5, %v635
        %v637 = vsub.f32 1.5, %v636
        %v638 = vmul.f32 %v633, %v637
        %vm639 = vweird.f32 %v509
        %vm640 = vweird.f32 %v633
        %vm641 = vmor %vm639, %vm640
        %v642 = vsel %vm641, %v633, %v638
        %v643 = vrsqrt.pop %v510
        %v644 = vmul.f32 %v643, %v510
        %v645 = vmul.f32 %v644, %v643
        %v646 = vmul.f32 0.5, %v645
        %v647 = vsub.f32 1.5, %v646
        %v648 = vmul.f32 %v643, %v647
        %vm649 = vweird.f32 %v510
        %vm650 = vweird.f32 %v643
        %vm651 = vmor %vm649, %vm650
        %v652 = vsel %vm651, %v643, %v648
        %v653 = vrsqrt.pop %v511
        %v654 = vmul.f32 %v653, %v511
        %v655 = vmul.f32 %v654, %v653
        %v656 = vmul.f32 0.5, %v655
        %v657 = vsub.f32 1.5, %v656
        %v658 = vmul.f32 %v653, %v657
        %vm659 = vweird.f32 %v511
        %vm660 = vweird.f32 %v653
        %vm661 = vmor %vm659, %vm660
        %v662 = vsel %vm661, %v653, %v658
        %v663 = vrsqrt.pop %v512
        %v664 = vmul.f32 %v663, %v512
        %v665 = vmul.f32 %v664, %v663
        %v666 = vmul.f32 0.5, %v665
        %v667 = vsub.f32 1.5, %v666
        %v668 = vmul.f32 %v663, %v667
        %vm669 = vweird.f32 %v512
        %vm670 = vweird.f32 %v663
        %vm671 = vmor %vm669, %vm670
        %v672 = vsel %vm671, %v663, %v668
        %v673 = vmax.f32 %v496, 1.0
        %v674 = vrsqrt.pop %v673
        %v675 = vmul.f32 %v674, %v673
        %v676 = vmul.f32 %v675, %v674
        %v677 = vmul.f32 0.5, %v676
        %v678 = vsub.f32 1.5, %v677
        %v679 = vmul.f32 %v674, %v678
        %vm680 = vweird.f32 %v673
        %vm681 = vweird.f32 %v674
        %vm682 = vmor %vm680, %vm681
        %v683 = vsel %vm682, %v674, %v679
        %v684 = vmul.f32 %v412, %v683
        %v685 = vmul.f32 %v413, %v683
        %v686 = vmul.f32 %v414, %v683
        %v687 = vmul.f32 %v415, %v683
        %v688 = vmul.f32 %v416, %v683
        %v689 = vmul.f32 %v417, %v683
        %v690 = vmul.f32 %v418, %v683
        %v691 = vmul.f32 %v419, %v683
        %v692 = vmul.f32 %v420, %v683
        %v693 = vmul.f32 %v421, %v683
        %v694 = vmul.f32 %v422, %v683
        %v695 = vmul.f32 %v423, %v683
        %v696 = vmul.f32 %v424, %v683
        %v697 = vmul.f32 %v425, %v683
        %v698 = vmul.f32 %v426, %v683
        %v699 = vmul.f32 %v427, %v683
        %v700 = vld [vmem:[%s224] sm:$0x3]
        %v701 = vld [vmem:[%s224 + $0x2] sm:$0x3]
        %v702 = vld [vmem:[%s224 + $0x4] sm:$0x3]
        %v703 = vld [vmem:[%s224 + $0x6] sm:$0x3]
        %v704 = vld [vmem:[%s224 + $0x8] sm:$0x3]
        %v705 = vld [vmem:[%s224 + $0xa] sm:$0x3]
        %v706 = vld [vmem:[%s224 + $0xc] sm:$0x3]
        %v707 = vld [vmem:[%s224 + $0xe] sm:$0x3]
        %v708 = vld [vmem:[%s224 + $0x10] sm:$0x3]
        %v709 = vld [vmem:[%s224 + $0x12] sm:$0x3]
        %v710 = vld [vmem:[%s224 + $0x14] sm:$0x3]
        %v711 = vld [vmem:[%s224 + $0x16] sm:$0x3]
        %v712 = vld [vmem:[%s224 + $0x18] sm:$0x3]
        %v713 = vld [vmem:[%s224 + $0x1a] sm:$0x3]
        %v714 = vld [vmem:[%s224 + $0x1c] sm:$0x3]
        %v715 = vld [vmem:[%s224 + $0x1e] sm:$0x3]
        %v716 = vunpack.c.0.s8 %v700
        %v717 = vunpack.c.0.s8 %v701
        %v718 = vunpack.c.0.s8 %v702
        %v719 = vunpack.c.0.s8 %v703
        %v720 = vunpack.c.0.s8 %v704
        %v721 = vunpack.c.0.s8 %v705
        %v722 = vunpack.c.0.s8 %v706
        %v723 = vunpack.c.0.s8 %v707
        %v724 = vunpack.c.0.s8 %v708
        %v725 = vunpack.c.0.s8 %v709
        %v726 = vunpack.c.0.s8 %v710
        %v727 = vunpack.c.0.s8 %v711
        %v728 = vunpack.c.0.s8 %v712
        %v729 = vunpack.c.0.s8 %v713
        %v730 = vunpack.c.0.s8 %v714
        %v731 = vunpack.c.0.s8 %v715
        %v732 = vcvt.s32.f32 %v716
        %v733 = vcvt.s32.f32 %v717
        %v734 = vcvt.s32.f32 %v718
        %v735 = vcvt.s32.f32 %v719
        %v736 = vcvt.s32.f32 %v720
        %v737 = vcvt.s32.f32 %v721
        %v738 = vcvt.s32.f32 %v722
        %v739 = vcvt.s32.f32 %v723
        %v740 = vcvt.s32.f32 %v724
        %v741 = vcvt.s32.f32 %v725
        %v742 = vcvt.s32.f32 %v726
        %v743 = vcvt.s32.f32 %v727
        %v744 = vcvt.s32.f32 %v728
        %v745 = vcvt.s32.f32 %v729
        %v746 = vcvt.s32.f32 %v730
        %v747 = vcvt.s32.f32 %v731
        %vm748 = vcmask 64512
        %v750 = vsel %vm748, %v732, 0
        %v753 = vsel %vm748, %v733, 0
        %v756 = vsel %vm748, %v734, 0
        %v759 = vsel %vm748, %v735, 0
        %v762 = vsel %vm748, %v736, 0
        %v765 = vsel %vm748, %v737, 0
        %v768 = vsel %vm748, %v738, 0
        %v771 = vsel %vm748, %v739, 0
        %v774 = vsel %vm748, %v740, 0
        %v777 = vsel %vm748, %v741, 0
        %v780 = vsel %vm748, %v742, 0
        %v783 = vsel %vm748, %v743, 0
        %v786 = vsel %vm748, %v744, 0
        %v789 = vsel %vm748, %v745, 0
        %v792 = vsel %vm748, %v746, 0
        %v795 = vsel %vm748, %v747, 0
        %797 = vmatpush.msra.mxu0 0.0
        %798 = vmatpush.msra.mxu0 0.0
        %799 = vmatpush.msra.mxu0 0.0
        %800 = vmatpush.msra.mxu0 0.0
        %801 = vmatpush.msra.mxu0 0.0
        %802 = vmatpush.msra.mxu0 0.0
        %803 = vmatpush.msra.mxu0 0.0
        %804 = vmatpush.msra.mxu0 0.0
        %805 = vmatpush.msra.mxu0 0.0
        %806 = vmatpush.msra.mxu0 0.0
        %807 = vmatpush.msra.mxu0 0.0
        %808 = vmatpush.msra.mxu0 0.0
        %809 = vmatpush.msra.mxu0 0.0
        %810 = vmatpush.msra.mxu0 0.0
        %811 = vmatpush.msra.mxu0 0.0
        %812 = vmatpush.msra.mxu0 %v246
        %813 = vmatmul.f32.gmra.mxu0 %v750
        %v814 = vpop.f32.mrf.mxu0
        %v815 = vadd.f32 0.0, %v814
        %816 = vmatmul.f32.gmra.mxu0 %v753
        %v817 = vpop.f32.mrf.mxu0
        %v818 = vadd.f32 0.0, %v817
        %819 = vmatmul.f32.gmra.mxu0 %v756
        %v820 = vpop.f32.mrf.mxu0
        %v821 = vadd.f32 0.0, %v820
        %822 = vmatmul.f32.gmra.mxu0 %v759
        %v823 = vpop.f32.mrf.mxu0
        %v824 = vadd.f32 0.0, %v823
        %825 = vmatmul.f32.gmra.mxu0 %v762
        %v826 = vpop.f32.mrf.mxu0
        %v827 = vadd.f32 0.0, %v826
        %828 = vmatmul.f32.gmra.mxu0 %v765
        %v829 = vpop.f32.mrf.mxu0
        %v830 = vadd.f32 0.0, %v829
        %831 = vmatmul.f32.gmra.mxu0 %v768
        %v832 = vpop.f32.mrf.mxu0
        %v833 = vadd.f32 0.0, %v832
        %834 = vmatmul.f32.gmra.mxu0 %v771
        %v835 = vpop.f32.mrf.mxu0
        %v836 = vadd.f32 0.0, %v835
        %837 = vmatmul.f32.gmra.mxu0 %v774
        %v838 = vpop.f32.mrf.mxu0
        %v839 = vadd.f32 0.0, %v838
        %840 = vmatmul.f32.gmra.mxu0 %v777
        %v841 = vpop.f32.mrf.mxu0
        %v842 = vadd.f32 0.0, %v841
        %843 = vmatmul.f32.gmra.mxu0 %v780
        %v844 = vpop.f32.mrf.mxu0
        %v845 = vadd.f32 0.0, %v844
        %846 = vmatmul.f32.gmra.mxu0 %v783
        %v847 = vpop.f32.mrf.mxu0
        %v848 = vadd.f32 0.0, %v847
        %849 = vmatmul.f32.gmra.mxu0 %v786
        %v850 = vpop.f32.mrf.mxu0
        %v851 = vadd.f32 0.0, %v850
        %852 = vmatmul.f32.gmra.mxu0 %v789
        %v853 = vpop.f32.mrf.mxu0
        %v854 = vadd.f32 0.0, %v853
        %855 = vmatmul.f32.gmra.mxu0 %v792
        %v856 = vpop.f32.mrf.mxu0
        %v857 = vadd.f32 0.0, %v856
        %858 = vmatmul.f32.gmra.mxu0 %v795
        %v859 = vpop.f32.mrf.mxu0
        %v860 = vadd.f32 0.0, %v859
        %861 = vdwg.mxu0
        %v862 = vld [vmem:[%s2 + $0x8] sm:$0xff]
        %v863 = vld [vmem:[%s2 + $0x10] sm:$0xff]
        %v864 = vld [vmem:[%s2 + $0x18] sm:$0xff]
        %v865 = vld [vmem:[%s2 + $0x20] sm:$0xff]
        %v866 = vld [vmem:[%s2 + $0x48] sm:$0x1]
        %867 = vmatpush.msra.mxu0 %v860
        %868 = vmatpush.msra.mxu0 %v857
        %869 = vmatpush.msra.mxu0 %v854
        %870 = vmatpush.msra.mxu0 %v851
        %871 = vmatpush.msra.mxu0 %v848
        %872 = vmatpush.msra.mxu0 %v845
        %873 = vmatpush.msra.mxu0 %v842
        %874 = vmatpush.msra.mxu0 %v839
        %875 = vmatpush.msra.mxu0 %v836
        %876 = vmatpush.msra.mxu0 %v833
        %877 = vmatpush.msra.mxu0 %v830
        %878 = vmatpush.msra.mxu0 %v827
        %879 = vmatpush.msra.mxu0 %v824
        %880 = vmatpush.msra.mxu0 %v821
        %881 = vmatpush.msra.mxu0 %v818
        %882 = vmatpush.msra.mxu0 %v815
        %883 = vmatmul.f32.gmra.mxu0 %v684
        %v884 = vpop.f32.mrf.mxu0
        %v885 = vadd.f32 0.0, %v884
        %886 = vmatmul.f32.gmra.mxu0 %v685
        %v887 = vpop.f32.mrf.mxu0
        %v888 = vadd.f32 0.0, %v887
        %889 = vmatmul.f32.gmra.mxu0 %v686
        %v890 = vpop.f32.mrf.mxu0
        %v891 = vadd.f32 0.0, %v890
        %892 = vmatmul.f32.gmra.mxu0 %v687
        %v893 = vpop.f32.mrf.mxu0
        %v894 = vadd.f32 0.0, %v893
        %895 = vmatmul.f32.gmra.mxu0 %v688
        %v896 = vpop.f32.mrf.mxu0
        %v897 = vadd.f32 0.0, %v896
        %898 = vmatmul.f32.gmra.mxu0 %v689
        %v899 = vpop.f32.mrf.mxu0
        %v900 = vadd.f32 0.0, %v899
        %901 = vmatmul.f32.gmra.mxu0 %v690
        %v902 = vpop.f32.mrf.mxu0
        %v903 = vadd.f32 0.0, %v902
        %904 = vmatmul.f32.gmra.mxu0 %v691
        %v905 = vpop.f32.mrf.mxu0
        %v906 = vadd.f32 0.0, %v905
        %907 = vmatmul.f32.gmra.mxu0 %v692
        %v908 = vpop.f32.mrf.mxu0
        %v909 = vadd.f32 0.0, %v908
        %910 = vmatmul.f32.gmra.mxu0 %v693
        %v911 = vpop.f32.mrf.mxu0
        %v912 = vadd.f32 0.0, %v911
        %913 = vmatmul.f32.gmra.mxu0 %v694
        %v914 = vpop.f32.mrf.mxu0
        %v915 = vadd.f32 0.0, %v914
        %916 = vmatmul.f32.gmra.mxu0 %v695
        %v917 = vpop.f32.mrf.mxu0
        %v918 = vadd.f32 0.0, %v917
        %919 = vmatmul.f32.gmra.mxu0 %v696
        %v920 = vpop.f32.mrf.mxu0
        %v921 = vadd.f32 0.0, %v920
        %922 = vmatmul.f32.gmra.mxu0 %v697
        %v923 = vpop.f32.mrf.mxu0
        %v924 = vadd.f32 0.0, %v923
        %925 = vmatmul.f32.gmra.mxu0 %v698
        %v926 = vpop.f32.mrf.mxu0
        %v927 = vadd.f32 0.0, %v926
        %928 = vmatmul.f32.gmra.mxu0 %v699
        %v929 = vpop.f32.mrf.mxu0
        %v930 = vadd.f32 0.0, %v929
        %931 = vdwg.mxu0
        %v932 = vmul.f32 %v522, %v885
        %v933 = vmul.f32 %v532, %v888
        %v934 = vmul.f32 %v542, %v891
        %v935 = vmul.f32 %v552, %v894
        %v936 = vmul.f32 %v562, %v897
        %v937 = vmul.f32 %v572, %v900
        %v938 = vmul.f32 %v582, %v903
        %v939 = vmul.f32 %v592, %v906
        %v940 = vmul.f32 %v602, %v909
        %v941 = vmul.f32 %v612, %v912
        %v942 = vmul.f32 %v622, %v915
        %v943 = vmul.f32 %v632, %v918
        %v944 = vmul.f32 %v642, %v921
        %v945 = vmul.f32 %v652, %v924
        %v946 = vmul.f32 %v662, %v927
        %v947 = vmul.f32 %v672, %v930
        %v948 = vperm.slane %v866, 0
        %vm949 = vcmask 261120
        %v951 = vsel %vm949, %v932, 0
        %v954 = vsel %vm949, %v933, 0
        %v957 = vsel %vm949, %v934, 0
        %v960 = vsel %vm949, %v935, 0
        %v963 = vsel %vm949, %v936, 0
        %v966 = vsel %vm949, %v937, 0
        %v969 = vsel %vm949, %v938, 0
        %v972 = vsel %vm949, %v939, 0
        %v975 = vsel %vm949, %v940, 0
        %v978 = vsel %vm949, %v941, 0
        %v981 = vsel %vm949, %v942, 0
        %v984 = vsel %vm949, %v943, 0
        %v987 = vsel %vm949, %v944, 0
        %v990 = vsel %vm949, %v945, 0
        %v993 = vsel %vm949, %v946, 0
        %v996 = vsel %vm949, %v947, 0
        %998 = vmatpush.msra.mxu0 0.0
        %999 = vmatpush.msra.mxu0 0.0
        %1000 = vmatpush.msra.mxu0 0.0
        %1001 = vmatpush.msra.mxu0 0.0
        %1002 = vmatpush.msra.mxu0 0.0
        %1003 = vmatpush.msra.mxu0 0.0
        %1004 = vmatpush.msra.mxu0 0.0
        %1005 = vmatpush.msra.mxu0 0.0
        %1006 = vmatpush.msra.mxu0 0.0
        %1007 = vmatpush.msra.mxu0 0.0
        %1008 = vmatpush.msra.mxu0 0.0
        %1009 = vmatpush.msra.mxu0 0.0
        %1010 = vmatpush.msra.mxu0 %v865
        %1011 = vmatpush.msra.mxu0 %v864
        %1012 = vmatpush.msra.mxu0 %v863
        %1013 = vmatpush.msra.mxu0 %v862
        %1014 = vmatmul.f32.gmra.mxu0 %v951
        %v1015 = vpop.f32.mrf.mxu0
        %v1016 = vadd.f32 %v948, %v1015
        %1017 = vmatmul.f32.gmra.mxu0 %v954
        %v1018 = vpop.f32.mrf.mxu0
        %v1019 = vadd.f32 %v948, %v1018
        %1020 = vmatmul.f32.gmra.mxu0 %v957
        %v1021 = vpop.f32.mrf.mxu0
        %v1022 = vadd.f32 %v948, %v1021
        %1023 = vmatmul.f32.gmra.mxu0 %v960
        %v1024 = vpop.f32.mrf.mxu0
        %v1025 = vadd.f32 %v948, %v1024
        %1026 = vmatmul.f32.gmra.mxu0 %v963
        %v1027 = vpop.f32.mrf.mxu0
        %v1028 = vadd.f32 %v948, %v1027
        %1029 = vmatmul.f32.gmra.mxu0 %v966
        %v1030 = vpop.f32.mrf.mxu0
        %v1031 = vadd.f32 %v948, %v1030
        %1032 = vmatmul.f32.gmra.mxu0 %v969
        %v1033 = vpop.f32.mrf.mxu0
        %v1034 = vadd.f32 %v948, %v1033
        %1035 = vmatmul.f32.gmra.mxu0 %v972
        %v1036 = vpop.f32.mrf.mxu0
        %v1037 = vadd.f32 %v948, %v1036
        %1038 = vmatmul.f32.gmra.mxu0 %v975
        %v1039 = vpop.f32.mrf.mxu0
        %v1040 = vadd.f32 %v948, %v1039
        %1041 = vmatmul.f32.gmra.mxu0 %v978
        %v1042 = vpop.f32.mrf.mxu0
        %v1043 = vadd.f32 %v948, %v1042
        %1044 = vmatmul.f32.gmra.mxu0 %v981
        %v1045 = vpop.f32.mrf.mxu0
        %v1046 = vadd.f32 %v948, %v1045
        %1047 = vmatmul.f32.gmra.mxu0 %v984
        %v1048 = vpop.f32.mrf.mxu0
        %v1049 = vadd.f32 %v948, %v1048
        %1050 = vmatmul.f32.gmra.mxu0 %v987
        %v1051 = vpop.f32.mrf.mxu0
        %v1052 = vadd.f32 %v948, %v1051
        %1053 = vmatmul.f32.gmra.mxu0 %v990
        %v1054 = vpop.f32.mrf.mxu0
        %v1055 = vadd.f32 %v948, %v1054
        %1056 = vmatmul.f32.gmra.mxu0 %v993
        %v1057 = vpop.f32.mrf.mxu0
        %v1058 = vadd.f32 %v948, %v1057
        %1059 = vmatmul.f32.gmra.mxu0 %v996
        %v1060 = vpop.f32.mrf.mxu0
        %v1061 = vadd.f32 %v948, %v1060
        %1062 = vdwg.mxu0
        %v1063 = vld [vmem:[%s2 + $0x28] sm:$0xff]
        %v1064 = vld [vmem:[%s2 + $0x30] sm:$0xff]
        %v1065 = vld [vmem:[%s2 + $0x38] sm:$0xff]
        %v1066 = vld [vmem:[%s2 + $0x40] sm:$0xff]
        %v1067 = vld [vmem:[%s2 + $0x49] sm:$0x1]
        %1068 = vmatpush.msra.mxu0 %v1061
        %1069 = vmatpush.msra.mxu0 %v1058
        %1070 = vmatpush.msra.mxu0 %v1055
        %1071 = vmatpush.msra.mxu0 %v1052
        %1072 = vmatpush.msra.mxu0 %v1049
        %1073 = vmatpush.msra.mxu0 %v1046
        %1074 = vmatpush.msra.mxu0 %v1043
        %1075 = vmatpush.msra.mxu0 %v1040
        %1076 = vmatpush.msra.mxu0 %v1037
        %1077 = vmatpush.msra.mxu0 %v1034
        %1078 = vmatpush.msra.mxu0 %v1031
        %1079 = vmatpush.msra.mxu0 %v1028
        %1080 = vmatpush.msra.mxu0 %v1025
        %1081 = vmatpush.msra.mxu0 %v1022
        %1082 = vmatpush.msra.mxu0 %v1019
        %1083 = vmatpush.msra.mxu0 %v1016
        %1084 = vmatmul.f32.gmra.mxu0 %v684
        %v1085 = vpop.f32.mrf.mxu0
        %v1086 = vadd.f32 0.0, %v1085
        %1087 = vmatmul.f32.gmra.mxu0 %v685
        %v1088 = vpop.f32.mrf.mxu0
        %v1089 = vadd.f32 0.0, %v1088
        %1090 = vmatmul.f32.gmra.mxu0 %v686
        %v1091 = vpop.f32.mrf.mxu0
        %v1092 = vadd.f32 0.0, %v1091
        %1093 = vmatmul.f32.gmra.mxu0 %v687
        %v1094 = vpop.f32.mrf.mxu0
        %v1095 = vadd.f32 0.0, %v1094
        %1096 = vmatmul.f32.gmra.mxu0 %v688
        %v1097 = vpop.f32.mrf.mxu0
        %v1098 = vadd.f32 0.0, %v1097
        %1099 = vmatmul.f32.gmra.mxu0 %v689
        %v1100 = vpop.f32.mrf.mxu0
        %v1101 = vadd.f32 0.0, %v1100
        %1102 = vmatmul.f32.gmra.mxu0 %v690
        %v1103 = vpop.f32.mrf.mxu0
        %v1104 = vadd.f32 0.0, %v1103
        %1105 = vmatmul.f32.gmra.mxu0 %v691
        %v1106 = vpop.f32.mrf.mxu0
        %v1107 = vadd.f32 0.0, %v1106
        %1108 = vmatmul.f32.gmra.mxu0 %v692
        %v1109 = vpop.f32.mrf.mxu0
        %v1110 = vadd.f32 0.0, %v1109
        %1111 = vmatmul.f32.gmra.mxu0 %v693
        %v1112 = vpop.f32.mrf.mxu0
        %v1113 = vadd.f32 0.0, %v1112
        %1114 = vmatmul.f32.gmra.mxu0 %v694
        %v1115 = vpop.f32.mrf.mxu0
        %v1116 = vadd.f32 0.0, %v1115
        %1117 = vmatmul.f32.gmra.mxu0 %v695
        %v1118 = vpop.f32.mrf.mxu0
        %v1119 = vadd.f32 0.0, %v1118
        %1120 = vmatmul.f32.gmra.mxu0 %v696
        %v1121 = vpop.f32.mrf.mxu0
        %v1122 = vadd.f32 0.0, %v1121
        %1123 = vmatmul.f32.gmra.mxu0 %v697
        %v1124 = vpop.f32.mrf.mxu0
        %v1125 = vadd.f32 0.0, %v1124
        %1126 = vmatmul.f32.gmra.mxu0 %v698
        %v1127 = vpop.f32.mrf.mxu0
        %v1128 = vadd.f32 0.0, %v1127
        %1129 = vmatmul.f32.gmra.mxu0 %v699
        %v1130 = vpop.f32.mrf.mxu0
        %v1131 = vadd.f32 0.0, %v1130
        %1132 = vdwg.mxu0
        %v1133 = vmul.f32 %v522, %v1086
        %v1134 = vmul.f32 %v532, %v1089
        %v1135 = vmul.f32 %v542, %v1092
        %v1136 = vmul.f32 %v552, %v1095
        %v1137 = vmul.f32 %v562, %v1098
        %v1138 = vmul.f32 %v572, %v1101
        %v1139 = vmul.f32 %v582, %v1104
        %v1140 = vmul.f32 %v592, %v1107
        %v1141 = vmul.f32 %v602, %v1110
        %v1142 = vmul.f32 %v612, %v1113
        %v1143 = vmul.f32 %v622, %v1116
        %v1144 = vmul.f32 %v632, %v1119
        %v1145 = vmul.f32 %v642, %v1122
        %v1146 = vmul.f32 %v652, %v1125
        %v1147 = vmul.f32 %v662, %v1128
        %v1148 = vmul.f32 %v672, %v1131
        %v1149 = vperm.slane %v1067, 0
        %v1151 = vsel %vm949, %v1133, 0
        %v1154 = vsel %vm949, %v1134, 0
        %v1157 = vsel %vm949, %v1135, 0
        %v1160 = vsel %vm949, %v1136, 0
        %v1163 = vsel %vm949, %v1137, 0
        %v1166 = vsel %vm949, %v1138, 0
        %v1169 = vsel %vm949, %v1139, 0
        %v1172 = vsel %vm949, %v1140, 0
        %v1175 = vsel %vm949, %v1141, 0
        %v1178 = vsel %vm949, %v1142, 0
        %v1181 = vsel %vm949, %v1143, 0
        %v1184 = vsel %vm949, %v1144, 0
        %v1187 = vsel %vm949, %v1145, 0
        %v1190 = vsel %vm949, %v1146, 0
        %v1193 = vsel %vm949, %v1147, 0
        %v1196 = vsel %vm949, %v1148, 0
        %1198 = vmatpush.msra.mxu0 0.0
        %1199 = vmatpush.msra.mxu0 0.0
        %1200 = vmatpush.msra.mxu0 0.0
        %1201 = vmatpush.msra.mxu0 0.0
        %1202 = vmatpush.msra.mxu0 0.0
        %1203 = vmatpush.msra.mxu0 0.0
        %1204 = vmatpush.msra.mxu0 0.0
        %1205 = vmatpush.msra.mxu0 0.0
        %1206 = vmatpush.msra.mxu0 0.0
        %1207 = vmatpush.msra.mxu0 0.0
        %1208 = vmatpush.msra.mxu0 0.0
        %1209 = vmatpush.msra.mxu0 0.0
        %1210 = vmatpush.msra.mxu0 %v1066
        %1211 = vmatpush.msra.mxu0 %v1065
        %1212 = vmatpush.msra.mxu0 %v1064
        %1213 = vmatpush.msra.mxu0 %v1063
        %1214 = vmatmul.f32.gmra.mxu0 %v1151
        %v1215 = vpop.f32.mrf.mxu0
        %v1216 = vadd.f32 %v1149, %v1215
        %1217 = vmatmul.f32.gmra.mxu0 %v1154
        %v1218 = vpop.f32.mrf.mxu0
        %v1219 = vadd.f32 %v1149, %v1218
        %1220 = vmatmul.f32.gmra.mxu0 %v1157
        %v1221 = vpop.f32.mrf.mxu0
        %v1222 = vadd.f32 %v1149, %v1221
        %1223 = vmatmul.f32.gmra.mxu0 %v1160
        %v1224 = vpop.f32.mrf.mxu0
        %v1225 = vadd.f32 %v1149, %v1224
        %1226 = vmatmul.f32.gmra.mxu0 %v1163
        %v1227 = vpop.f32.mrf.mxu0
        %v1228 = vadd.f32 %v1149, %v1227
        %1229 = vmatmul.f32.gmra.mxu0 %v1166
        %v1230 = vpop.f32.mrf.mxu0
        %v1231 = vadd.f32 %v1149, %v1230
        %1232 = vmatmul.f32.gmra.mxu0 %v1169
        %v1233 = vpop.f32.mrf.mxu0
        %v1234 = vadd.f32 %v1149, %v1233
        %1235 = vmatmul.f32.gmra.mxu0 %v1172
        %v1236 = vpop.f32.mrf.mxu0
        %v1237 = vadd.f32 %v1149, %v1236
        %1238 = vmatmul.f32.gmra.mxu0 %v1175
        %v1239 = vpop.f32.mrf.mxu0
        %v1240 = vadd.f32 %v1149, %v1239
        %1241 = vmatmul.f32.gmra.mxu0 %v1178
        %v1242 = vpop.f32.mrf.mxu0
        %v1243 = vadd.f32 %v1149, %v1242
        %1244 = vmatmul.f32.gmra.mxu0 %v1181
        %v1245 = vpop.f32.mrf.mxu0
        %v1246 = vadd.f32 %v1149, %v1245
        %1247 = vmatmul.f32.gmra.mxu0 %v1184
        %v1248 = vpop.f32.mrf.mxu0
        %v1249 = vadd.f32 %v1149, %v1248
        %1250 = vmatmul.f32.gmra.mxu0 %v1187
        %v1251 = vpop.f32.mrf.mxu0
        %v1252 = vadd.f32 %v1149, %v1251
        %1253 = vmatmul.f32.gmra.mxu0 %v1190
        %v1254 = vpop.f32.mrf.mxu0
        %v1255 = vadd.f32 %v1149, %v1254
        %1256 = vmatmul.f32.gmra.mxu0 %v1193
        %v1257 = vpop.f32.mrf.mxu0
        %v1258 = vadd.f32 %v1149, %v1257
        %1259 = vmatmul.f32.gmra.mxu0 %v1196
        %v1260 = vpop.f32.mrf.mxu0
        %v1261 = vadd.f32 %v1149, %v1260
        %1262 = vdwg.mxu0
        %1263 = vmatpush.msra.mxu0 %v1261
        %1264 = vmatpush.msra.mxu0 %v1258
        %1265 = vmatpush.msra.mxu0 %v1255
        %1266 = vmatpush.msra.mxu0 %v1252
        %1267 = vmatpush.msra.mxu0 %v1249
        %1268 = vmatpush.msra.mxu0 %v1246
        %1269 = vmatpush.msra.mxu0 %v1243
        %1270 = vmatpush.msra.mxu0 %v1240
        %1271 = vmatpush.msra.mxu0 %v1237
        %1272 = vmatpush.msra.mxu0 %v1234
        %1273 = vmatpush.msra.mxu0 %v1231
        %1274 = vmatpush.msra.mxu0 %v1228
        %1275 = vmatpush.msra.mxu0 %v1225
        %1276 = vmatpush.msra.mxu0 %v1222
        %1277 = vmatpush.msra.mxu0 %v1219
        %1278 = vmatpush.msra.mxu0 %v1216
        %1279 = vmatmul.f32.gmra.mxu0 %v227
        %v1280 = vpop.f32.mrf.mxu0
        %v1281 = vadd.f32 0.0, %v1280
        %1282 = vdwg.mxu0
        %v1283 = vperm.slane %v251, 0
        %v1285 = vsel %vm949, %v1281, 0
        %1287 = vmatpush.msra.mxu0 0.0
        %1288 = vmatpush.msra.mxu0 0.0
        %1289 = vmatpush.msra.mxu0 0.0
        %1290 = vmatpush.msra.mxu0 0.0
        %1291 = vmatpush.msra.mxu0 0.0
        %1292 = vmatpush.msra.mxu0 0.0
        %1293 = vmatpush.msra.mxu0 0.0
        %1294 = vmatpush.msra.mxu0 0.0
        %1295 = vmatpush.msra.mxu0 0.0
        %1296 = vmatpush.msra.mxu0 0.0
        %1297 = vmatpush.msra.mxu0 0.0
        %1298 = vmatpush.msra.mxu0 0.0
        %1299 = vmatpush.msra.mxu0 %v250
        %1300 = vmatpush.msra.mxu0 %v249
        %1301 = vmatpush.msra.mxu0 %v248
        %1302 = vmatpush.msra.mxu0 %v247
        %1303 = vmatmul.f32.gmra.mxu0 %v1285
        %v1304 = vpop.f32.mrf.mxu0
        %v1305 = vadd.f32 %v1283, %v1304
        %1306 = vdwg.mxu0
        %v1307 = vmax.f32 %v1305, 0.0
        %v1308 = vperm.slane %v256, 0
        %v1310 = vsel %vm949, %v1307, 0
        %1312 = vmatpush.msra.mxu0 0.0
        %1313 = vmatpush.msra.mxu0 0.0
        %1314 = vmatpush.msra.mxu0 0.0
        %1315 = vmatpush.msra.mxu0 0.0
        %1316 = vmatpush.msra.mxu0 0.0
        %1317 = vmatpush.msra.mxu0 0.0
        %1318 = vmatpush.msra.mxu0 0.0
        %1319 = vmatpush.msra.mxu0 0.0
        %1320 = vmatpush.msra.mxu0 0.0
        %1321 = vmatpush.msra.mxu0 0.0
        %1322 = vmatpush.msra.mxu0 0.0
        %1323 = vmatpush.msra.mxu0 0.0
        %1324 = vmatpush.msra.mxu0 %v255
        %1325 = vmatpush.msra.mxu0 %v254
        %1326 = vmatpush.msra.mxu0 %v253
        %1327 = vmatpush.msra.mxu0 %v252
        %1328 = vmatmul.f32.gmra.mxu0 %v1310
        %v1329 = vpop.f32.mrf.mxu0
        %v1330 = vadd.f32 %v1308, %v1329
        %1331 = vdwg.mxu0
        %v1332 = vmax.f32 %v1330, 0.0
        %v1333 = vperm.slane %v261, 0
        %v1335 = vsel %vm949, %v1332, 0
        %1337 = vmatpush.msra.mxu0 0.0
        %1338 = vmatpush.msra.mxu0 0.0
        %1339 = vmatpush.msra.mxu0 0.0
        %1340 = vmatpush.msra.mxu0 0.0
        %1341 = vmatpush.msra.mxu0 0.0
        %1342 = vmatpush.msra.mxu0 0.0
        %1343 = vmatpush.msra.mxu0 0.0
        %1344 = vmatpush.msra.mxu0 0.0
        %1345 = vmatpush.msra.mxu0 0.0
        %1346 = vmatpush.msra.mxu0 0.0
        %1347 = vmatpush.msra.mxu0 0.0
        %1348 = vmatpush.msra.mxu0 0.0
        %1349 = vmatpush.msra.mxu0 %v260
        %1350 = vmatpush.msra.mxu0 %v259
        %1351 = vmatpush.msra.mxu0 %v258
        %1352 = vmatpush.msra.mxu0 %v257
        %1353 = vmatmul.f32.gmra.mxu0 %v1335
        %v1354 = vpop.f32.mrf.mxu0
        %v1355 = vadd.f32 %v1333, %v1354
        %1356 = vdwg.mxu0
        %1358 = vset.pattern.permute.xlu0 0
        %1359 = vperm.xlu0 %1358, %v1355
        %v1360 = vpop.permute.xlu0 %1359
        %1362 = vst [vmem:[%s211] sm:$0xff] %v1360
        %s1363 = scalar_lea.vmem %s217, 32
        %v1364 = vld [vmem:[%s1363] sm:$0xff]
        %v1365 = vld [vmem:[%s1363 + $0x8] sm:$0xff]
        %v1366 = vld [vmem:[%s1363 + $0x10] sm:$0xff]
        %v1367 = vld [vmem:[%s1363 + $0x18] sm:$0xff]
        %v1368 = vunpack.c.0.s8 %v1364
        %v1369 = vunpack.c.1.s8 %v1364
        %v1370 = vunpack.c.2.s8 %v1364
        %v1371 = vunpack.c.3.s8 %v1364
        %v1372 = vunpack.c.0.s8 %v1365
        %v1373 = vunpack.c.1.s8 %v1365
        %v1374 = vunpack.c.2.s8 %v1365
        %v1375 = vunpack.c.3.s8 %v1365
        %v1376 = vunpack.c.0.s8 %v1366
        %v1377 = vunpack.c.1.s8 %v1366
        %v1378 = vunpack.c.2.s8 %v1366
        %v1379 = vunpack.c.3.s8 %v1366
        %v1380 = vunpack.c.0.s8 %v1367
        %v1381 = vunpack.c.1.s8 %v1367
        %v1382 = vunpack.c.2.s8 %v1367
        %v1383 = vunpack.c.3.s8 %v1367
        %v1384 = vcvt.s32.f32 %v1368
        %v1385 = vcvt.s32.f32 %v1369
        %v1386 = vcvt.s32.f32 %v1370
        %v1387 = vcvt.s32.f32 %v1371
        %v1388 = vcvt.s32.f32 %v1372
        %v1389 = vcvt.s32.f32 %v1373
        %v1390 = vcvt.s32.f32 %v1374
        %v1391 = vcvt.s32.f32 %v1375
        %v1392 = vcvt.s32.f32 %v1376
        %v1393 = vcvt.s32.f32 %v1377
        %v1394 = vcvt.s32.f32 %v1378
        %v1395 = vcvt.s32.f32 %v1379
        %v1396 = vcvt.s32.f32 %v1380
        %v1397 = vcvt.s32.f32 %v1381
        %v1398 = vcvt.s32.f32 %v1382
        %v1399 = vcvt.s32.f32 %v1383
        %v1401 = vsel %vm298, %v1384, 0
        %v1404 = vsel %vm298, %v1385, 0
        %v1407 = vsel %vm298, %v1386, 0
        %v1410 = vsel %vm298, %v1387, 0
        %v1413 = vsel %vm298, %v1388, 0
        %v1416 = vsel %vm298, %v1389, 0
        %v1419 = vsel %vm298, %v1390, 0
        %v1422 = vsel %vm298, %v1391, 0
        %v1425 = vsel %vm298, %v1392, 0
        %v1428 = vsel %vm298, %v1393, 0
        %v1431 = vsel %vm298, %v1394, 0
        %v1434 = vsel %vm298, %v1395, 0
        %v1437 = vsel %vm298, %v1396, 0
        %v1440 = vsel %vm298, %v1397, 0
        %v1443 = vsel %vm298, %v1398, 0
        %v1446 = vsel %vm298, %v1399, 0
        %1448 = vmatpush.msra.mxu0 0.0
        %1449 = vmatpush.msra.mxu0 0.0
        %1450 = vmatpush.msra.mxu0 0.0
        %1451 = vmatpush.msra.mxu0 0.0
        %1452 = vmatpush.msra.mxu0 0.0
        %1453 = vmatpush.msra.mxu0 0.0
        %1454 = vmatpush.msra.mxu0 0.0
        %1455 = vmatpush.msra.mxu0 0.0
        %1456 = vmatpush.msra.mxu0 0.0
        %1457 = vmatpush.msra.mxu0 0.0
        %1458 = vmatpush.msra.mxu0 0.0
        %1459 = vmatpush.msra.mxu0 0.0
        %1460 = vmatpush.msra.mxu0 0.0
        %1461 = vmatpush.msra.mxu0 0.0
        %1462 = vmatpush.msra.mxu0 %v229
        %1463 = vmatpush.msra.mxu0 %v228
        %1464 = vmatmul.f32.gmra.mxu0 %v1401
        %v1465 = vpop.f32.mrf.mxu0
        %v1466 = vadd.f32 0.0, %v1465
        %1467 = vmatmul.f32.gmra.mxu0 %v1404
        %v1468 = vpop.f32.mrf.mxu0
        %v1469 = vadd.f32 0.0, %v1468
        %1470 = vmatmul.f32.gmra.mxu0 %v1407
        %v1471 = vpop.f32.mrf.mxu0
        %v1472 = vadd.f32 0.0, %v1471
        %1473 = vmatmul.f32.gmra.mxu0 %v1410
        %v1474 = vpop.f32.mrf.mxu0
        %v1475 = vadd.f32 0.0, %v1474
        %1476 = vmatmul.f32.gmra.mxu0 %v1413
        %v1477 = vpop.f32.mrf.mxu0
        %v1478 = vadd.f32 0.0, %v1477
        %1479 = vmatmul.f32.gmra.mxu0 %v1416
        %v1480 = vpop.f32.mrf.mxu0
        %v1481 = vadd.f32 0.0, %v1480
        %1482 = vmatmul.f32.gmra.mxu0 %v1419
        %v1483 = vpop.f32.mrf.mxu0
        %v1484 = vadd.f32 0.0, %v1483
        %1485 = vmatmul.f32.gmra.mxu0 %v1422
        %v1486 = vpop.f32.mrf.mxu0
        %v1487 = vadd.f32 0.0, %v1486
        %1488 = vmatmul.f32.gmra.mxu0 %v1425
        %v1489 = vpop.f32.mrf.mxu0
        %v1490 = vadd.f32 0.0, %v1489
        %1491 = vmatmul.f32.gmra.mxu0 %v1428
        %v1492 = vpop.f32.mrf.mxu0
        %v1493 = vadd.f32 0.0, %v1492
        %1494 = vmatmul.f32.gmra.mxu0 %v1431
        %v1495 = vpop.f32.mrf.mxu0
        %v1496 = vadd.f32 0.0, %v1495
        %1497 = vmatmul.f32.gmra.mxu0 %v1434
        %v1498 = vpop.f32.mrf.mxu0
        %v1499 = vadd.f32 0.0, %v1498
        %1500 = vmatmul.f32.gmra.mxu0 %v1437
        %v1501 = vpop.f32.mrf.mxu0
        %v1502 = vadd.f32 0.0, %v1501
        %1503 = vmatmul.f32.gmra.mxu0 %v1440
        %v1504 = vpop.f32.mrf.mxu0
        %v1505 = vadd.f32 0.0, %v1504
        %1506 = vmatmul.f32.gmra.mxu0 %v1443
        %v1507 = vpop.f32.mrf.mxu0
        %v1508 = vadd.f32 0.0, %v1507
        %1509 = vmatmul.f32.gmra.mxu0 %v1446
        %v1510 = vpop.f32.mrf.mxu0
        %v1511 = vadd.f32 0.0, %v1510
        %1512 = vdwg.mxu0
        %v1513 = vmul.f32 %v1466, %v230
        %v1514 = vmul.f32 %v1469, %v231
        %v1515 = vmul.f32 %v1472, %v232
        %v1516 = vmul.f32 %v1475, %v233
        %v1517 = vmul.f32 %v1478, %v234
        %v1518 = vmul.f32 %v1481, %v235
        %v1519 = vmul.f32 %v1484, %v236
        %v1520 = vmul.f32 %v1487, %v237
        %v1521 = vmul.f32 %v1490, %v238
        %v1522 = vmul.f32 %v1493, %v239
        %v1523 = vmul.f32 %v1496, %v240
        %v1524 = vmul.f32 %v1499, %v241
        %v1525 = vmul.f32 %v1502, %v242
        %v1526 = vmul.f32 %v1505, %v243
        %v1527 = vmul.f32 %v1508, %v244
        %v1528 = vmul.f32 %v1511, %v245
        %v1529 = vsel %vm298, %v1384, 0.0
        %1530 = vadd.xlane.f32.xlu0 %v1529
        %v1531 = vpop.xlane.xlu0 %1530
        %v1532 = vsel %vm298, %v1385, 0.0
        %1533 = vadd.xlane.f32.xlu0 %v1532
        %v1534 = vpop.xlane.xlu0 %1533
        %v1535 = vsel %vm298, %v1386, 0.0
        %1536 = vadd.xlane.f32.xlu0 %v1535
        %v1537 = vpop.xlane.xlu0 %1536
        %v1538 = vsel %vm298, %v1387, 0.0
        %1539 = vadd.xlane.f32.xlu0 %v1538
        %v1540 = vpop.xlane.xlu0 %1539
        %v1541 = vsel %vm298, %v1388, 0.0
        %1542 = vadd.xlane.f32.xlu0 %v1541
        %v1543 = vpop.xlane.xlu0 %1542
        %v1544 = vsel %vm298, %v1389, 0.0
        %1545 = vadd.xlane.f32.xlu0 %v1544
        %v1546 = vpop.xlane.xlu0 %1545
        %v1547 = vsel %vm298, %v1390, 0.0
        %1548 = vadd.xlane.f32.xlu0 %v1547
        %v1549 = vpop.xlane.xlu0 %1548
        %v1550 = vsel %vm298, %v1391, 0.0
        %1551 = vadd.xlane.f32.xlu0 %v1550
        %v1552 = vpop.xlane.xlu0 %1551
        %v1553 = vsel %vm298, %v1392, 0.0
        %1554 = vadd.xlane.f32.xlu0 %v1553
        %v1555 = vpop.xlane.xlu0 %1554
        %v1556 = vsel %vm298, %v1393, 0.0
        %1557 = vadd.xlane.f32.xlu0 %v1556
        %v1558 = vpop.xlane.xlu0 %1557
        %v1559 = vsel %vm298, %v1394, 0.0
        %1560 = vadd.xlane.f32.xlu0 %v1559
        %v1561 = vpop.xlane.xlu0 %1560
        %v1562 = vsel %vm298, %v1395, 0.0
        %1563 = vadd.xlane.f32.xlu0 %v1562
        %v1564 = vpop.xlane.xlu0 %1563
        %v1565 = vsel %vm298, %v1396, 0.0
        %1566 = vadd.xlane.f32.xlu0 %v1565
        %v1567 = vpop.xlane.xlu0 %1566
        %v1568 = vsel %vm298, %v1397, 0.0
        %1569 = vadd.xlane.f32.xlu0 %v1568
        %v1570 = vpop.xlane.xlu0 %1569
        %v1571 = vsel %vm298, %v1398, 0.0
        %1572 = vadd.xlane.f32.xlu0 %v1571
        %v1573 = vpop.xlane.xlu0 %1572
        %v1574 = vsel %vm298, %v1399, 0.0
        %1575 = vadd.xlane.f32.xlu0 %v1574
        %v1576 = vpop.xlane.xlu0 %1575
        %v1577 = vadd.f32 %v1513, %v1514
        %v1578 = vadd.f32 %v1577, %v1515
        %v1579 = vadd.f32 %v1578, %v1516
        %v1580 = vadd.f32 %v1579, %v1517
        %v1581 = vadd.f32 %v1580, %v1518
        %v1582 = vadd.f32 %v1581, %v1519
        %v1583 = vadd.f32 %v1582, %v1520
        %v1584 = vadd.f32 %v1583, %v1521
        %v1585 = vadd.f32 %v1584, %v1522
        %v1586 = vadd.f32 %v1585, %v1523
        %v1587 = vadd.f32 %v1586, %v1524
        %v1588 = vadd.f32 %v1587, %v1525
        %v1589 = vadd.f32 %v1588, %v1526
        %v1590 = vadd.f32 %v1589, %v1527
        %v1591 = vadd.f32 %v1590, %v1528
        %v1592 = vrot.slane %v1591, 4
        %v1593 = vadd.f32 %v1591, %v1592
        %v1594 = vrot.slane %v1593, 2
        %v1595 = vadd.f32 %v1593, %v1594
        %v1596 = vrot.slane %v1595, 1
        %v1597 = vadd.f32 %v1595, %v1596
        %v1598 = vmax.f32 %v1531, 1.0
        %v1599 = vmax.f32 %v1534, 1.0
        %v1600 = vmax.f32 %v1537, 1.0
        %v1601 = vmax.f32 %v1540, 1.0
        %v1602 = vmax.f32 %v1543, 1.0
        %v1603 = vmax.f32 %v1546, 1.0
        %v1604 = vmax.f32 %v1549, 1.0
        %v1605 = vmax.f32 %v1552, 1.0
        %v1606 = vmax.f32 %v1555, 1.0
        %v1607 = vmax.f32 %v1558, 1.0
        %v1608 = vmax.f32 %v1561, 1.0
        %v1609 = vmax.f32 %v1564, 1.0
        %v1610 = vmax.f32 %v1567, 1.0
        %v1611 = vmax.f32 %v1570, 1.0
        %v1612 = vmax.f32 %v1573, 1.0
        %v1613 = vmax.f32 %v1576, 1.0
        %v1614 = vrsqrt.pop %v1598
        %v1615 = vmul.f32 %v1614, %v1598
        %v1616 = vmul.f32 %v1615, %v1614
        %v1617 = vmul.f32 0.5, %v1616
        %v1618 = vsub.f32 1.5, %v1617
        %v1619 = vmul.f32 %v1614, %v1618
        %vm1620 = vweird.f32 %v1598
        %vm1621 = vweird.f32 %v1614
        %vm1622 = vmor %vm1620, %vm1621
        %v1623 = vsel %vm1622, %v1614, %v1619
        %v1624 = vrsqrt.pop %v1599
        %v1625 = vmul.f32 %v1624, %v1599
        %v1626 = vmul.f32 %v1625, %v1624
        %v1627 = vmul.f32 0.5, %v1626
        %v1628 = vsub.f32 1.5, %v1627
        %v1629 = vmul.f32 %v1624, %v1628
        %vm1630 = vweird.f32 %v1599
        %vm1631 = vweird.f32 %v1624
        %vm1632 = vmor %vm1630, %vm1631
        %v1633 = vsel %vm1632, %v1624, %v1629
        %v1634 = vrsqrt.pop %v1600
        %v1635 = vmul.f32 %v1634, %v1600
        %v1636 = vmul.f32 %v1635, %v1634
        %v1637 = vmul.f32 0.5, %v1636
        %v1638 = vsub.f32 1.5, %v1637
        %v1639 = vmul.f32 %v1634, %v1638
        %vm1640 = vweird.f32 %v1600
        %vm1641 = vweird.f32 %v1634
        %vm1642 = vmor %vm1640, %vm1641
        %v1643 = vsel %vm1642, %v1634, %v1639
        %v1644 = vrsqrt.pop %v1601
        %v1645 = vmul.f32 %v1644, %v1601
        %v1646 = vmul.f32 %v1645, %v1644
        %v1647 = vmul.f32 0.5, %v1646
        %v1648 = vsub.f32 1.5, %v1647
        %v1649 = vmul.f32 %v1644, %v1648
        %vm1650 = vweird.f32 %v1601
        %vm1651 = vweird.f32 %v1644
        %vm1652 = vmor %vm1650, %vm1651
        %v1653 = vsel %vm1652, %v1644, %v1649
        %v1654 = vrsqrt.pop %v1602
        %v1655 = vmul.f32 %v1654, %v1602
        %v1656 = vmul.f32 %v1655, %v1654
        %v1657 = vmul.f32 0.5, %v1656
        %v1658 = vsub.f32 1.5, %v1657
        %v1659 = vmul.f32 %v1654, %v1658
        %vm1660 = vweird.f32 %v1602
        %vm1661 = vweird.f32 %v1654
        %vm1662 = vmor %vm1660, %vm1661
        %v1663 = vsel %vm1662, %v1654, %v1659
        %v1664 = vrsqrt.pop %v1603
        %v1665 = vmul.f32 %v1664, %v1603
        %v1666 = vmul.f32 %v1665, %v1664
        %v1667 = vmul.f32 0.5, %v1666
        %v1668 = vsub.f32 1.5, %v1667
        %v1669 = vmul.f32 %v1664, %v1668
        %vm1670 = vweird.f32 %v1603
        %vm1671 = vweird.f32 %v1664
        %vm1672 = vmor %vm1670, %vm1671
        %v1673 = vsel %vm1672, %v1664, %v1669
        %v1674 = vrsqrt.pop %v1604
        %v1675 = vmul.f32 %v1674, %v1604
        %v1676 = vmul.f32 %v1675, %v1674
        %v1677 = vmul.f32 0.5, %v1676
        %v1678 = vsub.f32 1.5, %v1677
        %v1679 = vmul.f32 %v1674, %v1678
        %vm1680 = vweird.f32 %v1604
        %vm1681 = vweird.f32 %v1674
        %vm1682 = vmor %vm1680, %vm1681
        %v1683 = vsel %vm1682, %v1674, %v1679
        %v1684 = vrsqrt.pop %v1605
        %v1685 = vmul.f32 %v1684, %v1605
        %v1686 = vmul.f32 %v1685, %v1684
        %v1687 = vmul.f32 0.5, %v1686
        %v1688 = vsub.f32 1.5, %v1687
        %v1689 = vmul.f32 %v1684, %v1688
        %vm1690 = vweird.f32 %v1605
        %vm1691 = vweird.f32 %v1684
        %vm1692 = vmor %vm1690, %vm1691
        %v1693 = vsel %vm1692, %v1684, %v1689
        %v1694 = vrsqrt.pop %v1606
        %v1695 = vmul.f32 %v1694, %v1606
        %v1696 = vmul.f32 %v1695, %v1694
        %v1697 = vmul.f32 0.5, %v1696
        %v1698 = vsub.f32 1.5, %v1697
        %v1699 = vmul.f32 %v1694, %v1698
        %vm1700 = vweird.f32 %v1606
        %vm1701 = vweird.f32 %v1694
        %vm1702 = vmor %vm1700, %vm1701
        %v1703 = vsel %vm1702, %v1694, %v1699
        %v1704 = vrsqrt.pop %v1607
        %v1705 = vmul.f32 %v1704, %v1607
        %v1706 = vmul.f32 %v1705, %v1704
        %v1707 = vmul.f32 0.5, %v1706
        %v1708 = vsub.f32 1.5, %v1707
        %v1709 = vmul.f32 %v1704, %v1708
        %vm1710 = vweird.f32 %v1607
        %vm1711 = vweird.f32 %v1704
        %vm1712 = vmor %vm1710, %vm1711
        %v1713 = vsel %vm1712, %v1704, %v1709
        %v1714 = vrsqrt.pop %v1608
        %v1715 = vmul.f32 %v1714, %v1608
        %v1716 = vmul.f32 %v1715, %v1714
        %v1717 = vmul.f32 0.5, %v1716
        %v1718 = vsub.f32 1.5, %v1717
        %v1719 = vmul.f32 %v1714, %v1718
        %vm1720 = vweird.f32 %v1608
        %vm1721 = vweird.f32 %v1714
        %vm1722 = vmor %vm1720, %vm1721
        %v1723 = vsel %vm1722, %v1714, %v1719
        %v1724 = vrsqrt.pop %v1609
        %v1725 = vmul.f32 %v1724, %v1609
        %v1726 = vmul.f32 %v1725, %v1724
        %v1727 = vmul.f32 0.5, %v1726
        %v1728 = vsub.f32 1.5, %v1727
        %v1729 = vmul.f32 %v1724, %v1728
        %vm1730 = vweird.f32 %v1609
        %vm1731 = vweird.f32 %v1724
        %vm1732 = vmor %vm1730, %vm1731
        %v1733 = vsel %vm1732, %v1724, %v1729
        %v1734 = vrsqrt.pop %v1610
        %v1735 = vmul.f32 %v1734, %v1610
        %v1736 = vmul.f32 %v1735, %v1734
        %v1737 = vmul.f32 0.5, %v1736
        %v1738 = vsub.f32 1.5, %v1737
        %v1739 = vmul.f32 %v1734, %v1738
        %vm1740 = vweird.f32 %v1610
        %vm1741 = vweird.f32 %v1734
        %vm1742 = vmor %vm1740, %vm1741
        %v1743 = vsel %vm1742, %v1734, %v1739
        %v1744 = vrsqrt.pop %v1611
        %v1745 = vmul.f32 %v1744, %v1611
        %v1746 = vmul.f32 %v1745, %v1744
        %v1747 = vmul.f32 0.5, %v1746
        %v1748 = vsub.f32 1.5, %v1747
        %v1749 = vmul.f32 %v1744, %v1748
        %vm1750 = vweird.f32 %v1611
        %vm1751 = vweird.f32 %v1744
        %vm1752 = vmor %vm1750, %vm1751
        %v1753 = vsel %vm1752, %v1744, %v1749
        %v1754 = vrsqrt.pop %v1612
        %v1755 = vmul.f32 %v1754, %v1612
        %v1756 = vmul.f32 %v1755, %v1754
        %v1757 = vmul.f32 0.5, %v1756
        %v1758 = vsub.f32 1.5, %v1757
        %v1759 = vmul.f32 %v1754, %v1758
        %vm1760 = vweird.f32 %v1612
        %vm1761 = vweird.f32 %v1754
        %vm1762 = vmor %vm1760, %vm1761
        %v1763 = vsel %vm1762, %v1754, %v1759
        %v1764 = vrsqrt.pop %v1613
        %v1765 = vmul.f32 %v1764, %v1613
        %v1766 = vmul.f32 %v1765, %v1764
        %v1767 = vmul.f32 0.5, %v1766
        %v1768 = vsub.f32 1.5, %v1767
        %v1769 = vmul.f32 %v1764, %v1768
        %vm1770 = vweird.f32 %v1613
        %vm1771 = vweird.f32 %v1764
        %vm1772 = vmor %vm1770, %vm1771
        %v1773 = vsel %vm1772, %v1764, %v1769
        %v1774 = vmax.f32 %v1597, 1.0
        %v1775 = vrsqrt.pop %v1774
        %v1776 = vmul.f32 %v1775, %v1774
        %v1777 = vmul.f32 %v1776, %v1775
        %v1778 = vmul.f32 0.5, %v1777
        %v1779 = vsub.f32 1.5, %v1778
        %v1780 = vmul.f32 %v1775, %v1779
        %vm1781 = vweird.f32 %v1774
        %vm1782 = vweird.f32 %v1775
        %vm1783 = vmor %vm1781, %vm1782
        %v1784 = vsel %vm1783, %v1775, %v1780
        %v1785 = vmul.f32 %v1513, %v1784
        %v1786 = vmul.f32 %v1514, %v1784
        %v1787 = vmul.f32 %v1515, %v1784
        %v1788 = vmul.f32 %v1516, %v1784
        %v1789 = vmul.f32 %v1517, %v1784
        %v1790 = vmul.f32 %v1518, %v1784
        %v1791 = vmul.f32 %v1519, %v1784
        %v1792 = vmul.f32 %v1520, %v1784
        %v1793 = vmul.f32 %v1521, %v1784
        %v1794 = vmul.f32 %v1522, %v1784
        %v1795 = vmul.f32 %v1523, %v1784
        %v1796 = vmul.f32 %v1524, %v1784
        %v1797 = vmul.f32 %v1525, %v1784
        %v1798 = vmul.f32 %v1526, %v1784
        %v1799 = vmul.f32 %v1527, %v1784
        %v1800 = vmul.f32 %v1528, %v1784
        %s1801 = scalar_lea.vmem %s224, 32
        %v1802 = vld [vmem:[%s1801] sm:$0x3]
        %v1803 = vld [vmem:[%s1801 + $0x2] sm:$0x3]
        %v1804 = vld [vmem:[%s1801 + $0x4] sm:$0x3]
        %v1805 = vld [vmem:[%s1801 + $0x6] sm:$0x3]
        %v1806 = vld [vmem:[%s1801 + $0x8] sm:$0x3]
        %v1807 = vld [vmem:[%s1801 + $0xa] sm:$0x3]
        %v1808 = vld [vmem:[%s1801 + $0xc] sm:$0x3]
        %v1809 = vld [vmem:[%s1801 + $0xe] sm:$0x3]
        %v1810 = vld [vmem:[%s1801 + $0x10] sm:$0x3]
        %v1811 = vld [vmem:[%s1801 + $0x12] sm:$0x3]
        %v1812 = vld [vmem:[%s1801 + $0x14] sm:$0x3]
        %v1813 = vld [vmem:[%s1801 + $0x16] sm:$0x3]
        %v1814 = vld [vmem:[%s1801 + $0x18] sm:$0x3]
        %v1815 = vld [vmem:[%s1801 + $0x1a] sm:$0x3]
        %v1816 = vld [vmem:[%s1801 + $0x1c] sm:$0x3]
        %v1817 = vld [vmem:[%s1801 + $0x1e] sm:$0x3]
        %v1818 = vunpack.c.0.s8 %v1802
        %v1819 = vunpack.c.0.s8 %v1803
        %v1820 = vunpack.c.0.s8 %v1804
        %v1821 = vunpack.c.0.s8 %v1805
        %v1822 = vunpack.c.0.s8 %v1806
        %v1823 = vunpack.c.0.s8 %v1807
        %v1824 = vunpack.c.0.s8 %v1808
        %v1825 = vunpack.c.0.s8 %v1809
        %v1826 = vunpack.c.0.s8 %v1810
        %v1827 = vunpack.c.0.s8 %v1811
        %v1828 = vunpack.c.0.s8 %v1812
        %v1829 = vunpack.c.0.s8 %v1813
        %v1830 = vunpack.c.0.s8 %v1814
        %v1831 = vunpack.c.0.s8 %v1815
        %v1832 = vunpack.c.0.s8 %v1816
        %v1833 = vunpack.c.0.s8 %v1817
        %v1834 = vcvt.s32.f32 %v1818
        %v1835 = vcvt.s32.f32 %v1819
        %v1836 = vcvt.s32.f32 %v1820
        %v1837 = vcvt.s32.f32 %v1821
        %v1838 = vcvt.s32.f32 %v1822
        %v1839 = vcvt.s32.f32 %v1823
        %v1840 = vcvt.s32.f32 %v1824
        %v1841 = vcvt.s32.f32 %v1825
        %v1842 = vcvt.s32.f32 %v1826
        %v1843 = vcvt.s32.f32 %v1827
        %v1844 = vcvt.s32.f32 %v1828
        %v1845 = vcvt.s32.f32 %v1829
        %v1846 = vcvt.s32.f32 %v1830
        %v1847 = vcvt.s32.f32 %v1831
        %v1848 = vcvt.s32.f32 %v1832
        %v1849 = vcvt.s32.f32 %v1833
        %v1851 = vsel %vm748, %v1834, 0
        %v1854 = vsel %vm748, %v1835, 0
        %v1857 = vsel %vm748, %v1836, 0
        %v1860 = vsel %vm748, %v1837, 0
        %v1863 = vsel %vm748, %v1838, 0
        %v1866 = vsel %vm748, %v1839, 0
        %v1869 = vsel %vm748, %v1840, 0
        %v1872 = vsel %vm748, %v1841, 0
        %v1875 = vsel %vm748, %v1842, 0
        %v1878 = vsel %vm748, %v1843, 0
        %v1881 = vsel %vm748, %v1844, 0
        %v1884 = vsel %vm748, %v1845, 0
        %v1887 = vsel %vm748, %v1846, 0
        %v1890 = vsel %vm748, %v1847, 0
        %v1893 = vsel %vm748, %v1848, 0
        %v1896 = vsel %vm748, %v1849, 0
        %1898 = vmatpush.msra.mxu0 0.0
        %1899 = vmatpush.msra.mxu0 0.0
        %1900 = vmatpush.msra.mxu0 0.0
        %1901 = vmatpush.msra.mxu0 0.0
        %1902 = vmatpush.msra.mxu0 0.0
        %1903 = vmatpush.msra.mxu0 0.0
        %1904 = vmatpush.msra.mxu0 0.0
        %1905 = vmatpush.msra.mxu0 0.0
        %1906 = vmatpush.msra.mxu0 0.0
        %1907 = vmatpush.msra.mxu0 0.0
        %1908 = vmatpush.msra.mxu0 0.0
        %1909 = vmatpush.msra.mxu0 0.0
        %1910 = vmatpush.msra.mxu0 0.0
        %1911 = vmatpush.msra.mxu0 0.0
        %1912 = vmatpush.msra.mxu0 0.0
        %1913 = vmatpush.msra.mxu0 %v246
        %1914 = vmatmul.f32.gmra.mxu0 %v1851
        %v1915 = vpop.f32.mrf.mxu0
        %v1916 = vadd.f32 0.0, %v1915
        %1917 = vmatmul.f32.gmra.mxu0 %v1854
        %v1918 = vpop.f32.mrf.mxu0
        %v1919 = vadd.f32 0.0, %v1918
        %1920 = vmatmul.f32.gmra.mxu0 %v1857
        %v1921 = vpop.f32.mrf.mxu0
        %v1922 = vadd.f32 0.0, %v1921
        %1923 = vmatmul.f32.gmra.mxu0 %v1860
        %v1924 = vpop.f32.mrf.mxu0
        %v1925 = vadd.f32 0.0, %v1924
        %1926 = vmatmul.f32.gmra.mxu0 %v1863
        %v1927 = vpop.f32.mrf.mxu0
        %v1928 = vadd.f32 0.0, %v1927
        %1929 = vmatmul.f32.gmra.mxu0 %v1866
        %v1930 = vpop.f32.mrf.mxu0
        %v1931 = vadd.f32 0.0, %v1930
        %1932 = vmatmul.f32.gmra.mxu0 %v1869
        %v1933 = vpop.f32.mrf.mxu0
        %v1934 = vadd.f32 0.0, %v1933
        %1935 = vmatmul.f32.gmra.mxu0 %v1872
        %v1936 = vpop.f32.mrf.mxu0
        %v1937 = vadd.f32 0.0, %v1936
        %1938 = vmatmul.f32.gmra.mxu0 %v1875
        %v1939 = vpop.f32.mrf.mxu0
        %v1940 = vadd.f32 0.0, %v1939
        %1941 = vmatmul.f32.gmra.mxu0 %v1878
        %v1942 = vpop.f32.mrf.mxu0
        %v1943 = vadd.f32 0.0, %v1942
        %1944 = vmatmul.f32.gmra.mxu0 %v1881
        %v1945 = vpop.f32.mrf.mxu0
        %v1946 = vadd.f32 0.0, %v1945
        %1947 = vmatmul.f32.gmra.mxu0 %v1884
        %v1948 = vpop.f32.mrf.mxu0
        %v1949 = vadd.f32 0.0, %v1948
        %1950 = vmatmul.f32.gmra.mxu0 %v1887
        %v1951 = vpop.f32.mrf.mxu0
        %v1952 = vadd.f32 0.0, %v1951
        %1953 = vmatmul.f32.gmra.mxu0 %v1890
        %v1954 = vpop.f32.mrf.mxu0
        %v1955 = vadd.f32 0.0, %v1954
        %1956 = vmatmul.f32.gmra.mxu0 %v1893
        %v1957 = vpop.f32.mrf.mxu0
        %v1958 = vadd.f32 0.0, %v1957
        %1959 = vmatmul.f32.gmra.mxu0 %v1896
        %v1960 = vpop.f32.mrf.mxu0
        %v1961 = vadd.f32 0.0, %v1960
        %1962 = vdwg.mxu0
        %v1963 = vld [vmem:[%s2 + $0x8] sm:$0xff]
        %v1964 = vld [vmem:[%s2 + $0x10] sm:$0xff]
        %v1965 = vld [vmem:[%s2 + $0x18] sm:$0xff]
        %v1966 = vld [vmem:[%s2 + $0x20] sm:$0xff]
        %v1967 = vld [vmem:[%s2 + $0x48] sm:$0x1]
        %1968 = vmatpush.msra.mxu0 %v1961
        %1969 = vmatpush.msra.mxu0 %v1958
        %1970 = vmatpush.msra.mxu0 %v1955
        %1971 = vmatpush.msra.mxu0 %v1952
        %1972 = vmatpush.msra.mxu0 %v1949
        %1973 = vmatpush.msra.mxu0 %v1946
        %1974 = vmatpush.msra.mxu0 %v1943
        %1975 = vmatpush.msra.mxu0 %v1940
        %1976 = vmatpush.msra.mxu0 %v1937
        %1977 = vmatpush.msra.mxu0 %v1934
        %1978 = vmatpush.msra.mxu0 %v1931
        %1979 = vmatpush.msra.mxu0 %v1928
        %1980 = vmatpush.msra.mxu0 %v1925
        %1981 = vmatpush.msra.mxu0 %v1922
        %1982 = vmatpush.msra.mxu0 %v1919
        %1983 = vmatpush.msra.mxu0 %v1916
        %1984 = vmatmul.f32.gmra.mxu0 %v1785
        %v1985 = vpop.f32.mrf.mxu0
        %v1986 = vadd.f32 0.0, %v1985
        %1987 = vmatmul.f32.gmra.mxu0 %v1786
        %v1988 = vpop.f32.mrf.mxu0
        %v1989 = vadd.f32 0.0, %v1988
        %1990 = vmatmul.f32.gmra.mxu0 %v1787
        %v1991 = vpop.f32.mrf.mxu0
        %v1992 = vadd.f32 0.0, %v1991
        %1993 = vmatmul.f32.gmra.mxu0 %v1788
        %v1994 = vpop.f32.mrf.mxu0
        %v1995 = vadd.f32 0.0, %v1994
        %1996 = vmatmul.f32.gmra.mxu0 %v1789
        %v1997 = vpop.f32.mrf.mxu0
        %v1998 = vadd.f32 0.0, %v1997
        %1999 = vmatmul.f32.gmra.mxu0 %v1790
        %v2000 = vpop.f32.mrf.mxu0
        %v2001 = vadd.f32 0.0, %v2000
        %2002 = vmatmul.f32.gmra.mxu0 %v1791
        %v2003 = vpop.f32.mrf.mxu0
        %v2004 = vadd.f32 0.0, %v2003
        %2005 = vmatmul.f32.gmra.mxu0 %v1792
        %v2006 = vpop.f32.mrf.mxu0
        %v2007 = vadd.f32 0.0, %v2006
        %2008 = vmatmul.f32.gmra.mxu0 %v1793
        %v2009 = vpop.f32.mrf.mxu0
        %v2010 = vadd.f32 0.0, %v2009
        %2011 = vmatmul.f32.gmra.mxu0 %v1794
        %v2012 = vpop.f32.mrf.mxu0
        %v2013 = vadd.f32 0.0, %v2012
        %2014 = vmatmul.f32.gmra.mxu0 %v1795
        %v2015 = vpop.f32.mrf.mxu0
        %v2016 = vadd.f32 0.0, %v2015
        %2017 = vmatmul.f32.gmra.mxu0 %v1796
        %v2018 = vpop.f32.mrf.mxu0
        %v2019 = vadd.f32 0.0, %v2018
        %2020 = vmatmul.f32.gmra.mxu0 %v1797
        %v2021 = vpop.f32.mrf.mxu0
        %v2022 = vadd.f32 0.0, %v2021
        %2023 = vmatmul.f32.gmra.mxu0 %v1798
        %v2024 = vpop.f32.mrf.mxu0
        %v2025 = vadd.f32 0.0, %v2024
        %2026 = vmatmul.f32.gmra.mxu0 %v1799
        %v2027 = vpop.f32.mrf.mxu0
        %v2028 = vadd.f32 0.0, %v2027
        %2029 = vmatmul.f32.gmra.mxu0 %v1800
        %v2030 = vpop.f32.mrf.mxu0
        %v2031 = vadd.f32 0.0, %v2030
        %2032 = vdwg.mxu0
        %v2033 = vmul.f32 %v1623, %v1986
        %v2034 = vmul.f32 %v1633, %v1989
        %v2035 = vmul.f32 %v1643, %v1992
        %v2036 = vmul.f32 %v1653, %v1995
        %v2037 = vmul.f32 %v1663, %v1998
        %v2038 = vmul.f32 %v1673, %v2001
        %v2039 = vmul.f32 %v1683, %v2004
        %v2040 = vmul.f32 %v1693, %v2007
        %v2041 = vmul.f32 %v1703, %v2010
        %v2042 = vmul.f32 %v1713, %v2013
        %v2043 = vmul.f32 %v1723, %v2016
        %v2044 = vmul.f32 %v1733, %v2019
        %v2045 = vmul.f32 %v1743, %v2022
        %v2046 = vmul.f32 %v1753, %v2025
        %v2047 = vmul.f32 %v1763, %v2028
        %v2048 = vmul.f32 %v1773, %v2031
        %v2049 = vperm.slane %v1967, 0
        %v2051 = vsel %vm949, %v2033, 0
        %v2054 = vsel %vm949, %v2034, 0
        %v2057 = vsel %vm949, %v2035, 0
        %v2060 = vsel %vm949, %v2036, 0
        %v2063 = vsel %vm949, %v2037, 0
        %v2066 = vsel %vm949, %v2038, 0
        %v2069 = vsel %vm949, %v2039, 0
        %v2072 = vsel %vm949, %v2040, 0
        %v2075 = vsel %vm949, %v2041, 0
        %v2078 = vsel %vm949, %v2042, 0
        %v2081 = vsel %vm949, %v2043, 0
        %v2084 = vsel %vm949, %v2044, 0
        %v2087 = vsel %vm949, %v2045, 0
        %v2090 = vsel %vm949, %v2046, 0
        %v2093 = vsel %vm949, %v2047, 0
        %v2096 = vsel %vm949, %v2048, 0
        %2098 = vmatpush.msra.mxu0 0.0
        %2099 = vmatpush.msra.mxu0 0.0
        %2100 = vmatpush.msra.mxu0 0.0
        %2101 = vmatpush.msra.mxu0 0.0
        %2102 = vmatpush.msra.mxu0 0.0
        %2103 = vmatpush.msra.mxu0 0.0
        %2104 = vmatpush.msra.mxu0 0.0
        %2105 = vmatpush.msra.mxu0 0.0
        %2106 = vmatpush.msra.mxu0 0.0
        %2107 = vmatpush.msra.mxu0 0.0
        %2108 = vmatpush.msra.mxu0 0.0
        %2109 = vmatpush.msra.mxu0 0.0
        %2110 = vmatpush.msra.mxu0 %v1966
        %2111 = vmatpush.msra.mxu0 %v1965
        %2112 = vmatpush.msra.mxu0 %v1964
        %2113 = vmatpush.msra.mxu0 %v1963
        %2114 = vmatmul.f32.gmra.mxu0 %v2051
        %v2115 = vpop.f32.mrf.mxu0
        %v2116 = vadd.f32 %v2049, %v2115
        %2117 = vmatmul.f32.gmra.mxu0 %v2054
        %v2118 = vpop.f32.mrf.mxu0
        %v2119 = vadd.f32 %v2049, %v2118
        %2120 = vmatmul.f32.gmra.mxu0 %v2057
        %v2121 = vpop.f32.mrf.mxu0
        %v2122 = vadd.f32 %v2049, %v2121
        %2123 = vmatmul.f32.gmra.mxu0 %v2060
        %v2124 = vpop.f32.mrf.mxu0
        %v2125 = vadd.f32 %v2049, %v2124
        %2126 = vmatmul.f32.gmra.mxu0 %v2063
        %v2127 = vpop.f32.mrf.mxu0
        %v2128 = vadd.f32 %v2049, %v2127
        %2129 = vmatmul.f32.gmra.mxu0 %v2066
        %v2130 = vpop.f32.mrf.mxu0
        %v2131 = vadd.f32 %v2049, %v2130
        %2132 = vmatmul.f32.gmra.mxu0 %v2069
        %v2133 = vpop.f32.mrf.mxu0
        %v2134 = vadd.f32 %v2049, %v2133
        %2135 = vmatmul.f32.gmra.mxu0 %v2072
        %v2136 = vpop.f32.mrf.mxu0
        %v2137 = vadd.f32 %v2049, %v2136
        %2138 = vmatmul.f32.gmra.mxu0 %v2075
        %v2139 = vpop.f32.mrf.mxu0
        %v2140 = vadd.f32 %v2049, %v2139
        %2141 = vmatmul.f32.gmra.mxu0 %v2078
        %v2142 = vpop.f32.mrf.mxu0
        %v2143 = vadd.f32 %v2049, %v2142
        %2144 = vmatmul.f32.gmra.mxu0 %v2081
        %v2145 = vpop.f32.mrf.mxu0
        %v2146 = vadd.f32 %v2049, %v2145
        %2147 = vmatmul.f32.gmra.mxu0 %v2084
        %v2148 = vpop.f32.mrf.mxu0
        %v2149 = vadd.f32 %v2049, %v2148
        %2150 = vmatmul.f32.gmra.mxu0 %v2087
        %v2151 = vpop.f32.mrf.mxu0
        %v2152 = vadd.f32 %v2049, %v2151
        %2153 = vmatmul.f32.gmra.mxu0 %v2090
        %v2154 = vpop.f32.mrf.mxu0
        %v2155 = vadd.f32 %v2049, %v2154
        %2156 = vmatmul.f32.gmra.mxu0 %v2093
        %v2157 = vpop.f32.mrf.mxu0
        %v2158 = vadd.f32 %v2049, %v2157
        %2159 = vmatmul.f32.gmra.mxu0 %v2096
        %v2160 = vpop.f32.mrf.mxu0
        %v2161 = vadd.f32 %v2049, %v2160
        %2162 = vdwg.mxu0
        %v2163 = vld [vmem:[%s2 + $0x28] sm:$0xff]
        %v2164 = vld [vmem:[%s2 + $0x30] sm:$0xff]
        %v2165 = vld [vmem:[%s2 + $0x38] sm:$0xff]
        %v2166 = vld [vmem:[%s2 + $0x40] sm:$0xff]
        %v2167 = vld [vmem:[%s2 + $0x49] sm:$0x1]
        %2168 = vmatpush.msra.mxu0 %v2161
        %2169 = vmatpush.msra.mxu0 %v2158
        %2170 = vmatpush.msra.mxu0 %v2155
        %2171 = vmatpush.msra.mxu0 %v2152
        %2172 = vmatpush.msra.mxu0 %v2149
        %2173 = vmatpush.msra.mxu0 %v2146
        %2174 = vmatpush.msra.mxu0 %v2143
        %2175 = vmatpush.msra.mxu0 %v2140
        %2176 = vmatpush.msra.mxu0 %v2137
        %2177 = vmatpush.msra.mxu0 %v2134
        %2178 = vmatpush.msra.mxu0 %v2131
        %2179 = vmatpush.msra.mxu0 %v2128
        %2180 = vmatpush.msra.mxu0 %v2125
        %2181 = vmatpush.msra.mxu0 %v2122
        %2182 = vmatpush.msra.mxu0 %v2119
        %2183 = vmatpush.msra.mxu0 %v2116
        %2184 = vmatmul.f32.gmra.mxu0 %v1785
        %v2185 = vpop.f32.mrf.mxu0
        %v2186 = vadd.f32 0.0, %v2185
        %2187 = vmatmul.f32.gmra.mxu0 %v1786
        %v2188 = vpop.f32.mrf.mxu0
        %v2189 = vadd.f32 0.0, %v2188
        %2190 = vmatmul.f32.gmra.mxu0 %v1787
        %v2191 = vpop.f32.mrf.mxu0
        %v2192 = vadd.f32 0.0, %v2191
        %2193 = vmatmul.f32.gmra.mxu0 %v1788
        %v2194 = vpop.f32.mrf.mxu0
        %v2195 = vadd.f32 0.0, %v2194
        %2196 = vmatmul.f32.gmra.mxu0 %v1789
        %v2197 = vpop.f32.mrf.mxu0
        %v2198 = vadd.f32 0.0, %v2197
        %2199 = vmatmul.f32.gmra.mxu0 %v1790
        %v2200 = vpop.f32.mrf.mxu0
        %v2201 = vadd.f32 0.0, %v2200
        %2202 = vmatmul.f32.gmra.mxu0 %v1791
        %v2203 = vpop.f32.mrf.mxu0
        %v2204 = vadd.f32 0.0, %v2203
        %2205 = vmatmul.f32.gmra.mxu0 %v1792
        %v2206 = vpop.f32.mrf.mxu0
        %v2207 = vadd.f32 0.0, %v2206
        %2208 = vmatmul.f32.gmra.mxu0 %v1793
        %v2209 = vpop.f32.mrf.mxu0
        %v2210 = vadd.f32 0.0, %v2209
        %2211 = vmatmul.f32.gmra.mxu0 %v1794
        %v2212 = vpop.f32.mrf.mxu0
        %v2213 = vadd.f32 0.0, %v2212
        %2214 = vmatmul.f32.gmra.mxu0 %v1795
        %v2215 = vpop.f32.mrf.mxu0
        %v2216 = vadd.f32 0.0, %v2215
        %2217 = vmatmul.f32.gmra.mxu0 %v1796
        %v2218 = vpop.f32.mrf.mxu0
        %v2219 = vadd.f32 0.0, %v2218
        %2220 = vmatmul.f32.gmra.mxu0 %v1797
        %v2221 = vpop.f32.mrf.mxu0
        %v2222 = vadd.f32 0.0, %v2221
        %2223 = vmatmul.f32.gmra.mxu0 %v1798
        %v2224 = vpop.f32.mrf.mxu0
        %v2225 = vadd.f32 0.0, %v2224
        %2226 = vmatmul.f32.gmra.mxu0 %v1799
        %v2227 = vpop.f32.mrf.mxu0
        %v2228 = vadd.f32 0.0, %v2227
        %2229 = vmatmul.f32.gmra.mxu0 %v1800
        %v2230 = vpop.f32.mrf.mxu0
        %v2231 = vadd.f32 0.0, %v2230
        %2232 = vdwg.mxu0
        %v2233 = vmul.f32 %v1623, %v2186
        %v2234 = vmul.f32 %v1633, %v2189
        %v2235 = vmul.f32 %v1643, %v2192
        %v2236 = vmul.f32 %v1653, %v2195
        %v2237 = vmul.f32 %v1663, %v2198
        %v2238 = vmul.f32 %v1673, %v2201
        %v2239 = vmul.f32 %v1683, %v2204
        %v2240 = vmul.f32 %v1693, %v2207
        %v2241 = vmul.f32 %v1703, %v2210
        %v2242 = vmul.f32 %v1713, %v2213
        %v2243 = vmul.f32 %v1723, %v2216
        %v2244 = vmul.f32 %v1733, %v2219
        %v2245 = vmul.f32 %v1743, %v2222
        %v2246 = vmul.f32 %v1753, %v2225
        %v2247 = vmul.f32 %v1763, %v2228
        %v2248 = vmul.f32 %v1773, %v2231
        %v2249 = vperm.slane %v2167, 0
        %v2251 = vsel %vm949, %v2233, 0
        %v2254 = vsel %vm949, %v2234, 0
        %v2257 = vsel %vm949, %v2235, 0
        %v2260 = vsel %vm949, %v2236, 0
        %v2263 = vsel %vm949, %v2237, 0
        %v2266 = vsel %vm949, %v2238, 0
        %v2269 = vsel %vm949, %v2239, 0
        %v2272 = vsel %vm949, %v2240, 0
        %v2275 = vsel %vm949, %v2241, 0
        %v2278 = vsel %vm949, %v2242, 0
        %v2281 = vsel %vm949, %v2243, 0
        %v2284 = vsel %vm949, %v2244, 0
        %v2287 = vsel %vm949, %v2245, 0
        %v2290 = vsel %vm949, %v2246, 0
        %v2293 = vsel %vm949, %v2247, 0
        %v2296 = vsel %vm949, %v2248, 0
        %2298 = vmatpush.msra.mxu0 0.0
        %2299 = vmatpush.msra.mxu0 0.0
        %2300 = vmatpush.msra.mxu0 0.0
        %2301 = vmatpush.msra.mxu0 0.0
        %2302 = vmatpush.msra.mxu0 0.0
        %2303 = vmatpush.msra.mxu0 0.0
        %2304 = vmatpush.msra.mxu0 0.0
        %2305 = vmatpush.msra.mxu0 0.0
        %2306 = vmatpush.msra.mxu0 0.0
        %2307 = vmatpush.msra.mxu0 0.0
        %2308 = vmatpush.msra.mxu0 0.0
        %2309 = vmatpush.msra.mxu0 0.0
        %2310 = vmatpush.msra.mxu0 %v2166
        %2311 = vmatpush.msra.mxu0 %v2165
        %2312 = vmatpush.msra.mxu0 %v2164
        %2313 = vmatpush.msra.mxu0 %v2163
        %2314 = vmatmul.f32.gmra.mxu0 %v2251
        %v2315 = vpop.f32.mrf.mxu0
        %v2316 = vadd.f32 %v2249, %v2315
        %2317 = vmatmul.f32.gmra.mxu0 %v2254
        %v2318 = vpop.f32.mrf.mxu0
        %v2319 = vadd.f32 %v2249, %v2318
        %2320 = vmatmul.f32.gmra.mxu0 %v2257
        %v2321 = vpop.f32.mrf.mxu0
        %v2322 = vadd.f32 %v2249, %v2321
        %2323 = vmatmul.f32.gmra.mxu0 %v2260
        %v2324 = vpop.f32.mrf.mxu0
        %v2325 = vadd.f32 %v2249, %v2324
        %2326 = vmatmul.f32.gmra.mxu0 %v2263
        %v2327 = vpop.f32.mrf.mxu0
        %v2328 = vadd.f32 %v2249, %v2327
        %2329 = vmatmul.f32.gmra.mxu0 %v2266
        %v2330 = vpop.f32.mrf.mxu0
        %v2331 = vadd.f32 %v2249, %v2330
        %2332 = vmatmul.f32.gmra.mxu0 %v2269
        %v2333 = vpop.f32.mrf.mxu0
        %v2334 = vadd.f32 %v2249, %v2333
        %2335 = vmatmul.f32.gmra.mxu0 %v2272
        %v2336 = vpop.f32.mrf.mxu0
        %v2337 = vadd.f32 %v2249, %v2336
        %2338 = vmatmul.f32.gmra.mxu0 %v2275
        %v2339 = vpop.f32.mrf.mxu0
        %v2340 = vadd.f32 %v2249, %v2339
        %2341 = vmatmul.f32.gmra.mxu0 %v2278
        %v2342 = vpop.f32.mrf.mxu0
        %v2343 = vadd.f32 %v2249, %v2342
        %2344 = vmatmul.f32.gmra.mxu0 %v2281
        %v2345 = vpop.f32.mrf.mxu0
        %v2346 = vadd.f32 %v2249, %v2345
        %2347 = vmatmul.f32.gmra.mxu0 %v2284
        %v2348 = vpop.f32.mrf.mxu0
        %v2349 = vadd.f32 %v2249, %v2348
        %2350 = vmatmul.f32.gmra.mxu0 %v2287
        %v2351 = vpop.f32.mrf.mxu0
        %v2352 = vadd.f32 %v2249, %v2351
        %2353 = vmatmul.f32.gmra.mxu0 %v2290
        %v2354 = vpop.f32.mrf.mxu0
        %v2355 = vadd.f32 %v2249, %v2354
        %2356 = vmatmul.f32.gmra.mxu0 %v2293
        %v2357 = vpop.f32.mrf.mxu0
        %v2358 = vadd.f32 %v2249, %v2357
        %2359 = vmatmul.f32.gmra.mxu0 %v2296
        %v2360 = vpop.f32.mrf.mxu0
        %v2361 = vadd.f32 %v2249, %v2360
        %2362 = vdwg.mxu0
        %2363 = vmatpush.msra.mxu0 %v2361
        %2364 = vmatpush.msra.mxu0 %v2358
        %2365 = vmatpush.msra.mxu0 %v2355
        %2366 = vmatpush.msra.mxu0 %v2352
        %2367 = vmatpush.msra.mxu0 %v2349
        %2368 = vmatpush.msra.mxu0 %v2346
        %2369 = vmatpush.msra.mxu0 %v2343
        %2370 = vmatpush.msra.mxu0 %v2340
        %2371 = vmatpush.msra.mxu0 %v2337
        %2372 = vmatpush.msra.mxu0 %v2334
        %2373 = vmatpush.msra.mxu0 %v2331
        %2374 = vmatpush.msra.mxu0 %v2328
        %2375 = vmatpush.msra.mxu0 %v2325
        %2376 = vmatpush.msra.mxu0 %v2322
        %2377 = vmatpush.msra.mxu0 %v2319
        %2378 = vmatpush.msra.mxu0 %v2316
        %2379 = vmatmul.f32.gmra.mxu0 %v227
        %v2380 = vpop.f32.mrf.mxu0
        %v2381 = vadd.f32 0.0, %v2380
        %2382 = vdwg.mxu0
        %v2384 = vsel %vm949, %v2381, 0
        %2386 = vmatpush.msra.mxu0 0.0
        %2387 = vmatpush.msra.mxu0 0.0
        %2388 = vmatpush.msra.mxu0 0.0
        %2389 = vmatpush.msra.mxu0 0.0
        %2390 = vmatpush.msra.mxu0 0.0
        %2391 = vmatpush.msra.mxu0 0.0
        %2392 = vmatpush.msra.mxu0 0.0
        %2393 = vmatpush.msra.mxu0 0.0
        %2394 = vmatpush.msra.mxu0 0.0
        %2395 = vmatpush.msra.mxu0 0.0
        %2396 = vmatpush.msra.mxu0 0.0
        %2397 = vmatpush.msra.mxu0 0.0
        %2398 = vmatpush.msra.mxu0 %v250
        %2399 = vmatpush.msra.mxu0 %v249
        %2400 = vmatpush.msra.mxu0 %v248
        %2401 = vmatpush.msra.mxu0 %v247
        %2402 = vmatmul.f32.gmra.mxu0 %v2384
        %v2403 = vpop.f32.mrf.mxu0
        %v2404 = vadd.f32 %v1283, %v2403
        %2405 = vdwg.mxu0
        %v2406 = vmax.f32 %v2404, 0.0
        %v2408 = vsel %vm949, %v2406, 0
        %2410 = vmatpush.msra.mxu0 0.0
        %2411 = vmatpush.msra.mxu0 0.0
        %2412 = vmatpush.msra.mxu0 0.0
        %2413 = vmatpush.msra.mxu0 0.0
        %2414 = vmatpush.msra.mxu0 0.0
        %2415 = vmatpush.msra.mxu0 0.0
        %2416 = vmatpush.msra.mxu0 0.0
        %2417 = vmatpush.msra.mxu0 0.0
        %2418 = vmatpush.msra.mxu0 0.0
        %2419 = vmatpush.msra.mxu0 0.0
        %2420 = vmatpush.msra.mxu0 0.0
        %2421 = vmatpush.msra.mxu0 0.0
        %2422 = vmatpush.msra.mxu0 %v255
        %2423 = vmatpush.msra.mxu0 %v254
        %2424 = vmatpush.msra.mxu0 %v253
        %2425 = vmatpush.msra.mxu0 %v252
        %2426 = vmatmul.f32.gmra.mxu0 %v2408
        %v2427 = vpop.f32.mrf.mxu0
        %v2428 = vadd.f32 %v1308, %v2427
        %2429 = vdwg.mxu0
        %v2430 = vmax.f32 %v2428, 0.0
        %v2432 = vsel %vm949, %v2430, 0
        %2434 = vmatpush.msra.mxu0 0.0
        %2435 = vmatpush.msra.mxu0 0.0
        %2436 = vmatpush.msra.mxu0 0.0
        %2437 = vmatpush.msra.mxu0 0.0
        %2438 = vmatpush.msra.mxu0 0.0
        %2439 = vmatpush.msra.mxu0 0.0
        %2440 = vmatpush.msra.mxu0 0.0
        %2441 = vmatpush.msra.mxu0 0.0
        %2442 = vmatpush.msra.mxu0 0.0
        %2443 = vmatpush.msra.mxu0 0.0
        %2444 = vmatpush.msra.mxu0 0.0
        %2445 = vmatpush.msra.mxu0 0.0
        %2446 = vmatpush.msra.mxu0 %v260
        %2447 = vmatpush.msra.mxu0 %v259
        %2448 = vmatpush.msra.mxu0 %v258
        %2449 = vmatpush.msra.mxu0 %v257
        %2450 = vmatmul.f32.gmra.mxu0 %v2432
        %v2451 = vpop.f32.mrf.mxu0
        %v2452 = vadd.f32 %v1333, %v2451
        %2453 = vdwg.mxu0
        %2455 = vset.pattern.permute.xlu0 0
        %2456 = vperm.xlu0 %2455, %v2452
        %v2457 = vpop.permute.xlu0 %2456
        %2459 = vst [vmem:[%s211 + $0x8] sm:$0xff] %v2457
        %s2460 = scalar_lea.vmem %s217, 64
        %v2461 = vld [vmem:[%s2460] sm:$0xff]
        %v2462 = vld [vmem:[%s2460 + $0x8] sm:$0xff]
        %v2463 = vld [vmem:[%s2460 + $0x10] sm:$0xff]
        %v2464 = vld [vmem:[%s2460 + $0x18] sm:$0xff]
        %v2465 = vunpack.c.0.s8 %v2461
        %v2466 = vunpack.c.1.s8 %v2461
        %v2467 = vunpack.c.2.s8 %v2461
        %v2468 = vunpack.c.3.s8 %v2461
        %v2469 = vunpack.c.0.s8 %v2462
        %v2470 = vunpack.c.1.s8 %v2462
        %v2471 = vunpack.c.2.s8 %v2462
        %v2472 = vunpack.c.3.s8 %v2462
        %v2473 = vunpack.c.0.s8 %v2463
        %v2474 = vunpack.c.1.s8 %v2463
        %v2475 = vunpack.c.2.s8 %v2463
        %v2476 = vunpack.c.3.s8 %v2463
        %v2477 = vunpack.c.0.s8 %v2464
        %v2478 = vunpack.c.1.s8 %v2464
        %v2479 = vunpack.c.2.s8 %v2464
        %v2480 = vunpack.c.3.s8 %v2464
        %v2481 = vcvt.s32.f32 %v2465
        %v2482 = vcvt.s32.f32 %v2466
        %v2483 = vcvt.s32.f32 %v2467
        %v2484 = vcvt.s32.f32 %v2468
        %v2485 = vcvt.s32.f32 %v2469
        %v2486 = vcvt.s32.f32 %v2470
        %v2487 = vcvt.s32.f32 %v2471
        %v2488 = vcvt.s32.f32 %v2472
        %v2489 = vcvt.s32.f32 %v2473
        %v2490 = vcvt.s32.f32 %v2474
        %v2491 = vcvt.s32.f32 %v2475
        %v2492 = vcvt.s32.f32 %v2476
        %v2493 = vcvt.s32.f32 %v2477
        %v2494 = vcvt.s32.f32 %v2478
        %v2495 = vcvt.s32.f32 %v2479
        %v2496 = vcvt.s32.f32 %v2480
        %v2498 = vsel %vm298, %v2481, 0
        %v2501 = vsel %vm298, %v2482, 0
        %v2504 = vsel %vm298, %v2483, 0
        %v2507 = vsel %vm298, %v2484, 0
        %v2510 = vsel %vm298, %v2485, 0
        %v2513 = vsel %vm298, %v2486, 0
        %v2516 = vsel %vm298, %v2487, 0
        %v2519 = vsel %vm298, %v2488, 0
        %v2522 = vsel %vm298, %v2489, 0
        %v2525 = vsel %vm298, %v2490, 0
        %v2528 = vsel %vm298, %v2491, 0
        %v2531 = vsel %vm298, %v2492, 0
        %v2534 = vsel %vm298, %v2493, 0
        %v2537 = vsel %vm298, %v2494, 0
        %v2540 = vsel %vm298, %v2495, 0
        %v2543 = vsel %vm298, %v2496, 0
        %2545 = vmatpush.msra.mxu0 0.0
        %2546 = vmatpush.msra.mxu0 0.0
        %2547 = vmatpush.msra.mxu0 0.0
        %2548 = vmatpush.msra.mxu0 0.0
        %2549 = vmatpush.msra.mxu0 0.0
        %2550 = vmatpush.msra.mxu0 0.0
        %2551 = vmatpush.msra.mxu0 0.0
        %2552 = vmatpush.msra.mxu0 0.0
        %2553 = vmatpush.msra.mxu0 0.0
        %2554 = vmatpush.msra.mxu0 0.0
        %2555 = vmatpush.msra.mxu0 0.0
        %2556 = vmatpush.msra.mxu0 0.0
        %2557 = vmatpush.msra.mxu0 0.0
        %2558 = vmatpush.msra.mxu0 0.0
        %2559 = vmatpush.msra.mxu0 %v229
        %2560 = vmatpush.msra.mxu0 %v228
        %2561 = vmatmul.f32.gmra.mxu0 %v2498
        %v2562 = vpop.f32.mrf.mxu0
        %v2563 = vadd.f32 0.0, %v2562
        %2564 = vmatmul.f32.gmra.mxu0 %v2501
        %v2565 = vpop.f32.mrf.mxu0
        %v2566 = vadd.f32 0.0, %v2565
        %2567 = vmatmul.f32.gmra.mxu0 %v2504
        %v2568 = vpop.f32.mrf.mxu0
        %v2569 = vadd.f32 0.0, %v2568
        %2570 = vmatmul.f32.gmra.mxu0 %v2507
        %v2571 = vpop.f32.mrf.mxu0
        %v2572 = vadd.f32 0.0, %v2571
        %2573 = vmatmul.f32.gmra.mxu0 %v2510
        %v2574 = vpop.f32.mrf.mxu0
        %v2575 = vadd.f32 0.0, %v2574
        %2576 = vmatmul.f32.gmra.mxu0 %v2513
        %v2577 = vpop.f32.mrf.mxu0
        %v2578 = vadd.f32 0.0, %v2577
        %2579 = vmatmul.f32.gmra.mxu0 %v2516
        %v2580 = vpop.f32.mrf.mxu0
        %v2581 = vadd.f32 0.0, %v2580
        %2582 = vmatmul.f32.gmra.mxu0 %v2519
        %v2583 = vpop.f32.mrf.mxu0
        %v2584 = vadd.f32 0.0, %v2583
        %2585 = vmatmul.f32.gmra.mxu0 %v2522
        %v2586 = vpop.f32.mrf.mxu0
        %v2587 = vadd.f32 0.0, %v2586
        %2588 = vmatmul.f32.gmra.mxu0 %v2525
        %v2589 = vpop.f32.mrf.mxu0
        %v2590 = vadd.f32 0.0, %v2589
        %2591 = vmatmul.f32.gmra.mxu0 %v2528
        %v2592 = vpop.f32.mrf.mxu0
        %v2593 = vadd.f32 0.0, %v2592
        %2594 = vmatmul.f32.gmra.mxu0 %v2531
        %v2595 = vpop.f32.mrf.mxu0
        %v2596 = vadd.f32 0.0, %v2595
        %2597 = vmatmul.f32.gmra.mxu0 %v2534
        %v2598 = vpop.f32.mrf.mxu0
        %v2599 = vadd.f32 0.0, %v2598
        %2600 = vmatmul.f32.gmra.mxu0 %v2537
        %v2601 = vpop.f32.mrf.mxu0
        %v2602 = vadd.f32 0.0, %v2601
        %2603 = vmatmul.f32.gmra.mxu0 %v2540
        %v2604 = vpop.f32.mrf.mxu0
        %v2605 = vadd.f32 0.0, %v2604
        %2606 = vmatmul.f32.gmra.mxu0 %v2543
        %v2607 = vpop.f32.mrf.mxu0
        %v2608 = vadd.f32 0.0, %v2607
        %2609 = vdwg.mxu0
        %v2610 = vmul.f32 %v2563, %v230
        %v2611 = vmul.f32 %v2566, %v231
        %v2612 = vmul.f32 %v2569, %v232
        %v2613 = vmul.f32 %v2572, %v233
        %v2614 = vmul.f32 %v2575, %v234
        %v2615 = vmul.f32 %v2578, %v235
        %v2616 = vmul.f32 %v2581, %v236
        %v2617 = vmul.f32 %v2584, %v237
        %v2618 = vmul.f32 %v2587, %v238
        %v2619 = vmul.f32 %v2590, %v239
        %v2620 = vmul.f32 %v2593, %v240
        %v2621 = vmul.f32 %v2596, %v241
        %v2622 = vmul.f32 %v2599, %v242
        %v2623 = vmul.f32 %v2602, %v243
        %v2624 = vmul.f32 %v2605, %v244
        %v2625 = vmul.f32 %v2608, %v245
        %v2626 = vsel %vm298, %v2481, 0.0
        %2627 = vadd.xlane.f32.xlu0 %v2626
        %v2628 = vpop.xlane.xlu0 %2627
        %v2629 = vsel %vm298, %v2482, 0.0
        %2630 = vadd.xlane.f32.xlu0 %v2629
        %v2631 = vpop.xlane.xlu0 %2630
        %v2632 = vsel %vm298, %v2483, 0.0
        %2633 = vadd.xlane.f32.xlu0 %v2632
        %v2634 = vpop.xlane.xlu0 %2633
        %v2635 = vsel %vm298, %v2484, 0.0
        %2636 = vadd.xlane.f32.xlu0 %v2635
        %v2637 = vpop.xlane.xlu0 %2636
        %v2638 = vsel %vm298, %v2485, 0.0
        %2639 = vadd.xlane.f32.xlu0 %v2638
        %v2640 = vpop.xlane.xlu0 %2639
        %v2641 = vsel %vm298, %v2486, 0.0
        %2642 = vadd.xlane.f32.xlu0 %v2641
        %v2643 = vpop.xlane.xlu0 %2642
        %v2644 = vsel %vm298, %v2487, 0.0
        %2645 = vadd.xlane.f32.xlu0 %v2644
        %v2646 = vpop.xlane.xlu0 %2645
        %v2647 = vsel %vm298, %v2488, 0.0
        %2648 = vadd.xlane.f32.xlu0 %v2647
        %v2649 = vpop.xlane.xlu0 %2648
        %v2650 = vsel %vm298, %v2489, 0.0
        %2651 = vadd.xlane.f32.xlu0 %v2650
        %v2652 = vpop.xlane.xlu0 %2651
        %v2653 = vsel %vm298, %v2490, 0.0
        %2654 = vadd.xlane.f32.xlu0 %v2653
        %v2655 = vpop.xlane.xlu0 %2654
        %v2656 = vsel %vm298, %v2491, 0.0
        %2657 = vadd.xlane.f32.xlu0 %v2656
        %v2658 = vpop.xlane.xlu0 %2657
        %v2659 = vsel %vm298, %v2492, 0.0
        %2660 = vadd.xlane.f32.xlu0 %v2659
        %v2661 = vpop.xlane.xlu0 %2660
        %v2662 = vsel %vm298, %v2493, 0.0
        %2663 = vadd.xlane.f32.xlu0 %v2662
        %v2664 = vpop.xlane.xlu0 %2663
        %v2665 = vsel %vm298, %v2494, 0.0
        %2666 = vadd.xlane.f32.xlu0 %v2665
        %v2667 = vpop.xlane.xlu0 %2666
        %v2668 = vsel %vm298, %v2495, 0.0
        %2669 = vadd.xlane.f32.xlu0 %v2668
        %v2670 = vpop.xlane.xlu0 %2669
        %v2671 = vsel %vm298, %v2496, 0.0
        %2672 = vadd.xlane.f32.xlu0 %v2671
        %v2673 = vpop.xlane.xlu0 %2672
        %v2674 = vadd.f32 %v2610, %v2611
        %v2675 = vadd.f32 %v2674, %v2612
        %v2676 = vadd.f32 %v2675, %v2613
        %v2677 = vadd.f32 %v2676, %v2614
        %v2678 = vadd.f32 %v2677, %v2615
        %v2679 = vadd.f32 %v2678, %v2616
        %v2680 = vadd.f32 %v2679, %v2617
        %v2681 = vadd.f32 %v2680, %v2618
        %v2682 = vadd.f32 %v2681, %v2619
        %v2683 = vadd.f32 %v2682, %v2620
        %v2684 = vadd.f32 %v2683, %v2621
        %v2685 = vadd.f32 %v2684, %v2622
        %v2686 = vadd.f32 %v2685, %v2623
        %v2687 = vadd.f32 %v2686, %v2624
        %v2688 = vadd.f32 %v2687, %v2625
        %v2689 = vrot.slane %v2688, 4
        %v2690 = vadd.f32 %v2688, %v2689
        %v2691 = vrot.slane %v2690, 2
        %v2692 = vadd.f32 %v2690, %v2691
        %v2693 = vrot.slane %v2692, 1
        %v2694 = vadd.f32 %v2692, %v2693
        %v2695 = vmax.f32 %v2628, 1.0
        %v2696 = vmax.f32 %v2631, 1.0
        %v2697 = vmax.f32 %v2634, 1.0
        %v2698 = vmax.f32 %v2637, 1.0
        %v2699 = vmax.f32 %v2640, 1.0
        %v2700 = vmax.f32 %v2643, 1.0
        %v2701 = vmax.f32 %v2646, 1.0
        %v2702 = vmax.f32 %v2649, 1.0
        %v2703 = vmax.f32 %v2652, 1.0
        %v2704 = vmax.f32 %v2655, 1.0
        %v2705 = vmax.f32 %v2658, 1.0
        %v2706 = vmax.f32 %v2661, 1.0
        %v2707 = vmax.f32 %v2664, 1.0
        %v2708 = vmax.f32 %v2667, 1.0
        %v2709 = vmax.f32 %v2670, 1.0
        %v2710 = vmax.f32 %v2673, 1.0
        %v2711 = vrsqrt.pop %v2695
        %v2712 = vmul.f32 %v2711, %v2695
        %v2713 = vmul.f32 %v2712, %v2711
        %v2714 = vmul.f32 0.5, %v2713
        %v2715 = vsub.f32 1.5, %v2714
        %v2716 = vmul.f32 %v2711, %v2715
        %vm2717 = vweird.f32 %v2695
        %vm2718 = vweird.f32 %v2711
        %vm2719 = vmor %vm2717, %vm2718
        %v2720 = vsel %vm2719, %v2711, %v2716
        %v2721 = vrsqrt.pop %v2696
        %v2722 = vmul.f32 %v2721, %v2696
        %v2723 = vmul.f32 %v2722, %v2721
        %v2724 = vmul.f32 0.5, %v2723
        %v2725 = vsub.f32 1.5, %v2724
        %v2726 = vmul.f32 %v2721, %v2725
        %vm2727 = vweird.f32 %v2696
        %vm2728 = vweird.f32 %v2721
        %vm2729 = vmor %vm2727, %vm2728
        %v2730 = vsel %vm2729, %v2721, %v2726
        %v2731 = vrsqrt.pop %v2697
        %v2732 = vmul.f32 %v2731, %v2697
        %v2733 = vmul.f32 %v2732, %v2731
        %v2734 = vmul.f32 0.5, %v2733
        %v2735 = vsub.f32 1.5, %v2734
        %v2736 = vmul.f32 %v2731, %v2735
        %vm2737 = vweird.f32 %v2697
        %vm2738 = vweird.f32 %v2731
        %vm2739 = vmor %vm2737, %vm2738
        %v2740 = vsel %vm2739, %v2731, %v2736
        %v2741 = vrsqrt.pop %v2698
        %v2742 = vmul.f32 %v2741, %v2698
        %v2743 = vmul.f32 %v2742, %v2741
        %v2744 = vmul.f32 0.5, %v2743
        %v2745 = vsub.f32 1.5, %v2744
        %v2746 = vmul.f32 %v2741, %v2745
        %vm2747 = vweird.f32 %v2698
        %vm2748 = vweird.f32 %v2741
        %vm2749 = vmor %vm2747, %vm2748
        %v2750 = vsel %vm2749, %v2741, %v2746
        %v2751 = vrsqrt.pop %v2699
        %v2752 = vmul.f32 %v2751, %v2699
        %v2753 = vmul.f32 %v2752, %v2751
        %v2754 = vmul.f32 0.5, %v2753
        %v2755 = vsub.f32 1.5, %v2754
        %v2756 = vmul.f32 %v2751, %v2755
        %vm2757 = vweird.f32 %v2699
        %vm2758 = vweird.f32 %v2751
        %vm2759 = vmor %vm2757, %vm2758
        %v2760 = vsel %vm2759, %v2751, %v2756
        %v2761 = vrsqrt.pop %v2700
        %v2762 = vmul.f32 %v2761, %v2700
        %v2763 = vmul.f32 %v2762, %v2761
        %v2764 = vmul.f32 0.5, %v2763
        %v2765 = vsub.f32 1.5, %v2764
        %v2766 = vmul.f32 %v2761, %v2765
        %vm2767 = vweird.f32 %v2700
        %vm2768 = vweird.f32 %v2761
        %vm2769 = vmor %vm2767, %vm2768
        %v2770 = vsel %vm2769, %v2761, %v2766
        %v2771 = vrsqrt.pop %v2701
        %v2772 = vmul.f32 %v2771, %v2701
        %v2773 = vmul.f32 %v2772, %v2771
        %v2774 = vmul.f32 0.5, %v2773
        %v2775 = vsub.f32 1.5, %v2774
        %v2776 = vmul.f32 %v2771, %v2775
        %vm2777 = vweird.f32 %v2701
        %vm2778 = vweird.f32 %v2771
        %vm2779 = vmor %vm2777, %vm2778
        %v2780 = vsel %vm2779, %v2771, %v2776
        %v2781 = vrsqrt.pop %v2702
        %v2782 = vmul.f32 %v2781, %v2702
        %v2783 = vmul.f32 %v2782, %v2781
        %v2784 = vmul.f32 0.5, %v2783
        %v2785 = vsub.f32 1.5, %v2784
        %v2786 = vmul.f32 %v2781, %v2785
        %vm2787 = vweird.f32 %v2702
        %vm2788 = vweird.f32 %v2781
        %vm2789 = vmor %vm2787, %vm2788
        %v2790 = vsel %vm2789, %v2781, %v2786
        %v2791 = vrsqrt.pop %v2703
        %v2792 = vmul.f32 %v2791, %v2703
        %v2793 = vmul.f32 %v2792, %v2791
        %v2794 = vmul.f32 0.5, %v2793
        %v2795 = vsub.f32 1.5, %v2794
        %v2796 = vmul.f32 %v2791, %v2795
        %vm2797 = vweird.f32 %v2703
        %vm2798 = vweird.f32 %v2791
        %vm2799 = vmor %vm2797, %vm2798
        %v2800 = vsel %vm2799, %v2791, %v2796
        %v2801 = vrsqrt.pop %v2704
        %v2802 = vmul.f32 %v2801, %v2704
        %v2803 = vmul.f32 %v2802, %v2801
        %v2804 = vmul.f32 0.5, %v2803
        %v2805 = vsub.f32 1.5, %v2804
        %v2806 = vmul.f32 %v2801, %v2805
        %vm2807 = vweird.f32 %v2704
        %vm2808 = vweird.f32 %v2801
        %vm2809 = vmor %vm2807, %vm2808
        %v2810 = vsel %vm2809, %v2801, %v2806
        %v2811 = vrsqrt.pop %v2705
        %v2812 = vmul.f32 %v2811, %v2705
        %v2813 = vmul.f32 %v2812, %v2811
        %v2814 = vmul.f32 0.5, %v2813
        %v2815 = vsub.f32 1.5, %v2814
        %v2816 = vmul.f32 %v2811, %v2815
        %vm2817 = vweird.f32 %v2705
        %vm2818 = vweird.f32 %v2811
        %vm2819 = vmor %vm2817, %vm2818
        %v2820 = vsel %vm2819, %v2811, %v2816
        %v2821 = vrsqrt.pop %v2706
        %v2822 = vmul.f32 %v2821, %v2706
        %v2823 = vmul.f32 %v2822, %v2821
        %v2824 = vmul.f32 0.5, %v2823
        %v2825 = vsub.f32 1.5, %v2824
        %v2826 = vmul.f32 %v2821, %v2825
        %vm2827 = vweird.f32 %v2706
        %vm2828 = vweird.f32 %v2821
        %vm2829 = vmor %vm2827, %vm2828
        %v2830 = vsel %vm2829, %v2821, %v2826
        %v2831 = vrsqrt.pop %v2707
        %v2832 = vmul.f32 %v2831, %v2707
        %v2833 = vmul.f32 %v2832, %v2831
        %v2834 = vmul.f32 0.5, %v2833
        %v2835 = vsub.f32 1.5, %v2834
        %v2836 = vmul.f32 %v2831, %v2835
        %vm2837 = vweird.f32 %v2707
        %vm2838 = vweird.f32 %v2831
        %vm2839 = vmor %vm2837, %vm2838
        %v2840 = vsel %vm2839, %v2831, %v2836
        %v2841 = vrsqrt.pop %v2708
        %v2842 = vmul.f32 %v2841, %v2708
        %v2843 = vmul.f32 %v2842, %v2841
        %v2844 = vmul.f32 0.5, %v2843
        %v2845 = vsub.f32 1.5, %v2844
        %v2846 = vmul.f32 %v2841, %v2845
        %vm2847 = vweird.f32 %v2708
        %vm2848 = vweird.f32 %v2841
        %vm2849 = vmor %vm2847, %vm2848
        %v2850 = vsel %vm2849, %v2841, %v2846
        %v2851 = vrsqrt.pop %v2709
        %v2852 = vmul.f32 %v2851, %v2709
        %v2853 = vmul.f32 %v2852, %v2851
        %v2854 = vmul.f32 0.5, %v2853
        %v2855 = vsub.f32 1.5, %v2854
        %v2856 = vmul.f32 %v2851, %v2855
        %vm2857 = vweird.f32 %v2709
        %vm2858 = vweird.f32 %v2851
        %vm2859 = vmor %vm2857, %vm2858
        %v2860 = vsel %vm2859, %v2851, %v2856
        %v2861 = vrsqrt.pop %v2710
        %v2862 = vmul.f32 %v2861, %v2710
        %v2863 = vmul.f32 %v2862, %v2861
        %v2864 = vmul.f32 0.5, %v2863
        %v2865 = vsub.f32 1.5, %v2864
        %v2866 = vmul.f32 %v2861, %v2865
        %vm2867 = vweird.f32 %v2710
        %vm2868 = vweird.f32 %v2861
        %vm2869 = vmor %vm2867, %vm2868
        %v2870 = vsel %vm2869, %v2861, %v2866
        %v2871 = vmax.f32 %v2694, 1.0
        %v2872 = vrsqrt.pop %v2871
        %v2873 = vmul.f32 %v2872, %v2871
        %v2874 = vmul.f32 %v2873, %v2872
        %v2875 = vmul.f32 0.5, %v2874
        %v2876 = vsub.f32 1.5, %v2875
        %v2877 = vmul.f32 %v2872, %v2876
        %vm2878 = vweird.f32 %v2871
        %vm2879 = vweird.f32 %v2872
        %vm2880 = vmor %vm2878, %vm2879
        %v2881 = vsel %vm2880, %v2872, %v2877
        %v2882 = vmul.f32 %v2610, %v2881
        %v2883 = vmul.f32 %v2611, %v2881
        %v2884 = vmul.f32 %v2612, %v2881
        %v2885 = vmul.f32 %v2613, %v2881
        %v2886 = vmul.f32 %v2614, %v2881
        %v2887 = vmul.f32 %v2615, %v2881
        %v2888 = vmul.f32 %v2616, %v2881
        %v2889 = vmul.f32 %v2617, %v2881
        %v2890 = vmul.f32 %v2618, %v2881
        %v2891 = vmul.f32 %v2619, %v2881
        %v2892 = vmul.f32 %v2620, %v2881
        %v2893 = vmul.f32 %v2621, %v2881
        %v2894 = vmul.f32 %v2622, %v2881
        %v2895 = vmul.f32 %v2623, %v2881
        %v2896 = vmul.f32 %v2624, %v2881
        %v2897 = vmul.f32 %v2625, %v2881
        %s2898 = scalar_lea.vmem %s224, 64
        %v2899 = vld [vmem:[%s2898] sm:$0x3]
        %v2900 = vld [vmem:[%s2898 + $0x2] sm:$0x3]
        %v2901 = vld [vmem:[%s2898 + $0x4] sm:$0x3]
        %v2902 = vld [vmem:[%s2898 + $0x6] sm:$0x3]
        %v2903 = vld [vmem:[%s2898 + $0x8] sm:$0x3]
        %v2904 = vld [vmem:[%s2898 + $0xa] sm:$0x3]
        %v2905 = vld [vmem:[%s2898 + $0xc] sm:$0x3]
        %v2906 = vld [vmem:[%s2898 + $0xe] sm:$0x3]
        %v2907 = vld [vmem:[%s2898 + $0x10] sm:$0x3]
        %v2908 = vld [vmem:[%s2898 + $0x12] sm:$0x3]
        %v2909 = vld [vmem:[%s2898 + $0x14] sm:$0x3]
        %v2910 = vld [vmem:[%s2898 + $0x16] sm:$0x3]
        %v2911 = vld [vmem:[%s2898 + $0x18] sm:$0x3]
        %v2912 = vld [vmem:[%s2898 + $0x1a] sm:$0x3]
        %v2913 = vld [vmem:[%s2898 + $0x1c] sm:$0x3]
        %v2914 = vld [vmem:[%s2898 + $0x1e] sm:$0x3]
        %v2915 = vunpack.c.0.s8 %v2899
        %v2916 = vunpack.c.0.s8 %v2900
        %v2917 = vunpack.c.0.s8 %v2901
        %v2918 = vunpack.c.0.s8 %v2902
        %v2919 = vunpack.c.0.s8 %v2903
        %v2920 = vunpack.c.0.s8 %v2904
        %v2921 = vunpack.c.0.s8 %v2905
        %v2922 = vunpack.c.0.s8 %v2906
        %v2923 = vunpack.c.0.s8 %v2907
        %v2924 = vunpack.c.0.s8 %v2908
        %v2925 = vunpack.c.0.s8 %v2909
        %v2926 = vunpack.c.0.s8 %v2910
        %v2927 = vunpack.c.0.s8 %v2911
        %v2928 = vunpack.c.0.s8 %v2912
        %v2929 = vunpack.c.0.s8 %v2913
        %v2930 = vunpack.c.0.s8 %v2914
        %v2931 = vcvt.s32.f32 %v2915
        %v2932 = vcvt.s32.f32 %v2916
        %v2933 = vcvt.s32.f32 %v2917
        %v2934 = vcvt.s32.f32 %v2918
        %v2935 = vcvt.s32.f32 %v2919
        %v2936 = vcvt.s32.f32 %v2920
        %v2937 = vcvt.s32.f32 %v2921
        %v2938 = vcvt.s32.f32 %v2922
        %v2939 = vcvt.s32.f32 %v2923
        %v2940 = vcvt.s32.f32 %v2924
        %v2941 = vcvt.s32.f32 %v2925
        %v2942 = vcvt.s32.f32 %v2926
        %v2943 = vcvt.s32.f32 %v2927
        %v2944 = vcvt.s32.f32 %v2928
        %v2945 = vcvt.s32.f32 %v2929
        %v2946 = vcvt.s32.f32 %v2930
        %v2948 = vsel %vm748, %v2931, 0
        %v2951 = vsel %vm748, %v2932, 0
        %v2954 = vsel %vm748, %v2933, 0
        %v2957 = vsel %vm748, %v2934, 0
        %v2960 = vsel %vm748, %v2935, 0
        %v2963 = vsel %vm748, %v2936, 0
        %v2966 = vsel %vm748, %v2937, 0
        %v2969 = vsel %vm748, %v2938, 0
        %v2972 = vsel %vm748, %v2939, 0
        %v2975 = vsel %vm748, %v2940, 0
        %v2978 = vsel %vm748, %v2941, 0
        %v2981 = vsel %vm748, %v2942, 0
        %v2984 = vsel %vm748, %v2943, 0
        %v2987 = vsel %vm748, %v2944, 0
        %v2990 = vsel %vm748, %v2945, 0
        %v2993 = vsel %vm748, %v2946, 0
        %2995 = vmatpush.msra.mxu0 0.0
        %2996 = vmatpush.msra.mxu0 0.0
        %2997 = vmatpush.msra.mxu0 0.0
        %2998 = vmatpush.msra.mxu0 0.0
        %2999 = vmatpush.msra.mxu0 0.0
        %3000 = vmatpush.msra.mxu0 0.0
        %3001 = vmatpush.msra.mxu0 0.0
        %3002 = vmatpush.msra.mxu0 0.0
        %3003 = vmatpush.msra.mxu0 0.0
        %3004 = vmatpush.msra.mxu0 0.0
        %3005 = vmatpush.msra.mxu0 0.0
        %3006 = vmatpush.msra.mxu0 0.0
        %3007 = vmatpush.msra.mxu0 0.0
        %3008 = vmatpush.msra.mxu0 0.0
        %3009 = vmatpush.msra.mxu0 0.0
        %3010 = vmatpush.msra.mxu0 %v246
        %3011 = vmatmul.f32.gmra.mxu0 %v2948
        %v3012 = vpop.f32.mrf.mxu0
        %v3013 = vadd.f32 0.0, %v3012
        %3014 = vmatmul.f32.gmra.mxu0 %v2951
        %v3015 = vpop.f32.mrf.mxu0
        %v3016 = vadd.f32 0.0, %v3015
        %3017 = vmatmul.f32.gmra.mxu0 %v2954
        %v3018 = vpop.f32.mrf.mxu0
        %v3019 = vadd.f32 0.0, %v3018
        %3020 = vmatmul.f32.gmra.mxu0 %v2957
        %v3021 = vpop.f32.mrf.mxu0
        %v3022 = vadd.f32 0.0, %v3021
        %3023 = vmatmul.f32.gmra.mxu0 %v2960
        %v3024 = vpop.f32.mrf.mxu0
        %v3025 = vadd.f32 0.0, %v3024
        %3026 = vmatmul.f32.gmra.mxu0 %v2963
        %v3027 = vpop.f32.mrf.mxu0
        %v3028 = vadd.f32 0.0, %v3027
        %3029 = vmatmul.f32.gmra.mxu0 %v2966
        %v3030 = vpop.f32.mrf.mxu0
        %v3031 = vadd.f32 0.0, %v3030
        %3032 = vmatmul.f32.gmra.mxu0 %v2969
        %v3033 = vpop.f32.mrf.mxu0
        %v3034 = vadd.f32 0.0, %v3033
        %3035 = vmatmul.f32.gmra.mxu0 %v2972
        %v3036 = vpop.f32.mrf.mxu0
        %v3037 = vadd.f32 0.0, %v3036
        %3038 = vmatmul.f32.gmra.mxu0 %v2975
        %v3039 = vpop.f32.mrf.mxu0
        %v3040 = vadd.f32 0.0, %v3039
        %3041 = vmatmul.f32.gmra.mxu0 %v2978
        %v3042 = vpop.f32.mrf.mxu0
        %v3043 = vadd.f32 0.0, %v3042
        %3044 = vmatmul.f32.gmra.mxu0 %v2981
        %v3045 = vpop.f32.mrf.mxu0
        %v3046 = vadd.f32 0.0, %v3045
        %3047 = vmatmul.f32.gmra.mxu0 %v2984
        %v3048 = vpop.f32.mrf.mxu0
        %v3049 = vadd.f32 0.0, %v3048
        %3050 = vmatmul.f32.gmra.mxu0 %v2987
        %v3051 = vpop.f32.mrf.mxu0
        %v3052 = vadd.f32 0.0, %v3051
        %3053 = vmatmul.f32.gmra.mxu0 %v2990
        %v3054 = vpop.f32.mrf.mxu0
        %v3055 = vadd.f32 0.0, %v3054
        %3056 = vmatmul.f32.gmra.mxu0 %v2993
        %v3057 = vpop.f32.mrf.mxu0
        %v3058 = vadd.f32 0.0, %v3057
        %3059 = vdwg.mxu0
        %v3060 = vld [vmem:[%s2 + $0x8] sm:$0xff]
        %v3061 = vld [vmem:[%s2 + $0x10] sm:$0xff]
        %v3062 = vld [vmem:[%s2 + $0x18] sm:$0xff]
        %v3063 = vld [vmem:[%s2 + $0x20] sm:$0xff]
        %v3064 = vld [vmem:[%s2 + $0x48] sm:$0x1]
        %3065 = vmatpush.msra.mxu0 %v3058
        %3066 = vmatpush.msra.mxu0 %v3055
        %3067 = vmatpush.msra.mxu0 %v3052
        %3068 = vmatpush.msra.mxu0 %v3049
        %3069 = vmatpush.msra.mxu0 %v3046
        %3070 = vmatpush.msra.mxu0 %v3043
        %3071 = vmatpush.msra.mxu0 %v3040
        %3072 = vmatpush.msra.mxu0 %v3037
        %3073 = vmatpush.msra.mxu0 %v3034
        %3074 = vmatpush.msra.mxu0 %v3031
        %3075 = vmatpush.msra.mxu0 %v3028
        %3076 = vmatpush.msra.mxu0 %v3025
        %3077 = vmatpush.msra.mxu0 %v3022
        %3078 = vmatpush.msra.mxu0 %v3019
        %3079 = vmatpush.msra.mxu0 %v3016
        %3080 = vmatpush.msra.mxu0 %v3013
        %3081 = vmatmul.f32.gmra.mxu0 %v2882
        %v3082 = vpop.f32.mrf.mxu0
        %v3083 = vadd.f32 0.0, %v3082
        %3084 = vmatmul.f32.gmra.mxu0 %v2883
        %v3085 = vpop.f32.mrf.mxu0
        %v3086 = vadd.f32 0.0, %v3085
        %3087 = vmatmul.f32.gmra.mxu0 %v2884
        %v3088 = vpop.f32.mrf.mxu0
        %v3089 = vadd.f32 0.0, %v3088
        %3090 = vmatmul.f32.gmra.mxu0 %v2885
        %v3091 = vpop.f32.mrf.mxu0
        %v3092 = vadd.f32 0.0, %v3091
        %3093 = vmatmul.f32.gmra.mxu0 %v2886
        %v3094 = vpop.f32.mrf.mxu0
        %v3095 = vadd.f32 0.0, %v3094
        %3096 = vmatmul.f32.gmra.mxu0 %v2887
        %v3097 = vpop.f32.mrf.mxu0
        %v3098 = vadd.f32 0.0, %v3097
        %3099 = vmatmul.f32.gmra.mxu0 %v2888
        %v3100 = vpop.f32.mrf.mxu0
        %v3101 = vadd.f32 0.0, %v3100
        %3102 = vmatmul.f32.gmra.mxu0 %v2889
        %v3103 = vpop.f32.mrf.mxu0
        %v3104 = vadd.f32 0.0, %v3103
        %3105 = vmatmul.f32.gmra.mxu0 %v2890
        %v3106 = vpop.f32.mrf.mxu0
        %v3107 = vadd.f32 0.0, %v3106
        %3108 = vmatmul.f32.gmra.mxu0 %v2891
        %v3109 = vpop.f32.mrf.mxu0
        %v3110 = vadd.f32 0.0, %v3109
        %3111 = vmatmul.f32.gmra.mxu0 %v2892
        %v3112 = vpop.f32.mrf.mxu0
        %v3113 = vadd.f32 0.0, %v3112
        %3114 = vmatmul.f32.gmra.mxu0 %v2893
        %v3115 = vpop.f32.mrf.mxu0
        %v3116 = vadd.f32 0.0, %v3115
        %3117 = vmatmul.f32.gmra.mxu0 %v2894
        %v3118 = vpop.f32.mrf.mxu0
        %v3119 = vadd.f32 0.0, %v3118
        %3120 = vmatmul.f32.gmra.mxu0 %v2895
        %v3121 = vpop.f32.mrf.mxu0
        %v3122 = vadd.f32 0.0, %v3121
        %3123 = vmatmul.f32.gmra.mxu0 %v2896
        %v3124 = vpop.f32.mrf.mxu0
        %v3125 = vadd.f32 0.0, %v3124
        %3126 = vmatmul.f32.gmra.mxu0 %v2897
        %v3127 = vpop.f32.mrf.mxu0
        %v3128 = vadd.f32 0.0, %v3127
        %3129 = vdwg.mxu0
        %v3130 = vmul.f32 %v2720, %v3083
        %v3131 = vmul.f32 %v2730, %v3086
        %v3132 = vmul.f32 %v2740, %v3089
        %v3133 = vmul.f32 %v2750, %v3092
        %v3134 = vmul.f32 %v2760, %v3095
        %v3135 = vmul.f32 %v2770, %v3098
        %v3136 = vmul.f32 %v2780, %v3101
        %v3137 = vmul.f32 %v2790, %v3104
        %v3138 = vmul.f32 %v2800, %v3107
        %v3139 = vmul.f32 %v2810, %v3110
        %v3140 = vmul.f32 %v2820, %v3113
        %v3141 = vmul.f32 %v2830, %v3116
        %v3142 = vmul.f32 %v2840, %v3119
        %v3143 = vmul.f32 %v2850, %v3122
        %v3144 = vmul.f32 %v2860, %v3125
        %v3145 = vmul.f32 %v2870, %v3128
        %v3146 = vperm.slane %v3064, 0
        %v3148 = vsel %vm949, %v3130, 0
        %v3151 = vsel %vm949, %v3131, 0
        %v3154 = vsel %vm949, %v3132, 0
        %v3157 = vsel %vm949, %v3133, 0
        %v3160 = vsel %vm949, %v3134, 0
        %v3163 = vsel %vm949, %v3135, 0
        %v3166 = vsel %vm949, %v3136, 0
        %v3169 = vsel %vm949, %v3137, 0
        %v3172 = vsel %vm949, %v3138, 0
        %v3175 = vsel %vm949, %v3139, 0
        %v3178 = vsel %vm949, %v3140, 0
        %v3181 = vsel %vm949, %v3141, 0
        %v3184 = vsel %vm949, %v3142, 0
        %v3187 = vsel %vm949, %v3143, 0
        %v3190 = vsel %vm949, %v3144, 0
        %v3193 = vsel %vm949, %v3145, 0
        %3195 = vmatpush.msra.mxu0 0.0
        %3196 = vmatpush.msra.mxu0 0.0
        %3197 = vmatpush.msra.mxu0 0.0
        %3198 = vmatpush.msra.mxu0 0.0
        %3199 = vmatpush.msra.mxu0 0.0
        %3200 = vmatpush.msra.mxu0 0.0
        %3201 = vmatpush.msra.mxu0 0.0
        %3202 = vmatpush.msra.mxu0 0.0
        %3203 = vmatpush.msra.mxu0 0.0
        %3204 = vmatpush.msra.mxu0 0.0
        %3205 = vmatpush.msra.mxu0 0.0
        %3206 = vmatpush.msra.mxu0 0.0
        %3207 = vmatpush.msra.mxu0 %v3063
        %3208 = vmatpush.msra.mxu0 %v3062
        %3209 = vmatpush.msra.mxu0 %v3061
        %3210 = vmatpush.msra.mxu0 %v3060
        %3211 = vmatmul.f32.gmra.mxu0 %v3148
        %v3212 = vpop.f32.mrf.mxu0
        %v3213 = vadd.f32 %v3146, %v3212
        %3214 = vmatmul.f32.gmra.mxu0 %v3151
        %v3215 = vpop.f32.mrf.mxu0
        %v3216 = vadd.f32 %v3146, %v3215
        %3217 = vmatmul.f32.gmra.mxu0 %v3154
        %v3218 = vpop.f32.mrf.mxu0
        %v3219 = vadd.f32 %v3146, %v3218
        %3220 = vmatmul.f32.gmra.mxu0 %v3157
        %v3221 = vpop.f32.mrf.mxu0
        %v3222 = vadd.f32 %v3146, %v3221
        %3223 = vmatmul.f32.gmra.mxu0 %v3160
        %v3224 = vpop.f32.mrf.mxu0
        %v3225 = vadd.f32 %v3146, %v3224
        %3226 = vmatmul.f32.gmra.mxu0 %v3163
        %v3227 = vpop.f32.mrf.mxu0
        %v3228 = vadd.f32 %v3146, %v3227
        %3229 = vmatmul.f32.gmra.mxu0 %v3166
        %v3230 = vpop.f32.mrf.mxu0
        %v3231 = vadd.f32 %v3146, %v3230
        %3232 = vmatmul.f32.gmra.mxu0 %v3169
        %v3233 = vpop.f32.mrf.mxu0
        %v3234 = vadd.f32 %v3146, %v3233
        %3235 = vmatmul.f32.gmra.mxu0 %v3172
        %v3236 = vpop.f32.mrf.mxu0
        %v3237 = vadd.f32 %v3146, %v3236
        %3238 = vmatmul.f32.gmra.mxu0 %v3175
        %v3239 = vpop.f32.mrf.mxu0
        %v3240 = vadd.f32 %v3146, %v3239
        %3241 = vmatmul.f32.gmra.mxu0 %v3178
        %v3242 = vpop.f32.mrf.mxu0
        %v3243 = vadd.f32 %v3146, %v3242
        %3244 = vmatmul.f32.gmra.mxu0 %v3181
        %v3245 = vpop.f32.mrf.mxu0
        %v3246 = vadd.f32 %v3146, %v3245
        %3247 = vmatmul.f32.gmra.mxu0 %v3184
        %v3248 = vpop.f32.mrf.mxu0
        %v3249 = vadd.f32 %v3146, %v3248
        %3250 = vmatmul.f32.gmra.mxu0 %v3187
        %v3251 = vpop.f32.mrf.mxu0
        %v3252 = vadd.f32 %v3146, %v3251
        %3253 = vmatmul.f32.gmra.mxu0 %v3190
        %v3254 = vpop.f32.mrf.mxu0
        %v3255 = vadd.f32 %v3146, %v3254
        %3256 = vmatmul.f32.gmra.mxu0 %v3193
        %v3257 = vpop.f32.mrf.mxu0
        %v3258 = vadd.f32 %v3146, %v3257
        %3259 = vdwg.mxu0
        %v3260 = vld [vmem:[%s2 + $0x28] sm:$0xff]
        %v3261 = vld [vmem:[%s2 + $0x30] sm:$0xff]
        %v3262 = vld [vmem:[%s2 + $0x38] sm:$0xff]
        %v3263 = vld [vmem:[%s2 + $0x40] sm:$0xff]
        %v3264 = vld [vmem:[%s2 + $0x49] sm:$0x1]
        %3265 = vmatpush.msra.mxu0 %v3258
        %3266 = vmatpush.msra.mxu0 %v3255
        %3267 = vmatpush.msra.mxu0 %v3252
        %3268 = vmatpush.msra.mxu0 %v3249
        %3269 = vmatpush.msra.mxu0 %v3246
        %3270 = vmatpush.msra.mxu0 %v3243
        %3271 = vmatpush.msra.mxu0 %v3240
        %3272 = vmatpush.msra.mxu0 %v3237
        %3273 = vmatpush.msra.mxu0 %v3234
        %3274 = vmatpush.msra.mxu0 %v3231
        %3275 = vmatpush.msra.mxu0 %v3228
        %3276 = vmatpush.msra.mxu0 %v3225
        %3277 = vmatpush.msra.mxu0 %v3222
        %3278 = vmatpush.msra.mxu0 %v3219
        %3279 = vmatpush.msra.mxu0 %v3216
        %3280 = vmatpush.msra.mxu0 %v3213
        %3281 = vmatmul.f32.gmra.mxu0 %v2882
        %v3282 = vpop.f32.mrf.mxu0
        %v3283 = vadd.f32 0.0, %v3282
        %3284 = vmatmul.f32.gmra.mxu0 %v2883
        %v3285 = vpop.f32.mrf.mxu0
        %v3286 = vadd.f32 0.0, %v3285
        %3287 = vmatmul.f32.gmra.mxu0 %v2884
        %v3288 = vpop.f32.mrf.mxu0
        %v3289 = vadd.f32 0.0, %v3288
        %3290 = vmatmul.f32.gmra.mxu0 %v2885
        %v3291 = vpop.f32.mrf.mxu0
        %v3292 = vadd.f32 0.0, %v3291
        %3293 = vmatmul.f32.gmra.mxu0 %v2886
        %v3294 = vpop.f32.mrf.mxu0
        %v3295 = vadd.f32 0.0, %v3294
        %3296 = vmatmul.f32.gmra.mxu0 %v2887
        %v3297 = vpop.f32.mrf.mxu0
        %v3298 = vadd.f32 0.0, %v3297
        %3299 = vmatmul.f32.gmra.mxu0 %v2888
        %v3300 = vpop.f32.mrf.mxu0
        %v3301 = vadd.f32 0.0, %v3300
        %3302 = vmatmul.f32.gmra.mxu0 %v2889
        %v3303 = vpop.f32.mrf.mxu0
        %v3304 = vadd.f32 0.0, %v3303
        %3305 = vmatmul.f32.gmra.mxu0 %v2890
        %v3306 = vpop.f32.mrf.mxu0
        %v3307 = vadd.f32 0.0, %v3306
        %3308 = vmatmul.f32.gmra.mxu0 %v2891
        %v3309 = vpop.f32.mrf.mxu0
        %v3310 = vadd.f32 0.0, %v3309
        %3311 = vmatmul.f32.gmra.mxu0 %v2892
        %v3312 = vpop.f32.mrf.mxu0
        %v3313 = vadd.f32 0.0, %v3312
        %3314 = vmatmul.f32.gmra.mxu0 %v2893
        %v3315 = vpop.f32.mrf.mxu0
        %v3316 = vadd.f32 0.0, %v3315
        %3317 = vmatmul.f32.gmra.mxu0 %v2894
        %v3318 = vpop.f32.mrf.mxu0
        %v3319 = vadd.f32 0.0, %v3318
        %3320 = vmatmul.f32.gmra.mxu0 %v2895
        %v3321 = vpop.f32.mrf.mxu0
        %v3322 = vadd.f32 0.0, %v3321
        %3323 = vmatmul.f32.gmra.mxu0 %v2896
        %v3324 = vpop.f32.mrf.mxu0
        %v3325 = vadd.f32 0.0, %v3324
        %3326 = vmatmul.f32.gmra.mxu0 %v2897
        %v3327 = vpop.f32.mrf.mxu0
        %v3328 = vadd.f32 0.0, %v3327
        %3329 = vdwg.mxu0
        %v3330 = vmul.f32 %v2720, %v3283
        %v3331 = vmul.f32 %v2730, %v3286
        %v3332 = vmul.f32 %v2740, %v3289
        %v3333 = vmul.f32 %v2750, %v3292
        %v3334 = vmul.f32 %v2760, %v3295
        %v3335 = vmul.f32 %v2770, %v3298
        %v3336 = vmul.f32 %v2780, %v3301
        %v3337 = vmul.f32 %v2790, %v3304
        %v3338 = vmul.f32 %v2800, %v3307
        %v3339 = vmul.f32 %v2810, %v3310
        %v3340 = vmul.f32 %v2820, %v3313
        %v3341 = vmul.f32 %v2830, %v3316
        %v3342 = vmul.f32 %v2840, %v3319
        %v3343 = vmul.f32 %v2850, %v3322
        %v3344 = vmul.f32 %v2860, %v3325
        %v3345 = vmul.f32 %v2870, %v3328
        %v3346 = vperm.slane %v3264, 0
        %v3348 = vsel %vm949, %v3330, 0
        %v3351 = vsel %vm949, %v3331, 0
        %v3354 = vsel %vm949, %v3332, 0
        %v3357 = vsel %vm949, %v3333, 0
        %v3360 = vsel %vm949, %v3334, 0
        %v3363 = vsel %vm949, %v3335, 0
        %v3366 = vsel %vm949, %v3336, 0
        %v3369 = vsel %vm949, %v3337, 0
        %v3372 = vsel %vm949, %v3338, 0
        %v3375 = vsel %vm949, %v3339, 0
        %v3378 = vsel %vm949, %v3340, 0
        %v3381 = vsel %vm949, %v3341, 0
        %v3384 = vsel %vm949, %v3342, 0
        %v3387 = vsel %vm949, %v3343, 0
        %v3390 = vsel %vm949, %v3344, 0
        %v3393 = vsel %vm949, %v3345, 0
        %3395 = vmatpush.msra.mxu0 0.0
        %3396 = vmatpush.msra.mxu0 0.0
        %3397 = vmatpush.msra.mxu0 0.0
        %3398 = vmatpush.msra.mxu0 0.0
        %3399 = vmatpush.msra.mxu0 0.0
        %3400 = vmatpush.msra.mxu0 0.0
        %3401 = vmatpush.msra.mxu0 0.0
        %3402 = vmatpush.msra.mxu0 0.0
        %3403 = vmatpush.msra.mxu0 0.0
        %3404 = vmatpush.msra.mxu0 0.0
        %3405 = vmatpush.msra.mxu0 0.0
        %3406 = vmatpush.msra.mxu0 0.0
        %3407 = vmatpush.msra.mxu0 %v3263
        %3408 = vmatpush.msra.mxu0 %v3262
        %3409 = vmatpush.msra.mxu0 %v3261
        %3410 = vmatpush.msra.mxu0 %v3260
        %3411 = vmatmul.f32.gmra.mxu0 %v3348
        %v3412 = vpop.f32.mrf.mxu0
        %v3413 = vadd.f32 %v3346, %v3412
        %3414 = vmatmul.f32.gmra.mxu0 %v3351
        %v3415 = vpop.f32.mrf.mxu0
        %v3416 = vadd.f32 %v3346, %v3415
        %3417 = vmatmul.f32.gmra.mxu0 %v3354
        %v3418 = vpop.f32.mrf.mxu0
        %v3419 = vadd.f32 %v3346, %v3418
        %3420 = vmatmul.f32.gmra.mxu0 %v3357
        %v3421 = vpop.f32.mrf.mxu0
        %v3422 = vadd.f32 %v3346, %v3421
        %3423 = vmatmul.f32.gmra.mxu0 %v3360
        %v3424 = vpop.f32.mrf.mxu0
        %v3425 = vadd.f32 %v3346, %v3424
        %3426 = vmatmul.f32.gmra.mxu0 %v3363
        %v3427 = vpop.f32.mrf.mxu0
        %v3428 = vadd.f32 %v3346, %v3427
        %3429 = vmatmul.f32.gmra.mxu0 %v3366
        %v3430 = vpop.f32.mrf.mxu0
        %v3431 = vadd.f32 %v3346, %v3430
        %3432 = vmatmul.f32.gmra.mxu0 %v3369
        %v3433 = vpop.f32.mrf.mxu0
        %v3434 = vadd.f32 %v3346, %v3433
        %3435 = vmatmul.f32.gmra.mxu0 %v3372
        %v3436 = vpop.f32.mrf.mxu0
        %v3437 = vadd.f32 %v3346, %v3436
        %3438 = vmatmul.f32.gmra.mxu0 %v3375
        %v3439 = vpop.f32.mrf.mxu0
        %v3440 = vadd.f32 %v3346, %v3439
        %3441 = vmatmul.f32.gmra.mxu0 %v3378
        %v3442 = vpop.f32.mrf.mxu0
        %v3443 = vadd.f32 %v3346, %v3442
        %3444 = vmatmul.f32.gmra.mxu0 %v3381
        %v3445 = vpop.f32.mrf.mxu0
        %v3446 = vadd.f32 %v3346, %v3445
        %3447 = vmatmul.f32.gmra.mxu0 %v3384
        %v3448 = vpop.f32.mrf.mxu0
        %v3449 = vadd.f32 %v3346, %v3448
        %3450 = vmatmul.f32.gmra.mxu0 %v3387
        %v3451 = vpop.f32.mrf.mxu0
        %v3452 = vadd.f32 %v3346, %v3451
        %3453 = vmatmul.f32.gmra.mxu0 %v3390
        %v3454 = vpop.f32.mrf.mxu0
        %v3455 = vadd.f32 %v3346, %v3454
        %3456 = vmatmul.f32.gmra.mxu0 %v3393
        %v3457 = vpop.f32.mrf.mxu0
        %v3458 = vadd.f32 %v3346, %v3457
        %3459 = vdwg.mxu0
        %3460 = vmatpush.msra.mxu0 %v3458
        %3461 = vmatpush.msra.mxu0 %v3455
        %3462 = vmatpush.msra.mxu0 %v3452
        %3463 = vmatpush.msra.mxu0 %v3449
        %3464 = vmatpush.msra.mxu0 %v3446
        %3465 = vmatpush.msra.mxu0 %v3443
        %3466 = vmatpush.msra.mxu0 %v3440
        %3467 = vmatpush.msra.mxu0 %v3437
        %3468 = vmatpush.msra.mxu0 %v3434
        %3469 = vmatpush.msra.mxu0 %v3431
        %3470 = vmatpush.msra.mxu0 %v3428
        %3471 = vmatpush.msra.mxu0 %v3425
        %3472 = vmatpush.msra.mxu0 %v3422
        %3473 = vmatpush.msra.mxu0 %v3419
        %3474 = vmatpush.msra.mxu0 %v3416
        %3475 = vmatpush.msra.mxu0 %v3413
        %3476 = vmatmul.f32.gmra.mxu0 %v227
        %v3477 = vpop.f32.mrf.mxu0
        %v3478 = vadd.f32 0.0, %v3477
        %3479 = vdwg.mxu0
        %v3481 = vsel %vm949, %v3478, 0
        %3483 = vmatpush.msra.mxu0 0.0
        %3484 = vmatpush.msra.mxu0 0.0
        %3485 = vmatpush.msra.mxu0 0.0
        %3486 = vmatpush.msra.mxu0 0.0
        %3487 = vmatpush.msra.mxu0 0.0
        %3488 = vmatpush.msra.mxu0 0.0
        %3489 = vmatpush.msra.mxu0 0.0
        %3490 = vmatpush.msra.mxu0 0.0
        %3491 = vmatpush.msra.mxu0 0.0
        %3492 = vmatpush.msra.mxu0 0.0
        %3493 = vmatpush.msra.mxu0 0.0
        %3494 = vmatpush.msra.mxu0 0.0
        %3495 = vmatpush.msra.mxu0 %v250
        %3496 = vmatpush.msra.mxu0 %v249
        %3497 = vmatpush.msra.mxu0 %v248
        %3498 = vmatpush.msra.mxu0 %v247
        %3499 = vmatmul.f32.gmra.mxu0 %v3481
        %v3500 = vpop.f32.mrf.mxu0
        %v3501 = vadd.f32 %v1283, %v3500
        %3502 = vdwg.mxu0
        %v3503 = vmax.f32 %v3501, 0.0
        %v3505 = vsel %vm949, %v3503, 0
        %3507 = vmatpush.msra.mxu0 0.0
        %3508 = vmatpush.msra.mxu0 0.0
        %3509 = vmatpush.msra.mxu0 0.0
        %3510 = vmatpush.msra.mxu0 0.0
        %3511 = vmatpush.msra.mxu0 0.0
        %3512 = vmatpush.msra.mxu0 0.0
        %3513 = vmatpush.msra.mxu0 0.0
        %3514 = vmatpush.msra.mxu0 0.0
        %3515 = vmatpush.msra.mxu0 0.0
        %3516 = vmatpush.msra.mxu0 0.0
        %3517 = vmatpush.msra.mxu0 0.0
        %3518 = vmatpush.msra.mxu0 0.0
        %3519 = vmatpush.msra.mxu0 %v255
        %3520 = vmatpush.msra.mxu0 %v254
        %3521 = vmatpush.msra.mxu0 %v253
        %3522 = vmatpush.msra.mxu0 %v252
        %3523 = vmatmul.f32.gmra.mxu0 %v3505
        %v3524 = vpop.f32.mrf.mxu0
        %v3525 = vadd.f32 %v1308, %v3524
        %3526 = vdwg.mxu0
        %v3527 = vmax.f32 %v3525, 0.0
        %v3529 = vsel %vm949, %v3527, 0
        %3531 = vmatpush.msra.mxu0 0.0
        %3532 = vmatpush.msra.mxu0 0.0
        %3533 = vmatpush.msra.mxu0 0.0
        %3534 = vmatpush.msra.mxu0 0.0
        %3535 = vmatpush.msra.mxu0 0.0
        %3536 = vmatpush.msra.mxu0 0.0
        %3537 = vmatpush.msra.mxu0 0.0
        %3538 = vmatpush.msra.mxu0 0.0
        %3539 = vmatpush.msra.mxu0 0.0
        %3540 = vmatpush.msra.mxu0 0.0
        %3541 = vmatpush.msra.mxu0 0.0
        %3542 = vmatpush.msra.mxu0 0.0
        %3543 = vmatpush.msra.mxu0 %v260
        %3544 = vmatpush.msra.mxu0 %v259
        %3545 = vmatpush.msra.mxu0 %v258
        %3546 = vmatpush.msra.mxu0 %v257
        %3547 = vmatmul.f32.gmra.mxu0 %v3529
        %v3548 = vpop.f32.mrf.mxu0
        %v3549 = vadd.f32 %v1333, %v3548
        %3550 = vdwg.mxu0
        %3552 = vset.pattern.permute.xlu0 0
        %3553 = vperm.xlu0 %3552, %v3549
        %v3554 = vpop.permute.xlu0 %3553
        %3556 = vst [vmem:[%s211 + $0x10] sm:$0xff] %v3554
        %s3557 = scalar_lea.vmem %s217, 96
        %v3558 = vld [vmem:[%s3557] sm:$0xff]
        %v3559 = vld [vmem:[%s3557 + $0x8] sm:$0xff]
        %v3560 = vld [vmem:[%s3557 + $0x10] sm:$0xff]
        %v3561 = vld [vmem:[%s3557 + $0x18] sm:$0xff]
        %v3562 = vunpack.c.0.s8 %v3558
        %v3563 = vunpack.c.1.s8 %v3558
        %v3564 = vunpack.c.2.s8 %v3558
        %v3565 = vunpack.c.3.s8 %v3558
        %v3566 = vunpack.c.0.s8 %v3559
        %v3567 = vunpack.c.1.s8 %v3559
        %v3568 = vunpack.c.2.s8 %v3559
        %v3569 = vunpack.c.3.s8 %v3559
        %v3570 = vunpack.c.0.s8 %v3560
        %v3571 = vunpack.c.1.s8 %v3560
        %v3572 = vunpack.c.2.s8 %v3560
        %v3573 = vunpack.c.3.s8 %v3560
        %v3574 = vunpack.c.0.s8 %v3561
        %v3575 = vunpack.c.1.s8 %v3561
        %v3576 = vunpack.c.2.s8 %v3561
        %v3577 = vunpack.c.3.s8 %v3561
        %v3578 = vcvt.s32.f32 %v3562
        %v3579 = vcvt.s32.f32 %v3563
        %v3580 = vcvt.s32.f32 %v3564
        %v3581 = vcvt.s32.f32 %v3565
        %v3582 = vcvt.s32.f32 %v3566
        %v3583 = vcvt.s32.f32 %v3567
        %v3584 = vcvt.s32.f32 %v3568
        %v3585 = vcvt.s32.f32 %v3569
        %v3586 = vcvt.s32.f32 %v3570
        %v3587 = vcvt.s32.f32 %v3571
        %v3588 = vcvt.s32.f32 %v3572
        %v3589 = vcvt.s32.f32 %v3573
        %v3590 = vcvt.s32.f32 %v3574
        %v3591 = vcvt.s32.f32 %v3575
        %v3592 = vcvt.s32.f32 %v3576
        %v3593 = vcvt.s32.f32 %v3577
        %v3595 = vsel %vm298, %v3578, 0
        %v3598 = vsel %vm298, %v3579, 0
        %v3601 = vsel %vm298, %v3580, 0
        %v3604 = vsel %vm298, %v3581, 0
        %v3607 = vsel %vm298, %v3582, 0
        %v3610 = vsel %vm298, %v3583, 0
        %v3613 = vsel %vm298, %v3584, 0
        %v3616 = vsel %vm298, %v3585, 0
        %v3619 = vsel %vm298, %v3586, 0
        %v3622 = vsel %vm298, %v3587, 0
        %v3625 = vsel %vm298, %v3588, 0
        %v3628 = vsel %vm298, %v3589, 0
        %v3631 = vsel %vm298, %v3590, 0
        %v3634 = vsel %vm298, %v3591, 0
        %v3637 = vsel %vm298, %v3592, 0
        %v3640 = vsel %vm298, %v3593, 0
        %3642 = vmatpush.msra.mxu0 0.0
        %3643 = vmatpush.msra.mxu0 0.0
        %3644 = vmatpush.msra.mxu0 0.0
        %3645 = vmatpush.msra.mxu0 0.0
        %3646 = vmatpush.msra.mxu0 0.0
        %3647 = vmatpush.msra.mxu0 0.0
        %3648 = vmatpush.msra.mxu0 0.0
        %3649 = vmatpush.msra.mxu0 0.0
        %3650 = vmatpush.msra.mxu0 0.0
        %3651 = vmatpush.msra.mxu0 0.0
        %3652 = vmatpush.msra.mxu0 0.0
        %3653 = vmatpush.msra.mxu0 0.0
        %3654 = vmatpush.msra.mxu0 0.0
        %3655 = vmatpush.msra.mxu0 0.0
        %3656 = vmatpush.msra.mxu0 %v229
        %3657 = vmatpush.msra.mxu0 %v228
        %3658 = vmatmul.f32.gmra.mxu0 %v3595
        %v3659 = vpop.f32.mrf.mxu0
        %v3660 = vadd.f32 0.0, %v3659
        %3661 = vmatmul.f32.gmra.mxu0 %v3598
        %v3662 = vpop.f32.mrf.mxu0
        %v3663 = vadd.f32 0.0, %v3662
        %3664 = vmatmul.f32.gmra.mxu0 %v3601
        %v3665 = vpop.f32.mrf.mxu0
        %v3666 = vadd.f32 0.0, %v3665
        %3667 = vmatmul.f32.gmra.mxu0 %v3604
        %v3668 = vpop.f32.mrf.mxu0
        %v3669 = vadd.f32 0.0, %v3668
        %3670 = vmatmul.f32.gmra.mxu0 %v3607
        %v3671 = vpop.f32.mrf.mxu0
        %v3672 = vadd.f32 0.0, %v3671
        %3673 = vmatmul.f32.gmra.mxu0 %v3610
        %v3674 = vpop.f32.mrf.mxu0
        %v3675 = vadd.f32 0.0, %v3674
        %3676 = vmatmul.f32.gmra.mxu0 %v3613
        %v3677 = vpop.f32.mrf.mxu0
        %v3678 = vadd.f32 0.0, %v3677
        %3679 = vmatmul.f32.gmra.mxu0 %v3616
        %v3680 = vpop.f32.mrf.mxu0
        %v3681 = vadd.f32 0.0, %v3680
        %3682 = vmatmul.f32.gmra.mxu0 %v3619
        %v3683 = vpop.f32.mrf.mxu0
        %v3684 = vadd.f32 0.0, %v3683
        %3685 = vmatmul.f32.gmra.mxu0 %v3622
        %v3686 = vpop.f32.mrf.mxu0
        %v3687 = vadd.f32 0.0, %v3686
        %3688 = vmatmul.f32.gmra.mxu0 %v3625
        %v3689 = vpop.f32.mrf.mxu0
        %v3690 = vadd.f32 0.0, %v3689
        %3691 = vmatmul.f32.gmra.mxu0 %v3628
        %v3692 = vpop.f32.mrf.mxu0
        %v3693 = vadd.f32 0.0, %v3692
        %3694 = vmatmul.f32.gmra.mxu0 %v3631
        %v3695 = vpop.f32.mrf.mxu0
        %v3696 = vadd.f32 0.0, %v3695
        %3697 = vmatmul.f32.gmra.mxu0 %v3634
        %v3698 = vpop.f32.mrf.mxu0
        %v3699 = vadd.f32 0.0, %v3698
        %3700 = vmatmul.f32.gmra.mxu0 %v3637
        %v3701 = vpop.f32.mrf.mxu0
        %v3702 = vadd.f32 0.0, %v3701
        %3703 = vmatmul.f32.gmra.mxu0 %v3640
        %v3704 = vpop.f32.mrf.mxu0
        %v3705 = vadd.f32 0.0, %v3704
        %3706 = vdwg.mxu0
        %v3707 = vmul.f32 %v3660, %v230
        %v3708 = vmul.f32 %v3663, %v231
        %v3709 = vmul.f32 %v3666, %v232
        %v3710 = vmul.f32 %v3669, %v233
        %v3711 = vmul.f32 %v3672, %v234
        %v3712 = vmul.f32 %v3675, %v235
        %v3713 = vmul.f32 %v3678, %v236
        %v3714 = vmul.f32 %v3681, %v237
        %v3715 = vmul.f32 %v3684, %v238
        %v3716 = vmul.f32 %v3687, %v239
        %v3717 = vmul.f32 %v3690, %v240
        %v3718 = vmul.f32 %v3693, %v241
        %v3719 = vmul.f32 %v3696, %v242
        %v3720 = vmul.f32 %v3699, %v243
        %v3721 = vmul.f32 %v3702, %v244
        %v3722 = vmul.f32 %v3705, %v245
        %v3723 = vsel %vm298, %v3578, 0.0
        %3724 = vadd.xlane.f32.xlu0 %v3723
        %v3725 = vpop.xlane.xlu0 %3724
        %v3726 = vsel %vm298, %v3579, 0.0
        %3727 = vadd.xlane.f32.xlu0 %v3726
        %v3728 = vpop.xlane.xlu0 %3727
        %v3729 = vsel %vm298, %v3580, 0.0
        %3730 = vadd.xlane.f32.xlu0 %v3729
        %v3731 = vpop.xlane.xlu0 %3730
        %v3732 = vsel %vm298, %v3581, 0.0
        %3733 = vadd.xlane.f32.xlu0 %v3732
        %v3734 = vpop.xlane.xlu0 %3733
        %v3735 = vsel %vm298, %v3582, 0.0
        %3736 = vadd.xlane.f32.xlu0 %v3735
        %v3737 = vpop.xlane.xlu0 %3736
        %v3738 = vsel %vm298, %v3583, 0.0
        %3739 = vadd.xlane.f32.xlu0 %v3738
        %v3740 = vpop.xlane.xlu0 %3739
        %v3741 = vsel %vm298, %v3584, 0.0
        %3742 = vadd.xlane.f32.xlu0 %v3741
        %v3743 = vpop.xlane.xlu0 %3742
        %v3744 = vsel %vm298, %v3585, 0.0
        %3745 = vadd.xlane.f32.xlu0 %v3744
        %v3746 = vpop.xlane.xlu0 %3745
        %v3747 = vsel %vm298, %v3586, 0.0
        %3748 = vadd.xlane.f32.xlu0 %v3747
        %v3749 = vpop.xlane.xlu0 %3748
        %v3750 = vsel %vm298, %v3587, 0.0
        %3751 = vadd.xlane.f32.xlu0 %v3750
        %v3752 = vpop.xlane.xlu0 %3751
        %v3753 = vsel %vm298, %v3588, 0.0
        %3754 = vadd.xlane.f32.xlu0 %v3753
        %v3755 = vpop.xlane.xlu0 %3754
        %v3756 = vsel %vm298, %v3589, 0.0
        %3757 = vadd.xlane.f32.xlu0 %v3756
        %v3758 = vpop.xlane.xlu0 %3757
        %v3759 = vsel %vm298, %v3590, 0.0
        %3760 = vadd.xlane.f32.xlu0 %v3759
        %v3761 = vpop.xlane.xlu0 %3760
        %v3762 = vsel %vm298, %v3591, 0.0
        %3763 = vadd.xlane.f32.xlu0 %v3762
        %v3764 = vpop.xlane.xlu0 %3763
        %v3765 = vsel %vm298, %v3592, 0.0
        %3766 = vadd.xlane.f32.xlu0 %v3765
        %v3767 = vpop.xlane.xlu0 %3766
        %v3768 = vsel %vm298, %v3593, 0.0
        %3769 = vadd.xlane.f32.xlu0 %v3768
        %v3770 = vpop.xlane.xlu0 %3769
        %v3771 = vadd.f32 %v3707, %v3708
        %v3772 = vadd.f32 %v3771, %v3709
        %v3773 = vadd.f32 %v3772, %v3710
        %v3774 = vadd.f32 %v3773, %v3711
        %v3775 = vadd.f32 %v3774, %v3712
        %v3776 = vadd.f32 %v3775, %v3713
        %v3777 = vadd.f32 %v3776, %v3714
        %v3778 = vadd.f32 %v3777, %v3715
        %v3779 = vadd.f32 %v3778, %v3716
        %v3780 = vadd.f32 %v3779, %v3717
        %v3781 = vadd.f32 %v3780, %v3718
        %v3782 = vadd.f32 %v3781, %v3719
        %v3783 = vadd.f32 %v3782, %v3720
        %v3784 = vadd.f32 %v3783, %v3721
        %v3785 = vadd.f32 %v3784, %v3722
        %v3786 = vrot.slane %v3785, 4
        %v3787 = vadd.f32 %v3785, %v3786
        %v3788 = vrot.slane %v3787, 2
        %v3789 = vadd.f32 %v3787, %v3788
        %v3790 = vrot.slane %v3789, 1
        %v3791 = vadd.f32 %v3789, %v3790
        %v3792 = vmax.f32 %v3725, 1.0
        %v3793 = vmax.f32 %v3728, 1.0
        %v3794 = vmax.f32 %v3731, 1.0
        %v3795 = vmax.f32 %v3734, 1.0
        %v3796 = vmax.f32 %v3737, 1.0
        %v3797 = vmax.f32 %v3740, 1.0
        %v3798 = vmax.f32 %v3743, 1.0
        %v3799 = vmax.f32 %v3746, 1.0
        %v3800 = vmax.f32 %v3749, 1.0
        %v3801 = vmax.f32 %v3752, 1.0
        %v3802 = vmax.f32 %v3755, 1.0
        %v3803 = vmax.f32 %v3758, 1.0
        %v3804 = vmax.f32 %v3761, 1.0
        %v3805 = vmax.f32 %v3764, 1.0
        %v3806 = vmax.f32 %v3767, 1.0
        %v3807 = vmax.f32 %v3770, 1.0
        %v3808 = vrsqrt.pop %v3792
        %v3809 = vmul.f32 %v3808, %v3792
        %v3810 = vmul.f32 %v3809, %v3808
        %v3811 = vmul.f32 0.5, %v3810
        %v3812 = vsub.f32 1.5, %v3811
        %v3813 = vmul.f32 %v3808, %v3812
        %vm3814 = vweird.f32 %v3792
        %vm3815 = vweird.f32 %v3808
        %vm3816 = vmor %vm3814, %vm3815
        %v3817 = vsel %vm3816, %v3808, %v3813
        %v3818 = vrsqrt.pop %v3793
        %v3819 = vmul.f32 %v3818, %v3793
        %v3820 = vmul.f32 %v3819, %v3818
        %v3821 = vmul.f32 0.5, %v3820
        %v3822 = vsub.f32 1.5, %v3821
        %v3823 = vmul.f32 %v3818, %v3822
        %vm3824 = vweird.f32 %v3793
        %vm3825 = vweird.f32 %v3818
        %vm3826 = vmor %vm3824, %vm3825
        %v3827 = vsel %vm3826, %v3818, %v3823
        %v3828 = vrsqrt.pop %v3794
        %v3829 = vmul.f32 %v3828, %v3794
        %v3830 = vmul.f32 %v3829, %v3828
        %v3831 = vmul.f32 0.5, %v3830
        %v3832 = vsub.f32 1.5, %v3831
        %v3833 = vmul.f32 %v3828, %v3832
        %vm3834 = vweird.f32 %v3794
        %vm3835 = vweird.f32 %v3828
        %vm3836 = vmor %vm3834, %vm3835
        %v3837 = vsel %vm3836, %v3828, %v3833
        %v3838 = vrsqrt.pop %v3795
        %v3839 = vmul.f32 %v3838, %v3795
        %v3840 = vmul.f32 %v3839, %v3838
        %v3841 = vmul.f32 0.5, %v3840
        %v3842 = vsub.f32 1.5, %v3841
        %v3843 = vmul.f32 %v3838, %v3842
        %vm3844 = vweird.f32 %v3795
        %vm3845 = vweird.f32 %v3838
        %vm3846 = vmor %vm3844, %vm3845
        %v3847 = vsel %vm3846, %v3838, %v3843
        %v3848 = vrsqrt.pop %v3796
        %v3849 = vmul.f32 %v3848, %v3796
        %v3850 = vmul.f32 %v3849, %v3848
        %v3851 = vmul.f32 0.5, %v3850
        %v3852 = vsub.f32 1.5, %v3851
        %v3853 = vmul.f32 %v3848, %v3852
        %vm3854 = vweird.f32 %v3796
        %vm3855 = vweird.f32 %v3848
        %vm3856 = vmor %vm3854, %vm3855
        %v3857 = vsel %vm3856, %v3848, %v3853
        %v3858 = vrsqrt.pop %v3797
        %v3859 = vmul.f32 %v3858, %v3797
        %v3860 = vmul.f32 %v3859, %v3858
        %v3861 = vmul.f32 0.5, %v3860
        %v3862 = vsub.f32 1.5, %v3861
        %v3863 = vmul.f32 %v3858, %v3862
        %vm3864 = vweird.f32 %v3797
        %vm3865 = vweird.f32 %v3858
        %vm3866 = vmor %vm3864, %vm3865
        %v3867 = vsel %vm3866, %v3858, %v3863
        %v3868 = vrsqrt.pop %v3798
        %v3869 = vmul.f32 %v3868, %v3798
        %v3870 = vmul.f32 %v3869, %v3868
        %v3871 = vmul.f32 0.5, %v3870
        %v3872 = vsub.f32 1.5, %v3871
        %v3873 = vmul.f32 %v3868, %v3872
        %vm3874 = vweird.f32 %v3798
        %vm3875 = vweird.f32 %v3868
        %vm3876 = vmor %vm3874, %vm3875
        %v3877 = vsel %vm3876, %v3868, %v3873
        %v3878 = vrsqrt.pop %v3799
        %v3879 = vmul.f32 %v3878, %v3799
        %v3880 = vmul.f32 %v3879, %v3878
        %v3881 = vmul.f32 0.5, %v3880
        %v3882 = vsub.f32 1.5, %v3881
        %v3883 = vmul.f32 %v3878, %v3882
        %vm3884 = vweird.f32 %v3799
        %vm3885 = vweird.f32 %v3878
        %vm3886 = vmor %vm3884, %vm3885
        %v3887 = vsel %vm3886, %v3878, %v3883
        %v3888 = vrsqrt.pop %v3800
        %v3889 = vmul.f32 %v3888, %v3800
        %v3890 = vmul.f32 %v3889, %v3888
        %v3891 = vmul.f32 0.5, %v3890
        %v3892 = vsub.f32 1.5, %v3891
        %v3893 = vmul.f32 %v3888, %v3892
        %vm3894 = vweird.f32 %v3800
        %vm3895 = vweird.f32 %v3888
        %vm3896 = vmor %vm3894, %vm3895
        %v3897 = vsel %vm3896, %v3888, %v3893
        %v3898 = vrsqrt.pop %v3801
        %v3899 = vmul.f32 %v3898, %v3801
        %v3900 = vmul.f32 %v3899, %v3898
        %v3901 = vmul.f32 0.5, %v3900
        %v3902 = vsub.f32 1.5, %v3901
        %v3903 = vmul.f32 %v3898, %v3902
        %vm3904 = vweird.f32 %v3801
        %vm3905 = vweird.f32 %v3898
        %vm3906 = vmor %vm3904, %vm3905
        %v3907 = vsel %vm3906, %v3898, %v3903
        %v3908 = vrsqrt.pop %v3802
        %v3909 = vmul.f32 %v3908, %v3802
        %v3910 = vmul.f32 %v3909, %v3908
        %v3911 = vmul.f32 0.5, %v3910
        %v3912 = vsub.f32 1.5, %v3911
        %v3913 = vmul.f32 %v3908, %v3912
        %vm3914 = vweird.f32 %v3802
        %vm3915 = vweird.f32 %v3908
        %vm3916 = vmor %vm3914, %vm3915
        %v3917 = vsel %vm3916, %v3908, %v3913
        %v3918 = vrsqrt.pop %v3803
        %v3919 = vmul.f32 %v3918, %v3803
        %v3920 = vmul.f32 %v3919, %v3918
        %v3921 = vmul.f32 0.5, %v3920
        %v3922 = vsub.f32 1.5, %v3921
        %v3923 = vmul.f32 %v3918, %v3922
        %vm3924 = vweird.f32 %v3803
        %vm3925 = vweird.f32 %v3918
        %vm3926 = vmor %vm3924, %vm3925
        %v3927 = vsel %vm3926, %v3918, %v3923
        %v3928 = vrsqrt.pop %v3804
        %v3929 = vmul.f32 %v3928, %v3804
        %v3930 = vmul.f32 %v3929, %v3928
        %v3931 = vmul.f32 0.5, %v3930
        %v3932 = vsub.f32 1.5, %v3931
        %v3933 = vmul.f32 %v3928, %v3932
        %vm3934 = vweird.f32 %v3804
        %vm3935 = vweird.f32 %v3928
        %vm3936 = vmor %vm3934, %vm3935
        %v3937 = vsel %vm3936, %v3928, %v3933
        %v3938 = vrsqrt.pop %v3805
        %v3939 = vmul.f32 %v3938, %v3805
        %v3940 = vmul.f32 %v3939, %v3938
        %v3941 = vmul.f32 0.5, %v3940
        %v3942 = vsub.f32 1.5, %v3941
        %v3943 = vmul.f32 %v3938, %v3942
        %vm3944 = vweird.f32 %v3805
        %vm3945 = vweird.f32 %v3938
        %vm3946 = vmor %vm3944, %vm3945
        %v3947 = vsel %vm3946, %v3938, %v3943
        %v3948 = vrsqrt.pop %v3806
        %v3949 = vmul.f32 %v3948, %v3806
        %v3950 = vmul.f32 %v3949, %v3948
        %v3951 = vmul.f32 0.5, %v3950
        %v3952 = vsub.f32 1.5, %v3951
        %v3953 = vmul.f32 %v3948, %v3952
        %vm3954 = vweird.f32 %v3806
        %vm3955 = vweird.f32 %v3948
        %vm3956 = vmor %vm3954, %vm3955
        %v3957 = vsel %vm3956, %v3948, %v3953
        %v3958 = vrsqrt.pop %v3807
        %v3959 = vmul.f32 %v3958, %v3807
        %v3960 = vmul.f32 %v3959, %v3958
        %v3961 = vmul.f32 0.5, %v3960
        %v3962 = vsub.f32 1.5, %v3961
        %v3963 = vmul.f32 %v3958, %v3962
        %vm3964 = vweird.f32 %v3807
        %vm3965 = vweird.f32 %v3958
        %vm3966 = vmor %vm3964, %vm3965
        %v3967 = vsel %vm3966, %v3958, %v3963
        %v3968 = vmax.f32 %v3791, 1.0
        %v3969 = vrsqrt.pop %v3968
        %v3970 = vmul.f32 %v3969, %v3968
        %v3971 = vmul.f32 %v3970, %v3969
        %v3972 = vmul.f32 0.5, %v3971
        %v3973 = vsub.f32 1.5, %v3972
        %v3974 = vmul.f32 %v3969, %v3973
        %vm3975 = vweird.f32 %v3968
        %vm3976 = vweird.f32 %v3969
        %vm3977 = vmor %vm3975, %vm3976
        %v3978 = vsel %vm3977, %v3969, %v3974
        %v3979 = vmul.f32 %v3707, %v3978
        %v3980 = vmul.f32 %v3708, %v3978
        %v3981 = vmul.f32 %v3709, %v3978
        %v3982 = vmul.f32 %v3710, %v3978
        %v3983 = vmul.f32 %v3711, %v3978
        %v3984 = vmul.f32 %v3712, %v3978
        %v3985 = vmul.f32 %v3713, %v3978
        %v3986 = vmul.f32 %v3714, %v3978
        %v3987 = vmul.f32 %v3715, %v3978
        %v3988 = vmul.f32 %v3716, %v3978
        %v3989 = vmul.f32 %v3717, %v3978
        %v3990 = vmul.f32 %v3718, %v3978
        %v3991 = vmul.f32 %v3719, %v3978
        %v3992 = vmul.f32 %v3720, %v3978
        %v3993 = vmul.f32 %v3721, %v3978
        %v3994 = vmul.f32 %v3722, %v3978
        %s3995 = scalar_lea.vmem %s224, 96
        %v3996 = vld [vmem:[%s3995] sm:$0x3]
        %v3997 = vld [vmem:[%s3995 + $0x2] sm:$0x3]
        %v3998 = vld [vmem:[%s3995 + $0x4] sm:$0x3]
        %v3999 = vld [vmem:[%s3995 + $0x6] sm:$0x3]
        %v4000 = vld [vmem:[%s3995 + $0x8] sm:$0x3]
        %v4001 = vld [vmem:[%s3995 + $0xa] sm:$0x3]
        %v4002 = vld [vmem:[%s3995 + $0xc] sm:$0x3]
        %v4003 = vld [vmem:[%s3995 + $0xe] sm:$0x3]
        %v4004 = vld [vmem:[%s3995 + $0x10] sm:$0x3]
        %v4005 = vld [vmem:[%s3995 + $0x12] sm:$0x3]
        %v4006 = vld [vmem:[%s3995 + $0x14] sm:$0x3]
        %v4007 = vld [vmem:[%s3995 + $0x16] sm:$0x3]
        %v4008 = vld [vmem:[%s3995 + $0x18] sm:$0x3]
        %v4009 = vld [vmem:[%s3995 + $0x1a] sm:$0x3]
        %v4010 = vld [vmem:[%s3995 + $0x1c] sm:$0x3]
        %v4011 = vld [vmem:[%s3995 + $0x1e] sm:$0x3]
        %v4012 = vunpack.c.0.s8 %v3996
        %v4013 = vunpack.c.0.s8 %v3997
        %v4014 = vunpack.c.0.s8 %v3998
        %v4015 = vunpack.c.0.s8 %v3999
        %v4016 = vunpack.c.0.s8 %v4000
        %v4017 = vunpack.c.0.s8 %v4001
        %v4018 = vunpack.c.0.s8 %v4002
        %v4019 = vunpack.c.0.s8 %v4003
        %v4020 = vunpack.c.0.s8 %v4004
        %v4021 = vunpack.c.0.s8 %v4005
        %v4022 = vunpack.c.0.s8 %v4006
        %v4023 = vunpack.c.0.s8 %v4007
        %v4024 = vunpack.c.0.s8 %v4008
        %v4025 = vunpack.c.0.s8 %v4009
        %v4026 = vunpack.c.0.s8 %v4010
        %v4027 = vunpack.c.0.s8 %v4011
        %v4028 = vcvt.s32.f32 %v4012
        %v4029 = vcvt.s32.f32 %v4013
        %v4030 = vcvt.s32.f32 %v4014
        %v4031 = vcvt.s32.f32 %v4015
        %v4032 = vcvt.s32.f32 %v4016
        %v4033 = vcvt.s32.f32 %v4017
        %v4034 = vcvt.s32.f32 %v4018
        %v4035 = vcvt.s32.f32 %v4019
        %v4036 = vcvt.s32.f32 %v4020
        %v4037 = vcvt.s32.f32 %v4021
        %v4038 = vcvt.s32.f32 %v4022
        %v4039 = vcvt.s32.f32 %v4023
        %v4040 = vcvt.s32.f32 %v4024
        %v4041 = vcvt.s32.f32 %v4025
        %v4042 = vcvt.s32.f32 %v4026
        %v4043 = vcvt.s32.f32 %v4027
        %v4045 = vsel %vm748, %v4028, 0
        %v4048 = vsel %vm748, %v4029, 0
        %v4051 = vsel %vm748, %v4030, 0
        %v4054 = vsel %vm748, %v4031, 0
        %v4057 = vsel %vm748, %v4032, 0
        %v4060 = vsel %vm748, %v4033, 0
        %v4063 = vsel %vm748, %v4034, 0
        %v4066 = vsel %vm748, %v4035, 0
        %v4069 = vsel %vm748, %v4036, 0
        %v4072 = vsel %vm748, %v4037, 0
        %v4075 = vsel %vm748, %v4038, 0
        %v4078 = vsel %vm748, %v4039, 0
        %v4081 = vsel %vm748, %v4040, 0
        %v4084 = vsel %vm748, %v4041, 0
        %v4087 = vsel %vm748, %v4042, 0
        %v4090 = vsel %vm748, %v4043, 0
        %4092 = vmatpush.msra.mxu0 0.0
        %4093 = vmatpush.msra.mxu0 0.0
        %4094 = vmatpush.msra.mxu0 0.0
        %4095 = vmatpush.msra.mxu0 0.0
        %4096 = vmatpush.msra.mxu0 0.0
        %4097 = vmatpush.msra.mxu0 0.0
        %4098 = vmatpush.msra.mxu0 0.0
        %4099 = vmatpush.msra.mxu0 0.0
        %4100 = vmatpush.msra.mxu0 0.0
        %4101 = vmatpush.msra.mxu0 0.0
        %4102 = vmatpush.msra.mxu0 0.0
        %4103 = vmatpush.msra.mxu0 0.0
        %4104 = vmatpush.msra.mxu0 0.0
        %4105 = vmatpush.msra.mxu0 0.0
        %4106 = vmatpush.msra.mxu0 0.0
        %4107 = vmatpush.msra.mxu0 %v246
        %4108 = vmatmul.f32.gmra.mxu0 %v4045
        %v4109 = vpop.f32.mrf.mxu0
        %v4110 = vadd.f32 0.0, %v4109
        %4111 = vmatmul.f32.gmra.mxu0 %v4048
        %v4112 = vpop.f32.mrf.mxu0
        %v4113 = vadd.f32 0.0, %v4112
        %4114 = vmatmul.f32.gmra.mxu0 %v4051
        %v4115 = vpop.f32.mrf.mxu0
        %v4116 = vadd.f32 0.0, %v4115
        %4117 = vmatmul.f32.gmra.mxu0 %v4054
        %v4118 = vpop.f32.mrf.mxu0
        %v4119 = vadd.f32 0.0, %v4118
        %4120 = vmatmul.f32.gmra.mxu0 %v4057
        %v4121 = vpop.f32.mrf.mxu0
        %v4122 = vadd.f32 0.0, %v4121
        %4123 = vmatmul.f32.gmra.mxu0 %v4060
        %v4124 = vpop.f32.mrf.mxu0
        %v4125 = vadd.f32 0.0, %v4124
        %4126 = vmatmul.f32.gmra.mxu0 %v4063
        %v4127 = vpop.f32.mrf.mxu0
        %v4128 = vadd.f32 0.0, %v4127
        %4129 = vmatmul.f32.gmra.mxu0 %v4066
        %v4130 = vpop.f32.mrf.mxu0
        %v4131 = vadd.f32 0.0, %v4130
        %4132 = vmatmul.f32.gmra.mxu0 %v4069
        %v4133 = vpop.f32.mrf.mxu0
        %v4134 = vadd.f32 0.0, %v4133
        %4135 = vmatmul.f32.gmra.mxu0 %v4072
        %v4136 = vpop.f32.mrf.mxu0
        %v4137 = vadd.f32 0.0, %v4136
        %4138 = vmatmul.f32.gmra.mxu0 %v4075
        %v4139 = vpop.f32.mrf.mxu0
        %v4140 = vadd.f32 0.0, %v4139
        %4141 = vmatmul.f32.gmra.mxu0 %v4078
        %v4142 = vpop.f32.mrf.mxu0
        %v4143 = vadd.f32 0.0, %v4142
        %4144 = vmatmul.f32.gmra.mxu0 %v4081
        %v4145 = vpop.f32.mrf.mxu0
        %v4146 = vadd.f32 0.0, %v4145
        %4147 = vmatmul.f32.gmra.mxu0 %v4084
        %v4148 = vpop.f32.mrf.mxu0
        %v4149 = vadd.f32 0.0, %v4148
        %4150 = vmatmul.f32.gmra.mxu0 %v4087
        %v4151 = vpop.f32.mrf.mxu0
        %v4152 = vadd.f32 0.0, %v4151
        %4153 = vmatmul.f32.gmra.mxu0 %v4090
        %v4154 = vpop.f32.mrf.mxu0
        %v4155 = vadd.f32 0.0, %v4154
        %4156 = vdwg.mxu0
        %v4157 = vld [vmem:[%s2 + $0x8] sm:$0xff]
        %v4158 = vld [vmem:[%s2 + $0x10] sm:$0xff]
        %v4159 = vld [vmem:[%s2 + $0x18] sm:$0xff]
        %v4160 = vld [vmem:[%s2 + $0x20] sm:$0xff]
        %v4161 = vld [vmem:[%s2 + $0x48] sm:$0x1]
        %4162 = vmatpush.msra.mxu0 %v4155
        %4163 = vmatpush.msra.mxu0 %v4152
        %4164 = vmatpush.msra.mxu0 %v4149
        %4165 = vmatpush.msra.mxu0 %v4146
        %4166 = vmatpush.msra.mxu0 %v4143
        %4167 = vmatpush.msra.mxu0 %v4140
        %4168 = vmatpush.msra.mxu0 %v4137
        %4169 = vmatpush.msra.mxu0 %v4134
        %4170 = vmatpush.msra.mxu0 %v4131
        %4171 = vmatpush.msra.mxu0 %v4128
        %4172 = vmatpush.msra.mxu0 %v4125
        %4173 = vmatpush.msra.mxu0 %v4122
        %4174 = vmatpush.msra.mxu0 %v4119
        %4175 = vmatpush.msra.mxu0 %v4116
        %4176 = vmatpush.msra.mxu0 %v4113
        %4177 = vmatpush.msra.mxu0 %v4110
        %4178 = vmatmul.f32.gmra.mxu0 %v3979
        %v4179 = vpop.f32.mrf.mxu0
        %v4180 = vadd.f32 0.0, %v4179
        %4181 = vmatmul.f32.gmra.mxu0 %v3980
        %v4182 = vpop.f32.mrf.mxu0
        %v4183 = vadd.f32 0.0, %v4182
        %4184 = vmatmul.f32.gmra.mxu0 %v3981
        %v4185 = vpop.f32.mrf.mxu0
        %v4186 = vadd.f32 0.0, %v4185
        %4187 = vmatmul.f32.gmra.mxu0 %v3982
        %v4188 = vpop.f32.mrf.mxu0
        %v4189 = vadd.f32 0.0, %v4188
        %4190 = vmatmul.f32.gmra.mxu0 %v3983
        %v4191 = vpop.f32.mrf.mxu0
        %v4192 = vadd.f32 0.0, %v4191
        %4193 = vmatmul.f32.gmra.mxu0 %v3984
        %v4194 = vpop.f32.mrf.mxu0
        %v4195 = vadd.f32 0.0, %v4194
        %4196 = vmatmul.f32.gmra.mxu0 %v3985
        %v4197 = vpop.f32.mrf.mxu0
        %v4198 = vadd.f32 0.0, %v4197
        %4199 = vmatmul.f32.gmra.mxu0 %v3986
        %v4200 = vpop.f32.mrf.mxu0
        %v4201 = vadd.f32 0.0, %v4200
        %4202 = vmatmul.f32.gmra.mxu0 %v3987
        %v4203 = vpop.f32.mrf.mxu0
        %v4204 = vadd.f32 0.0, %v4203
        %4205 = vmatmul.f32.gmra.mxu0 %v3988
        %v4206 = vpop.f32.mrf.mxu0
        %v4207 = vadd.f32 0.0, %v4206
        %4208 = vmatmul.f32.gmra.mxu0 %v3989
        %v4209 = vpop.f32.mrf.mxu0
        %v4210 = vadd.f32 0.0, %v4209
        %4211 = vmatmul.f32.gmra.mxu0 %v3990
        %v4212 = vpop.f32.mrf.mxu0
        %v4213 = vadd.f32 0.0, %v4212
        %4214 = vmatmul.f32.gmra.mxu0 %v3991
        %v4215 = vpop.f32.mrf.mxu0
        %v4216 = vadd.f32 0.0, %v4215
        %4217 = vmatmul.f32.gmra.mxu0 %v3992
        %v4218 = vpop.f32.mrf.mxu0
        %v4219 = vadd.f32 0.0, %v4218
        %4220 = vmatmul.f32.gmra.mxu0 %v3993
        %v4221 = vpop.f32.mrf.mxu0
        %v4222 = vadd.f32 0.0, %v4221
        %4223 = vmatmul.f32.gmra.mxu0 %v3994
        %v4224 = vpop.f32.mrf.mxu0
        %v4225 = vadd.f32 0.0, %v4224
        %4226 = vdwg.mxu0
        %v4227 = vmul.f32 %v3817, %v4180
        %v4228 = vmul.f32 %v3827, %v4183
        %v4229 = vmul.f32 %v3837, %v4186
        %v4230 = vmul.f32 %v3847, %v4189
        %v4231 = vmul.f32 %v3857, %v4192
        %v4232 = vmul.f32 %v3867, %v4195
        %v4233 = vmul.f32 %v3877, %v4198
        %v4234 = vmul.f32 %v3887, %v4201
        %v4235 = vmul.f32 %v3897, %v4204
        %v4236 = vmul.f32 %v3907, %v4207
        %v4237 = vmul.f32 %v3917, %v4210
        %v4238 = vmul.f32 %v3927, %v4213
        %v4239 = vmul.f32 %v3937, %v4216
        %v4240 = vmul.f32 %v3947, %v4219
        %v4241 = vmul.f32 %v3957, %v4222
        %v4242 = vmul.f32 %v3967, %v4225
        %v4243 = vperm.slane %v4161, 0
        %v4245 = vsel %vm949, %v4227, 0
        %v4248 = vsel %vm949, %v4228, 0
        %v4251 = vsel %vm949, %v4229, 0
        %v4254 = vsel %vm949, %v4230, 0
        %v4257 = vsel %vm949, %v4231, 0
        %v4260 = vsel %vm949, %v4232, 0
        %v4263 = vsel %vm949, %v4233, 0
        %v4266 = vsel %vm949, %v4234, 0
        %v4269 = vsel %vm949, %v4235, 0
        %v4272 = vsel %vm949, %v4236, 0
        %v4275 = vsel %vm949, %v4237, 0
        %v4278 = vsel %vm949, %v4238, 0
        %v4281 = vsel %vm949, %v4239, 0
        %v4284 = vsel %vm949, %v4240, 0
        %v4287 = vsel %vm949, %v4241, 0
        %v4290 = vsel %vm949, %v4242, 0
        %4292 = vmatpush.msra.mxu0 0.0
        %4293 = vmatpush.msra.mxu0 0.0
        %4294 = vmatpush.msra.mxu0 0.0
        %4295 = vmatpush.msra.mxu0 0.0
        %4296 = vmatpush.msra.mxu0 0.0
        %4297 = vmatpush.msra.mxu0 0.0
        %4298 = vmatpush.msra.mxu0 0.0
        %4299 = vmatpush.msra.mxu0 0.0
        %4300 = vmatpush.msra.mxu0 0.0
        %4301 = vmatpush.msra.mxu0 0.0
        %4302 = vmatpush.msra.mxu0 0.0
        %4303 = vmatpush.msra.mxu0 0.0
        %4304 = vmatpush.msra.mxu0 %v4160
        %4305 = vmatpush.msra.mxu0 %v4159
        %4306 = vmatpush.msra.mxu0 %v4158
        %4307 = vmatpush.msra.mxu0 %v4157
        %4308 = vmatmul.f32.gmra.mxu0 %v4245
        %v4309 = vpop.f32.mrf.mxu0
        %v4310 = vadd.f32 %v4243, %v4309
        %4311 = vmatmul.f32.gmra.mxu0 %v4248
        %v4312 = vpop.f32.mrf.mxu0
        %v4313 = vadd.f32 %v4243, %v4312
        %4314 = vmatmul.f32.gmra.mxu0 %v4251
        %v4315 = vpop.f32.mrf.mxu0
        %v4316 = vadd.f32 %v4243, %v4315
        %4317 = vmatmul.f32.gmra.mxu0 %v4254
        %v4318 = vpop.f32.mrf.mxu0
        %v4319 = vadd.f32 %v4243, %v4318
        %4320 = vmatmul.f32.gmra.mxu0 %v4257
        %v4321 = vpop.f32.mrf.mxu0
        %v4322 = vadd.f32 %v4243, %v4321
        %4323 = vmatmul.f32.gmra.mxu0 %v4260
        %v4324 = vpop.f32.mrf.mxu0
        %v4325 = vadd.f32 %v4243, %v4324
        %4326 = vmatmul.f32.gmra.mxu0 %v4263
        %v4327 = vpop.f32.mrf.mxu0
        %v4328 = vadd.f32 %v4243, %v4327
        %4329 = vmatmul.f32.gmra.mxu0 %v4266
        %v4330 = vpop.f32.mrf.mxu0
        %v4331 = vadd.f32 %v4243, %v4330
        %4332 = vmatmul.f32.gmra.mxu0 %v4269
        %v4333 = vpop.f32.mrf.mxu0
        %v4334 = vadd.f32 %v4243, %v4333
        %4335 = vmatmul.f32.gmra.mxu0 %v4272
        %v4336 = vpop.f32.mrf.mxu0
        %v4337 = vadd.f32 %v4243, %v4336
        %4338 = vmatmul.f32.gmra.mxu0 %v4275
        %v4339 = vpop.f32.mrf.mxu0
        %v4340 = vadd.f32 %v4243, %v4339
        %4341 = vmatmul.f32.gmra.mxu0 %v4278
        %v4342 = vpop.f32.mrf.mxu0
        %v4343 = vadd.f32 %v4243, %v4342
        %4344 = vmatmul.f32.gmra.mxu0 %v4281
        %v4345 = vpop.f32.mrf.mxu0
        %v4346 = vadd.f32 %v4243, %v4345
        %4347 = vmatmul.f32.gmra.mxu0 %v4284
        %v4348 = vpop.f32.mrf.mxu0
        %v4349 = vadd.f32 %v4243, %v4348
        %4350 = vmatmul.f32.gmra.mxu0 %v4287
        %v4351 = vpop.f32.mrf.mxu0
        %v4352 = vadd.f32 %v4243, %v4351
        %4353 = vmatmul.f32.gmra.mxu0 %v4290
        %v4354 = vpop.f32.mrf.mxu0
        %v4355 = vadd.f32 %v4243, %v4354
        %4356 = vdwg.mxu0
        %v4357 = vld [vmem:[%s2 + $0x28] sm:$0xff]
        %v4358 = vld [vmem:[%s2 + $0x30] sm:$0xff]
        %v4359 = vld [vmem:[%s2 + $0x38] sm:$0xff]
        %v4360 = vld [vmem:[%s2 + $0x40] sm:$0xff]
        %v4361 = vld [vmem:[%s2 + $0x49] sm:$0x1]
        %4362 = vmatpush.msra.mxu0 %v4355
        %4363 = vmatpush.msra.mxu0 %v4352
        %4364 = vmatpush.msra.mxu0 %v4349
        %4365 = vmatpush.msra.mxu0 %v4346
        %4366 = vmatpush.msra.mxu0 %v4343
        %4367 = vmatpush.msra.mxu0 %v4340
        %4368 = vmatpush.msra.mxu0 %v4337
        %4369 = vmatpush.msra.mxu0 %v4334
        %4370 = vmatpush.msra.mxu0 %v4331
        %4371 = vmatpush.msra.mxu0 %v4328
        %4372 = vmatpush.msra.mxu0 %v4325
        %4373 = vmatpush.msra.mxu0 %v4322
        %4374 = vmatpush.msra.mxu0 %v4319
        %4375 = vmatpush.msra.mxu0 %v4316
        %4376 = vmatpush.msra.mxu0 %v4313
        %4377 = vmatpush.msra.mxu0 %v4310
        %4378 = vmatmul.f32.gmra.mxu0 %v3979
        %v4379 = vpop.f32.mrf.mxu0
        %v4380 = vadd.f32 0.0, %v4379
        %4381 = vmatmul.f32.gmra.mxu0 %v3980
        %v4382 = vpop.f32.mrf.mxu0
        %v4383 = vadd.f32 0.0, %v4382
        %4384 = vmatmul.f32.gmra.mxu0 %v3981
        %v4385 = vpop.f32.mrf.mxu0
        %v4386 = vadd.f32 0.0, %v4385
        %4387 = vmatmul.f32.gmra.mxu0 %v3982
        %v4388 = vpop.f32.mrf.mxu0
        %v4389 = vadd.f32 0.0, %v4388
        %4390 = vmatmul.f32.gmra.mxu0 %v3983
        %v4391 = vpop.f32.mrf.mxu0
        %v4392 = vadd.f32 0.0, %v4391
        %4393 = vmatmul.f32.gmra.mxu0 %v3984
        %v4394 = vpop.f32.mrf.mxu0
        %v4395 = vadd.f32 0.0, %v4394
        %4396 = vmatmul.f32.gmra.mxu0 %v3985
        %v4397 = vpop.f32.mrf.mxu0
        %v4398 = vadd.f32 0.0, %v4397
        %4399 = vmatmul.f32.gmra.mxu0 %v3986
        %v4400 = vpop.f32.mrf.mxu0
        %v4401 = vadd.f32 0.0, %v4400
        %4402 = vmatmul.f32.gmra.mxu0 %v3987
        %v4403 = vpop.f32.mrf.mxu0
        %v4404 = vadd.f32 0.0, %v4403
        %4405 = vmatmul.f32.gmra.mxu0 %v3988
        %v4406 = vpop.f32.mrf.mxu0
        %v4407 = vadd.f32 0.0, %v4406
        %4408 = vmatmul.f32.gmra.mxu0 %v3989
        %v4409 = vpop.f32.mrf.mxu0
        %v4410 = vadd.f32 0.0, %v4409
        %4411 = vmatmul.f32.gmra.mxu0 %v3990
        %v4412 = vpop.f32.mrf.mxu0
        %v4413 = vadd.f32 0.0, %v4412
        %4414 = vmatmul.f32.gmra.mxu0 %v3991
        %v4415 = vpop.f32.mrf.mxu0
        %v4416 = vadd.f32 0.0, %v4415
        %4417 = vmatmul.f32.gmra.mxu0 %v3992
        %v4418 = vpop.f32.mrf.mxu0
        %v4419 = vadd.f32 0.0, %v4418
        %4420 = vmatmul.f32.gmra.mxu0 %v3993
        %v4421 = vpop.f32.mrf.mxu0
        %v4422 = vadd.f32 0.0, %v4421
        %4423 = vmatmul.f32.gmra.mxu0 %v3994
        %v4424 = vpop.f32.mrf.mxu0
        %v4425 = vadd.f32 0.0, %v4424
        %4426 = vdwg.mxu0
        %v4427 = vmul.f32 %v3817, %v4380
        %v4428 = vmul.f32 %v3827, %v4383
        %v4429 = vmul.f32 %v3837, %v4386
        %v4430 = vmul.f32 %v3847, %v4389
        %v4431 = vmul.f32 %v3857, %v4392
        %v4432 = vmul.f32 %v3867, %v4395
        %v4433 = vmul.f32 %v3877, %v4398
        %v4434 = vmul.f32 %v3887, %v4401
        %v4435 = vmul.f32 %v3897, %v4404
        %v4436 = vmul.f32 %v3907, %v4407
        %v4437 = vmul.f32 %v3917, %v4410
        %v4438 = vmul.f32 %v3927, %v4413
        %v4439 = vmul.f32 %v3937, %v4416
        %v4440 = vmul.f32 %v3947, %v4419
        %v4441 = vmul.f32 %v3957, %v4422
        %v4442 = vmul.f32 %v3967, %v4425
        %v4443 = vperm.slane %v4361, 0
        %v4445 = vsel %vm949, %v4427, 0
        %v4448 = vsel %vm949, %v4428, 0
        %v4451 = vsel %vm949, %v4429, 0
        %v4454 = vsel %vm949, %v4430, 0
        %v4457 = vsel %vm949, %v4431, 0
        %v4460 = vsel %vm949, %v4432, 0
        %v4463 = vsel %vm949, %v4433, 0
        %v4466 = vsel %vm949, %v4434, 0
        %v4469 = vsel %vm949, %v4435, 0
        %v4472 = vsel %vm949, %v4436, 0
        %v4475 = vsel %vm949, %v4437, 0
        %v4478 = vsel %vm949, %v4438, 0
        %v4481 = vsel %vm949, %v4439, 0
        %v4484 = vsel %vm949, %v4440, 0
        %v4487 = vsel %vm949, %v4441, 0
        %v4490 = vsel %vm949, %v4442, 0
        %4492 = vmatpush.msra.mxu0 0.0
        %4493 = vmatpush.msra.mxu0 0.0
        %4494 = vmatpush.msra.mxu0 0.0
        %4495 = vmatpush.msra.mxu0 0.0
        %4496 = vmatpush.msra.mxu0 0.0
        %4497 = vmatpush.msra.mxu0 0.0
        %4498 = vmatpush.msra.mxu0 0.0
        %4499 = vmatpush.msra.mxu0 0.0
        %4500 = vmatpush.msra.mxu0 0.0
        %4501 = vmatpush.msra.mxu0 0.0
        %4502 = vmatpush.msra.mxu0 0.0
        %4503 = vmatpush.msra.mxu0 0.0
        %4504 = vmatpush.msra.mxu0 %v4360
        %4505 = vmatpush.msra.mxu0 %v4359
        %4506 = vmatpush.msra.mxu0 %v4358
        %4507 = vmatpush.msra.mxu0 %v4357
        %4508 = vmatmul.f32.gmra.mxu0 %v4445
        %v4509 = vpop.f32.mrf.mxu0
        %v4510 = vadd.f32 %v4443, %v4509
        %4511 = vmatmul.f32.gmra.mxu0 %v4448
        %v4512 = vpop.f32.mrf.mxu0
        %v4513 = vadd.f32 %v4443, %v4512
        %4514 = vmatmul.f32.gmra.mxu0 %v4451
        %v4515 = vpop.f32.mrf.mxu0
        %v4516 = vadd.f32 %v4443, %v4515
        %4517 = vmatmul.f32.gmra.mxu0 %v4454
        %v4518 = vpop.f32.mrf.mxu0
        %v4519 = vadd.f32 %v4443, %v4518
        %4520 = vmatmul.f32.gmra.mxu0 %v4457
        %v4521 = vpop.f32.mrf.mxu0
        %v4522 = vadd.f32 %v4443, %v4521
        %4523 = vmatmul.f32.gmra.mxu0 %v4460
        %v4524 = vpop.f32.mrf.mxu0
        %v4525 = vadd.f32 %v4443, %v4524
        %4526 = vmatmul.f32.gmra.mxu0 %v4463
        %v4527 = vpop.f32.mrf.mxu0
        %v4528 = vadd.f32 %v4443, %v4527
        %4529 = vmatmul.f32.gmra.mxu0 %v4466
        %v4530 = vpop.f32.mrf.mxu0
        %v4531 = vadd.f32 %v4443, %v4530
        %4532 = vmatmul.f32.gmra.mxu0 %v4469
        %v4533 = vpop.f32.mrf.mxu0
        %v4534 = vadd.f32 %v4443, %v4533
        %4535 = vmatmul.f32.gmra.mxu0 %v4472
        %v4536 = vpop.f32.mrf.mxu0
        %v4537 = vadd.f32 %v4443, %v4536
        %4538 = vmatmul.f32.gmra.mxu0 %v4475
        %v4539 = vpop.f32.mrf.mxu0
        %v4540 = vadd.f32 %v4443, %v4539
        %4541 = vmatmul.f32.gmra.mxu0 %v4478
        %v4542 = vpop.f32.mrf.mxu0
        %v4543 = vadd.f32 %v4443, %v4542
        %4544 = vmatmul.f32.gmra.mxu0 %v4481
        %v4545 = vpop.f32.mrf.mxu0
        %v4546 = vadd.f32 %v4443, %v4545
        %4547 = vmatmul.f32.gmra.mxu0 %v4484
        %v4548 = vpop.f32.mrf.mxu0
        %v4549 = vadd.f32 %v4443, %v4548
        %4550 = vmatmul.f32.gmra.mxu0 %v4487
        %v4551 = vpop.f32.mrf.mxu0
        %v4552 = vadd.f32 %v4443, %v4551
        %4553 = vmatmul.f32.gmra.mxu0 %v4490
        %v4554 = vpop.f32.mrf.mxu0
        %v4555 = vadd.f32 %v4443, %v4554
        %4556 = vdwg.mxu0
        %4557 = vmatpush.msra.mxu0 %v4555
        %4558 = vmatpush.msra.mxu0 %v4552
        %4559 = vmatpush.msra.mxu0 %v4549
        %4560 = vmatpush.msra.mxu0 %v4546
        %4561 = vmatpush.msra.mxu0 %v4543
        %4562 = vmatpush.msra.mxu0 %v4540
        %4563 = vmatpush.msra.mxu0 %v4537
        %4564 = vmatpush.msra.mxu0 %v4534
        %4565 = vmatpush.msra.mxu0 %v4531
        %4566 = vmatpush.msra.mxu0 %v4528
        %4567 = vmatpush.msra.mxu0 %v4525
        %4568 = vmatpush.msra.mxu0 %v4522
        %4569 = vmatpush.msra.mxu0 %v4519
        %4570 = vmatpush.msra.mxu0 %v4516
        %4571 = vmatpush.msra.mxu0 %v4513
        %4572 = vmatpush.msra.mxu0 %v4510
        %4573 = vmatmul.f32.gmra.mxu0 %v227
        %v4574 = vpop.f32.mrf.mxu0
        %v4575 = vadd.f32 0.0, %v4574
        %4576 = vdwg.mxu0
        %v4578 = vsel %vm949, %v4575, 0
        %4580 = vmatpush.msra.mxu0 0.0
        %4581 = vmatpush.msra.mxu0 0.0
        %4582 = vmatpush.msra.mxu0 0.0
        %4583 = vmatpush.msra.mxu0 0.0
        %4584 = vmatpush.msra.mxu0 0.0
        %4585 = vmatpush.msra.mxu0 0.0
        %4586 = vmatpush.msra.mxu0 0.0
        %4587 = vmatpush.msra.mxu0 0.0
        %4588 = vmatpush.msra.mxu0 0.0
        %4589 = vmatpush.msra.mxu0 0.0
        %4590 = vmatpush.msra.mxu0 0.0
        %4591 = vmatpush.msra.mxu0 0.0
        %4592 = vmatpush.msra.mxu0 %v250
        %4593 = vmatpush.msra.mxu0 %v249
        %4594 = vmatpush.msra.mxu0 %v248
        %4595 = vmatpush.msra.mxu0 %v247
        %4596 = vmatmul.f32.gmra.mxu0 %v4578
        %v4597 = vpop.f32.mrf.mxu0
        %v4598 = vadd.f32 %v1283, %v4597
        %4599 = vdwg.mxu0
        %v4600 = vmax.f32 %v4598, 0.0
        %v4602 = vsel %vm949, %v4600, 0
        %4604 = vmatpush.msra.mxu0 0.0
        %4605 = vmatpush.msra.mxu0 0.0
        %4606 = vmatpush.msra.mxu0 0.0
        %4607 = vmatpush.msra.mxu0 0.0
        %4608 = vmatpush.msra.mxu0 0.0
        %4609 = vmatpush.msra.mxu0 0.0
        %4610 = vmatpush.msra.mxu0 0.0
        %4611 = vmatpush.msra.mxu0 0.0
        %4612 = vmatpush.msra.mxu0 0.0
        %4613 = vmatpush.msra.mxu0 0.0
        %4614 = vmatpush.msra.mxu0 0.0
        %4615 = vmatpush.msra.mxu0 0.0
        %4616 = vmatpush.msra.mxu0 %v255
        %4617 = vmatpush.msra.mxu0 %v254
        %4618 = vmatpush.msra.mxu0 %v253
        %4619 = vmatpush.msra.mxu0 %v252
        %4620 = vmatmul.f32.gmra.mxu0 %v4602
        %v4621 = vpop.f32.mrf.mxu0
        %v4622 = vadd.f32 %v1308, %v4621
        %4623 = vdwg.mxu0
        %v4624 = vmax.f32 %v4622, 0.0
        %v4626 = vsel %vm949, %v4624, 0
        %4628 = vmatpush.msra.mxu0 0.0
        %4629 = vmatpush.msra.mxu0 0.0
        %4630 = vmatpush.msra.mxu0 0.0
        %4631 = vmatpush.msra.mxu0 0.0
        %4632 = vmatpush.msra.mxu0 0.0
        %4633 = vmatpush.msra.mxu0 0.0
        %4634 = vmatpush.msra.mxu0 0.0
        %4635 = vmatpush.msra.mxu0 0.0
        %4636 = vmatpush.msra.mxu0 0.0
        %4637 = vmatpush.msra.mxu0 0.0
        %4638 = vmatpush.msra.mxu0 0.0
        %4639 = vmatpush.msra.mxu0 0.0
        %4640 = vmatpush.msra.mxu0 %v260
        %4641 = vmatpush.msra.mxu0 %v259
        %4642 = vmatpush.msra.mxu0 %v258
        %4643 = vmatpush.msra.mxu0 %v257
        %4644 = vmatmul.f32.gmra.mxu0 %v4626
        %v4645 = vpop.f32.mrf.mxu0
        %v4646 = vadd.f32 %v1333, %v4645
        %4647 = vdwg.mxu0
        %4649 = vset.pattern.permute.xlu0 0
        %4650 = vperm.xlu0 %4649, %v4646
        %v4651 = vpop.permute.xlu0 %4650
        %4653 = vst [vmem:[%s211 + $0x18] sm:$0xff] %v4651
        %s4654 = sand.u32 %s120, 1
        %s4655 = scalar_lea.sflag [#allocation3], %s4654
        %s4656 = sand.u32 %s120, 1
        %s4657 = smul.addr %s4656, 32
        %s4658 = scalar_lea.vmem [#allocation2], %s4657
        // Predicated region
        $region37: #{tpu_custom_call.1} parent=35 // pred_check
          %p4659 = pneg %p130
        $region38: #{tpu_custom_call.1} parent=35 // pred_check_branch
          %4661 = sbr.rel (%p4659) target = $region40
        $region39: #{tpu_custom_call.1} parent=35 // pred_region
          %s4662 = smul.u32 4, %s18
          %4664 = vsyncadd %s4655, 0
          %s4665 = smul.addr %s4662, 8
          %s4666 = scalar_lea.hbm %s4, %s4665
          %s4667 = sshll.u32 %s4658, 4
          %s4668 = int_to_ptr.vmem [resolvable:$true] %s4667
          %s4669 = sshll.u32 %s4666, 4
          %s4670 = int_to_ptr.hbm [resolvable:$true] %s4669
          %4675 = dma.vmem_to_hbm [thread:$0]  %s4668, 512, %s4670, %s4655, 128, 128, 8
        $region40: #{tpu_custom_call.1} parent=35 // pred_fallthru
          _
      $region36: #{tpu_custom_call.1} parent=5 // pred_fallthru
        _
      %p4676 = scmp.le.s32.totalorder 2, %s13
      // Predicated region
      $region41: #{tpu_custom_call.1} parent=5 // pred_check
        %p4677 = pneg %p4676
      $region42: #{tpu_custom_call.1} parent=5 // pred_check_branch
        %4679 = sbr.rel (%p4677) target = $region44
      $region43: #{tpu_custom_call.1} parent=5 // pred_region
        %s4680 = ssub.s32 %s13, 2
        // Predicated region
        $region45: #{tpu_custom_call.1} parent=43 // pred_check
          %p4681 = pneg %p136
        $region46: #{tpu_custom_call.1} parent=43 // pred_check_branch
          %4683 = sbr.rel (%p4681) target = $region48
        $region47: #{tpu_custom_call.1} parent=43 // pred_region
          %s4684 = sand.u32 %s121, 1
          %s4685 = scalar_lea.sflag [#allocation3], %s4684
          %s4686 = sand.u32 %s121, 1
          %s4687 = smul.addr %s4686, 32
          %s4688 = scalar_lea.vmem [#allocation2], %s4687
          %4690 = dma.done %s4685, 512
        $region48: #{tpu_custom_call.1} parent=43 // pred_fallthru
          _
      $region44: #{tpu_custom_call.1} parent=5 // pred_fallthru
        _
    $region6: #{tpu_custom_call.1} parent=1 // loop_footer
      %s17 = sadd.s32 1, %s13
    $region7: #{tpu_custom_call.1} parent=1 // loop_footer_branch
      %12 = sbr.rel target = $region3
    $region8: #{tpu_custom_call.1} parent=1 // loop_exit
      _
    %4691 = vsyncpa [#allocation3], 1
    %s4692 = scalar_lea.sflag [#allocation3], 1
    %4693 = vsyncpa %s4692, 1

</llo_original>
